<compile_context>
chip_gen: v7x
topology: tpu7x:2x2x1
jax: 0.10.0
libtpu: 0.0.40
codegen_flags: <defaults>
</compile_context>

<pallas_src>
import functools

import numpy as np
import jax
import jax.numpy as jnp
from jax.experimental import pallas as pl
from jax.experimental.pallas import tpu as pltpu


def _round_up(v, m):
    return ((v + m - 1) // m) * m


# ----------------------------------------------------------------------------
# Generation-aware VMEM budget and (row-tile, K-chunk) selection
# ----------------------------------------------------------------------------
def _vmem_capacity_bytes():
    try:
        info = pltpu.get_tpu_info()
        cap = getattr(info, "vmem_capacity_bytes", None)
        if cap:
            return int(cap)
    except Exception:
        pass
    return 64 * 2 ** 20          # conservative fallback (v7x per-TC VMEM)


def _vmem_budget_bytes():
    # ~80% of physical VMEM: ~51 MiB on 64-MiB v7x, ~102 MiB on 128-MiB
    # v5e/v6e -- headroom for Mosaic internal scratch, semaphores, spills.
    return int(0.80 * _vmem_capacity_bytes())


def _footprint_bytes(TH, W, k_chunk, inter_pad, out_pad):
    """Per-grid-step VMEM footprint estimate for the fused head kernel."""
    M = TH * W
    x_tile = (TH + 2) * (W + 2) * k_chunk * 2      # bf16 haloed activation tile
    w3_tile = 9 * k_chunk * inter_pad * 2          # bf16 3x3 weight chunk
    consts = (inter_pad * out_pad * 2              # bf16 1x1 weight (resident)
              + 2 * inter_pad * 4 + out_pad * 4)   # BN scale/bias + conv bias
    acc = M * inter_pad * 4                        # f32 accumulator scratch
    out = M * out_pad * 2                          # bf16 output block
    xk_copy = (TH + 2) * W * k_chunk * 2           # one kw-shifted view copy
    # double-buffered inputs/outputs + scratch + one live accumulator value.
    return 2 * (x_tile + w3_tile + consts + out) + 2 * acc + xk_copy


def _select_tiling(H, W, cin_pad, inter_pad, out_pad, budget,
                   max_tile_pixels=1024):
    """Pick (row-tile height TH, channel chunk k_chunk) under the VMEM budget.

    Preference (per perf review): keep k_chunk large (deep MXU K, fewer
    K steps / no weight re-streaming when kt==1) and shrink the spatial
    tile first; target ~256-1024 pixels per M tile.
    """
    th_all = [t for t in range(H, 0, -1)
              if H % t == 0 and (t * W) % 16 == 0]
    if not th_all:
        th_all = [H]
    th_pref = [t for t in th_all if t * W <= max_tile_pixels] or th_all
    kc_all = [c for c in range(cin_pad, 0, -128) if cin_pad % c == 0]
    min_px = min(256, H * W, max_tile_pixels)
    for ths in (th_pref, th_all):
        for kc in kc_all:
            for th in ths:
                if ths is th_pref and th * W < min_px:
                    continue
                if _footprint_bytes(th, W, kc, inter_pad, out_pad) <= budget:
                    return th, kc
    return th_all[-1], kc_all[-1]


# ----------------------------------------------------------------------------
# Pallas kernel: fused 3x3 conv (kw-hoisted shifted-view taps over a haloed
# NHWC row-tile) + folded BN + ReLU + final 1x1 conv (+bias).
# Grid = (batch*row-tiles, K-chunks).  bf16 MXU inputs, f32 accumulator.
# ----------------------------------------------------------------------------
def _psp_head_conv_kernel(x_ref, w3_ref, s3_ref, b3_ref, w1_ref, c1b_ref,
                          o_ref, acc_ref, *, TH, W):
    k = pl.program_id(1)
    M = TH * W

    @pl.when(k == 0)
    def _():
        acc_ref[...] = jnp.zeros_like(acc_ref)

    # 3x3 conv over this input-channel chunk.  The kw (column) shift is
    # hoisted out of the tap loop: 3 flattened kw-shifted views per K step;
    # each kh tap is then a static, aligned row slice of that view (3
    # materialized copies per K step instead of 9).  Accumulation goes into
    # acc_ref once per kw group to bound the accumulator's live range.
    for kw in range(3):
        xk = x_ref[0, :, kw:kw + W, :].reshape((TH + 2) * W, -1)   # bf16
        acc = acc_ref[...]
        for kh in range(3):
            acc = acc + jnp.dot(xk[kh * W:kh * W + M, :], w3_ref[kh, kw],
                                preferred_element_type=jnp.float32)
        acc_ref[...] = acc

    @pl.when(k == pl.num_programs(1) - 1)
    def _():
        # Folded BatchNorm + ReLU (padded lanes carry scale=0, bias=0).
        y = jnp.maximum(acc_ref[...] * s3_ref[...] + b3_ref[...], 0.0)
        # TODO(synk): Dropout2d(0.1) is identity here (inference semantics).
        # Fused final 1x1 conv (+bias); weight stays resident in VMEM.
        y2 = jnp.dot(y.astype(w1_ref.dtype), w1_ref[...],
                     preferred_element_type=jnp.float32) + c1b_ref[...]
        o_ref[0] = y2.astype(o_ref.dtype)            # bf16 lane-dense store


def fused_head_conv(x_tiles, w3, s3, b3, w1, c1b, *, TH, W, k_chunk,
                    vmem_limit):
    """x_tiles: (T, TH+2, W+2, cin_pad) bf16 -> (T, TH*W, out_pad) bf16."""
    T, THp2, Wp2, cin_pad = x_tiles.shape
    assert THp2 == TH + 2 and Wp2 == W + 2 and cin_pad % k_chunk == 0
    inter_pad = w3.shape[-1]
    out_pad = w1.shape[-1]
    kt = cin_pad // k_chunk
    M = TH * W

    return pl.pallas_call(
        functools.partial(_psp_head_conv_kernel, TH=TH, W=W),
        out_shape=jax.ShapeDtypeStruct((T, M, out_pad), jnp.bfloat16),
        grid_spec=pltpu.PrefetchScalarGridSpec(
            num_scalar_prefetch=0,
            grid=(T, kt),
            in_specs=[
                # haloed activation row-tile, one channel chunk
                pl.BlockSpec((1, TH + 2, W + 2, k_chunk),
                             lambda t, k: (t, 0, 0, k)),
                # 3x3 weight chunk (kh, kw, cin_chunk, inter_pad); when
                # kt == 1 (whole weight fits the budget, e.g. 128-MiB
                # v5e/v6e) the block index is constant -> weight is fetched
                # once and never re-streamed per image / row-tile.
                pl.BlockSpec((3, 3, k_chunk, inter_pad),
                             lambda t, k: (0, 0, k, 0)),
                # folded BN scale / bias
                pl.BlockSpec((1, inter_pad), lambda t, k: (0, 0)),
                pl.BlockSpec((1, inter_pad), lambda t, k: (0, 0)),
                # final 1x1 conv weight (resident) + bias
                pl.BlockSpec((inter_pad, out_pad), lambda t, k: (0, 0)),
                pl.BlockSpec((1, out_pad), lambda t, k: (0, 0)),
            ],
            out_specs=pl.BlockSpec((1, M, out_pad), lambda t, k: (t, 0, 0)),
            scratch_shapes=[pltpu.VMEM((M, inter_pad), jnp.float32)],
        ),
        compiler_params=pltpu.CompilerParams(
            dimension_semantics=("parallel", "arbitrary"),
            vmem_limit_bytes=vmem_limit,
        ),
    )(x_tiles, w3, s3, b3, w1, c1b)


# ----------------------------------------------------------------------------
# XLA glue (NHWC): adaptive avg pool, bilinear upsample (align_corners=True)
# ----------------------------------------------------------------------------
def adaptive_avg_pool_nhwc(x, k):
    """x: (N, H, W, C) -> (N, k, k, C); exact PyTorch AdaptiveAvgPool2d bins."""
    N, H, W, C = x.shape
    rows = []
    for i in range(k):
        hs, he = (i * H) // k, -((-(i + 1) * H) // k)
        cols = []
        for j in range(k):
            ws, we = (j * W) // k, -((-(j + 1) * W) // k)
            cols.append(jnp.mean(x[:, hs:he, ws:we, :], axis=(1, 2)))
        rows.append(jnp.stack(cols, axis=1))          # (N, k, C)
    return jnp.stack(rows, axis=1)                    # (N, k, k, C)


def _interp_matrix(src, dst):
    """align_corners=True linear interpolation matrix (dst, src)."""
    M = np.zeros((dst, src), dtype=np.float32)
    if src == 1:
        M[:, 0] = 1.0
        return M
    for i in range(dst):
        coord = 0.0 if dst == 1 else i * (src - 1) / (dst - 1)
        i0 = min(int(np.floor(coord)), src - 1)
        i1 = min(i0 + 1, src - 1)
        f = coord - i0
        M[i, i0] += 1.0 - f
        M[i, i1] += f
    return M


def bilinear_upsample_nhwc(x, H, W):
    """x: (N, h, w, C) -> (N, H, W, C), bilinear, align_corners=True."""
    _, h, w, _ = x.shape
    Mh = jnp.asarray(_interp_matrix(h, H))            # (H, h)
    Mw = jnp.asarray(_interp_matrix(w, W))            # (W, w)
    return jnp.einsum("nhwc,Hh,Ww->nHWc", x, Mh, Mw)


def _pyramid_concat(x, params):
    """PyramidPooling: x (N,H,W,C) -> concat (N,H,W,2C).  Tiny matmuls stay
    in XLA (M <= 36 pixels, far below one MXU tile)."""
    N, H, W, C = x.shape
    feats = [x]
    for idx, k in enumerate((1, 2, 3, 6)):
        p = adaptive_avg_pool_nhwc(x, k)                              # (N,k,k,C)
        y = jnp.einsum("nijc,cd->nijd", p, params[f"pp_w{idx}"])
        y = jnp.maximum(y * params[f"pp_s{idx}"] + params[f"pp_b{idx}"], 0.0)
        feats.append(bilinear_upsample_nhwc(y, H, W))                 # (N,H,W,Cq)
    return jnp.concatenate(feats, axis=-1)                            # (N,H,W,2C)


# ----------------------------------------------------------------------------
# Parameters (deterministic, synthetic; mirrors the PyTorch module shapes)
# ----------------------------------------------------------------------------
def init_params(key, in_channels, out_channels):
    C = in_channels
    Cq = C // 4                     # pyramid-branch output channels
    inter = C // 4                  # head intermediate channels
    inter_pad = max(128, _round_up(inter, 128))
    out_pad = max(128, _round_up(out_channels, 128))
    cin = 2 * C
    cin_pad = max(128, _round_up(cin, 128))
    eps = 1e-5
    keys = jax.random.split(key, 16)
    ki = 0
    params = {}

    def bn_fold(gamma, beta, mean, var):
        scale = gamma / jnp.sqrt(var + eps)
        return scale, beta - mean * scale

    # 4 pyramid branches: 1x1 conv (Cq, C) no bias, BN(Cq) -- left to XLA.
    for idx in range(4):
        w = jax.random.normal(keys[ki], (Cq, C), jnp.float32) / np.sqrt(C); ki += 1
        params[f"pp_w{idx}"] = w.T                                     # (C, Cq)
        gamma = 1.0 + 0.1 * jax.random.normal(keys[ki], (Cq,), jnp.float32); ki += 1
        beta = 0.05 * jnp.arange(Cq, dtype=jnp.float32)
        s, b = bn_fold(gamma, beta, jnp.zeros((Cq,)), jnp.ones((Cq,)))
        params[f"pp_s{idx}"], params[f"pp_b{idx}"] = s, b

    # 3x3 conv (inter, 2C, 3, 3), no bias -> layout (3,3,cin_pad,inter_pad) bf16
    fan_in = cin * 9
    w3 = jax.random.normal(keys[ki], (inter, cin, 3, 3), jnp.float32) / np.sqrt(fan_in); ki += 1
    w3 = jnp.transpose(w3, (2, 3, 1, 0))                               # (3,3,2C,inter)
    w3 = jnp.pad(w3, ((0, 0), (0, 0), (0, cin_pad - cin), (0, inter_pad - inter)))
    params["c3_w"] = w3.astype(jnp.bfloat16)
    gamma = 1.0 + 0.1 * jax.random.normal(keys[ki], (inter,), jnp.float32); ki += 1
    beta = 0.05 * jnp.arange(inter, dtype=jnp.float32)
    s, b = bn_fold(gamma, beta, jnp.zeros((inter,)), jnp.ones((inter,)))
    params["c3_s"] = jnp.pad(s, (0, inter_pad - inter)).reshape(1, inter_pad)
    params["c3_b"] = jnp.pad(b, (0, inter_pad - inter)).reshape(1, inter_pad)

    # final 1x1 conv (out, inter) + bias (torch-init 0) -> (inter_pad,out_pad) bf16
    w1 = jax.random.normal(keys[ki], (out_channels, inter), jnp.float32) / np.sqrt(inter); ki += 1
    w1 = jnp.pad(w1.T, ((0, inter_pad - inter), (0, out_pad - out_channels)))
    params["c1_w"] = w1.astype(jnp.bfloat16)
    params["c1_bias"] = jnp.zeros((1, out_pad), jnp.float32)
    return params


# ----------------------------------------------------------------------------
# Fused head (Pallas) and full PSPHead forward (NCHW in / NCHW out)
# ----------------------------------------------------------------------------
def _fused_head(cat, params, out_channels, max_tile_pixels=1024):
    """cat: (N, H, W, 2C) f32 -> (N, out_channels, H, W) f32 (fused Pallas)."""
    N, H, W, cin = cat.shape
    cin_pad = params["c3_w"].shape[2]
    inter_pad = params["c3_w"].shape[3]
    out_pad = params["c1_w"].shape[1]

    budget = _vmem_budget_bytes()
    TH, k_chunk = _select_tiling(H, W, cin_pad, inter_pad, out_pad, budget,
                                 max_tile_pixels=max_tile_pixels)
    n_tiles = H // TH

    # One materialization: concat -> bf16 cast -> halo/channel pad ->
    # per-row-tile halo stacking (2 overlap rows per tile).  No im2col.
    padded = jnp.pad(cat.astype(jnp.bfloat16),
                     ((0, 0), (1, 1), (1, 1), (0, cin_pad - cin)))
    if n_tiles == 1:
        x_tiles = padded
    else:
        x_tiles = jnp.stack(
            [padded[:, r * TH:r * TH + TH + 2] for r in range(n_tiles)],
            axis=1).reshape(N * n_tiles, TH + 2, W + 2, cin_pad)

    need = _footprint_bytes(TH, W, k_chunk, inter_pad, out_pad)
    vmem_limit = int(min(max(1.3 * need, 32 * 2 ** 20), budget))

    out = fused_head_conv(x_tiles, params["c3_w"], params["c3_s"],
                          params["c3_b"], params["c1_w"], params["c1_bias"],
                          TH=TH, W=W, k_chunk=k_chunk, vmem_limit=vmem_limit)
    # bf16 kernel output -> slice real channels + NCHW transpose + f32 cast
    # in one fused XLA epilogue.
    out = out.reshape(N, H, W, out_pad)[:, :, :, :out_channels]
    return jnp.transpose(out, (0, 3, 1, 2)).astype(jnp.float32)


def psp_head_forward(x_nchw, params, out_channels, max_tile_pixels=1024):
    N, C, H, W = x_nchw.shape
    x = jnp.transpose(x_nchw, (0, 2, 3, 1))           # NHWC once at the boundary
    cat = _pyramid_concat(x, params)                   # (N, H, W, 2C)
    return _fused_head(cat, params, out_channels, max_tile_pixels)


# ----------------------------------------------------------------------------
# Pure-XLA reference for the fused head (same bf16 inputs / f32 accumulation)
# ----------------------------------------------------------------------------
def _head_reference(cat, params, out_channels):
    N, H, W, cin = cat.shape
    cin_pad = params["c3_w"].shape[2]
    x = jnp.pad(cat.astype(jnp.bfloat16),
                ((0, 0), (1, 1), (1, 1), (0, cin_pad - cin)))
    w3 = params["c3_w"]
    acc = jnp.zeros((N, H, W, w3.shape[-1]), jnp.float32)
    for kh in range(3):
        for kw in range(3):
            acc = acc + jnp.einsum("nhwc,cd->nhwd",
                                   x[:, kh:kh + H, kw:kw + W, :], w3[kh, kw],
                                   preferred_element_type=jnp.float32)
    y = jnp.maximum(acc * params["c3_s"][0] + params["c3_b"][0], 0.0)
    y2 = jnp.einsum("nhwc,cd->nhwd", y.astype(jnp.bfloat16), params["c1_w"],
                    preferred_element_type=jnp.float32) + params["c1_bias"][0]
    y2 = y2.astype(jnp.bfloat16).astype(jnp.float32)   # match kernel bf16 store
    return jnp.transpose(y2[..., :out_channels], (0, 3, 1, 2))


# ----------------------------------------------------------------------------
if __name__ == "__main__":
    key = jax.random.PRNGKey(0)
    k_x, k_p = jax.random.split(key)

    N, in_channels, H, W = 2, 16, 16, 16
    out_channels = 8

    x = jax.random.normal(k_x, (N, in_channels, H, W), jnp.float32)
    params = init_params(k_p, in_channels, out_channels)

    fwd = jax.jit(psp_head_forward, static_argnums=(2, 3))

    # Reference (plain XLA, same bf16/f32 numerics) for the fused head.
    x_nhwc = jnp.transpose(x, (0, 2, 3, 1))
    cat = _pyramid_concat(x_nhwc, params)
    ref = jax.block_until_ready(_head_reference(cat, params, out_channels))

    # (a) default tiling; (b) forced small row tiles so the multi-row-tile
    #     "parallel" grid path is exercised even at this toy spatial size.
    for max_px in (1024, 128):
        out = jax.block_until_ready(fwd(x, params, out_channels, max_px))
        assert out.shape == (N, out_channels, H, W), out.shape
        assert bool(jnp.all(jnp.isfinite(out)))
        err = float(jnp.max(jnp.abs(out - ref)))
        assert err < 3e-2, f"max abs err {err} (max_tile_pixels={max_px})"

    print("KERNEL_OK")
</pallas_src>

<mosaic_0001>
module attributes {stable_mosaic.version = 11 : i64} {
  func.func @_psp_head_conv_kernel(%arg0: i32, %arg1: i32, %arg2: memref<1x18x18x128xbf16, #tpu.memory_space<vmem>>, %arg3: memref<3x3x128x128xbf16, #tpu.memory_space<vmem>>, %arg4: memref<1x128xf32, #tpu.memory_space<vmem>>, %arg5: memref<1x128xf32, #tpu.memory_space<vmem>>, %arg6: memref<128x128xbf16, #tpu.memory_space<vmem>>, %arg7: memref<1x128xf32, #tpu.memory_space<vmem>>, %arg8: memref<1x256x128xbf16, #tpu.memory_space<vmem>>, %arg9: memref<256x128xf32, #tpu.memory_space<vmem>>) attributes {dimension_semantics = [#tpu.dimension_semantics<parallel>, #tpu.dimension_semantics<arbitrary>], iteration_bounds = array<i64: 2, 1>, scalar_prefetch = 0 : i64, scratch_operands = 1 : i64, tpu.core_type = #tpu.core_type<tc>, window_params = [{transform_indices = @transform_0, window_bounds = array<i64: 1, 18, 18, 128>}, {transform_indices = @transform_1, window_bounds = array<i64: 3, 3, 128, 128>}, {pipeline_mode = #tpu.pipeline_mode<synchronous>, transform_indices = @transform_2, window_bounds = array<i64: 1, 128>}, {pipeline_mode = #tpu.pipeline_mode<synchronous>, transform_indices = @transform_3, window_bounds = array<i64: 1, 128>}, {pipeline_mode = #tpu.pipeline_mode<synchronous>, transform_indices = @transform_4, window_bounds = array<i64: 128, 128>}, {pipeline_mode = #tpu.pipeline_mode<synchronous>, transform_indices = @transform_5, window_bounds = array<i64: 1, 128>}, {transform_indices = @transform_6, window_bounds = array<i64: 1, 256, 128>}]} {
    %c0_i32 = arith.constant 0 : i32
    %0 = arith.cmpi eq, %arg1, %c0_i32 : i32
    %1 = arith.extui %0 : i1 to i32
    %c0_i32_0 = arith.constant 0 : i32
    %2 = arith.cmpi ne, %1, %c0_i32_0 : i32
    scf.if %2 {
      %cst_68 = arith.constant 0.000000e+00 : f32
      %66 = vector.broadcast %cst_68 : f32 to vector<256x128xf32>
      %c0_69 = arith.constant 0 : index
      %c0_70 = arith.constant 0 : index
      %67 = vector.load %arg9[%c0_69, %c0_70] : memref<256x128xf32, #tpu.memory_space<vmem>>, vector<256x128xf32>
      tpu.vector_store %arg9[%c0_69, %c0_70], %66 {strides = array<i32>} : memref<256x128xf32, #tpu.memory_space<vmem>>, vector<256x128xf32>,
    } else {
    }
    %c0 = arith.constant 0 : index
    %c0_1 = arith.constant 0 : index
    %c0_2 = arith.constant 0 : index
    %c0_3 = arith.constant 0 : index
    %3 = vector.load %arg2[%c0, %c0_1, %c0_2, %c0_3] : memref<1x18x18x128xbf16, #tpu.memory_space<vmem>>, vector<1x18x16x128xbf16>
    %4 = vector.shape_cast %3 : vector<1x18x16x128xbf16> to vector<18x16x128xbf16>
    %5 = vector.shape_cast %4 : vector<18x16x128xbf16> to vector<288x128xbf16>
    %c0_4 = arith.constant 0 : index
    %c0_5 = arith.constant 0 : index
    %6 = vector.load %arg9[%c0_4, %c0_5] : memref<256x128xf32, #tpu.memory_space<vmem>>, vector<256x128xf32>
    %7 = vector.extract_strided_slice %5 {offsets = [0, 0], sizes = [256, 128], strides = [1, 1]} : vector<288x128xbf16> to vector<256x128xbf16>
    %c0_6 = arith.constant 0 : index
    %c0_7 = arith.constant 0 : index
    %c0_8 = arith.constant 0 : index
    %c0_9 = arith.constant 0 : index
    %8 = vector.load %arg3[%c0_6, %c0_7, %c0_8, %c0_9] : memref<3x3x128x128xbf16, #tpu.memory_space<vmem>>, vector<1x1x128x128xbf16>
    %9 = vector.shape_cast %8 : vector<1x1x128x128xbf16> to vector<128x128xbf16>
    %cst = arith.constant dense<0.000000e+00> : vector<256x128xf32>
    %10 = tpu.matmul %7, %9, %cst {dimension_numbers = #tpu.dot_dimension_numbers<[1], [0], [0], [1], [0, 0, 1, 1], [], []>} : vector<256x128xbf16>, vector<128x128xbf16>, vector<256x128xf32> -> vector<256x128xf32>
    %11 = arith.addf %6, %10 : vector<256x128xf32>
    %12 = vector.extract_strided_slice %5 {offsets = [16, 0], sizes = [256, 128], strides = [1, 1]} : vector<288x128xbf16> to vector<256x128xbf16>
    %c1 = arith.constant 1 : index
    %c0_10 = arith.constant 0 : index
    %c0_11 = arith.constant 0 : index
    %c0_12 = arith.constant 0 : index
    %13 = vector.load %arg3[%c1, %c0_10, %c0_11, %c0_12] : memref<3x3x128x128xbf16, #tpu.memory_space<vmem>>, vector<1x1x128x128xbf16>
    %14 = vector.shape_cast %13 : vector<1x1x128x128xbf16> to vector<128x128xbf16>
    %cst_13 = arith.constant dense<0.000000e+00> : vector<256x128xf32>
    %15 = tpu.matmul %12, %14, %cst_13 {dimension_numbers = #tpu.dot_dimension_numbers<[1], [0], [0], [1], [0, 0, 1, 1], [], []>} : vector<256x128xbf16>, vector<128x128xbf16>, vector<256x128xf32> -> vector<256x128xf32>
    %16 = arith.addf %11, %15 : vector<256x128xf32>
    %17 = vector.extract_strided_slice %5 {offsets = [32, 0], sizes = [256, 128], strides = [1, 1]} : vector<288x128xbf16> to vector<256x128xbf16>
    %c2 = arith.constant 2 : index
    %c0_14 = arith.constant 0 : index
    %c0_15 = arith.constant 0 : index
    %c0_16 = arith.constant 0 : index
    %18 = vector.load %arg3[%c2, %c0_14, %c0_15, %c0_16] : memref<3x3x128x128xbf16, #tpu.memory_space<vmem>>, vector<1x1x128x128xbf16>
    %19 = vector.shape_cast %18 : vector<1x1x128x128xbf16> to vector<128x128xbf16>
    %cst_17 = arith.constant dense<0.000000e+00> : vector<256x128xf32>
    %20 = tpu.matmul %17, %19, %cst_17 {dimension_numbers = #tpu.dot_dimension_numbers<[1], [0], [0], [1], [0, 0, 1, 1], [], []>} : vector<256x128xbf16>, vector<128x128xbf16>, vector<256x128xf32> -> vector<256x128xf32>
    %21 = arith.addf %16, %20 : vector<256x128xf32>
    %c0_18 = arith.constant 0 : index
    %c0_19 = arith.constant 0 : index
    %22 = vector.load %arg9[%c0_18, %c0_19] : memref<256x128xf32, #tpu.memory_space<vmem>>, vector<256x128xf32>
    tpu.vector_store %arg9[%c0_18, %c0_19], %21 {strides = array<i32>} : memref<256x128xf32, #tpu.memory_space<vmem>>, vector<256x128xf32>,
    %c0_20 = arith.constant 0 : index
    %c0_21 = arith.constant 0 : index
    %c1_22 = arith.constant 1 : index
    %c0_23 = arith.constant 0 : index
    %23 = vector.load %arg2[%c0_20, %c0_21, %c1_22, %c0_23] : memref<1x18x18x128xbf16, #tpu.memory_space<vmem>>, vector<1x18x16x128xbf16>
    %24 = vector.shape_cast %23 : vector<1x18x16x128xbf16> to vector<18x16x128xbf16>
    %25 = vector.shape_cast %24 : vector<18x16x128xbf16> to vector<288x128xbf16>
    %c0_24 = arith.constant 0 : index
    %c0_25 = arith.constant 0 : index
    %26 = vector.load %arg9[%c0_24, %c0_25] : memref<256x128xf32, #tpu.memory_space<vmem>>, vector<256x128xf32>
    %27 = vector.extract_strided_slice %25 {offsets = [0, 0], sizes = [256, 128], strides = [1, 1]} : vector<288x128xbf16> to vector<256x128xbf16>
    %c0_26 = arith.constant 0 : index
    %c1_27 = arith.constant 1 : index
    %c0_28 = arith.constant 0 : index
    %c0_29 = arith.constant 0 : index
    %28 = vector.load %arg3[%c0_26, %c1_27, %c0_28, %c0_29] : memref<3x3x128x128xbf16, #tpu.memory_space<vmem>>, vector<1x1x128x128xbf16>
    %29 = vector.shape_cast %28 : vector<1x1x128x128xbf16> to vector<128x128xbf16>
    %cst_30 = arith.constant dense<0.000000e+00> : vector<256x128xf32>
    %30 = tpu.matmul %27, %29, %cst_30 {dimension_numbers = #tpu.dot_dimension_numbers<[1], [0], [0], [1], [0, 0, 1, 1], [], []>} : vector<256x128xbf16>, vector<128x128xbf16>, vector<256x128xf32> -> vector<256x128xf32>
    %31 = arith.addf %26, %30 : vector<256x128xf32>
    %32 = vector.extract_strided_slice %25 {offsets = [16, 0], sizes = [256, 128], strides = [1, 1]} : vector<288x128xbf16> to vector<256x128xbf16>
    %c1_31 = arith.constant 1 : index
    %c1_32 = arith.constant 1 : index
    %c0_33 = arith.constant 0 : index
    %c0_34 = arith.constant 0 : index
    %33 = vector.load %arg3[%c1_31, %c1_32, %c0_33, %c0_34] : memref<3x3x128x128xbf16, #tpu.memory_space<vmem>>, vector<1x1x128x128xbf16>
    %34 = vector.shape_cast %33 : vector<1x1x128x128xbf16> to vector<128x128xbf16>
    %cst_35 = arith.constant dense<0.000000e+00> : vector<256x128xf32>
    %35 = tpu.matmul %32, %34, %cst_35 {dimension_numbers = #tpu.dot_dimension_numbers<[1], [0], [0], [1], [0, 0, 1, 1], [], []>} : vector<256x128xbf16>, vector<128x128xbf16>, vector<256x128xf32> -> vector<256x128xf32>
    %36 = arith.addf %31, %35 : vector<256x128xf32>
    %37 = vector.extract_strided_slice %25 {offsets = [32, 0], sizes = [256, 128], strides = [1, 1]} : vector<288x128xbf16> to vector<256x128xbf16>
    %c2_36 = arith.constant 2 : index
    %c1_37 = arith.constant 1 : index
    %c0_38 = arith.constant 0 : index
    %c0_39 = arith.constant 0 : index
    %38 = vector.load %arg3[%c2_36, %c1_37, %c0_38, %c0_39] : memref<3x3x128x128xbf16, #tpu.memory_space<vmem>>, vector<1x1x128x128xbf16>
    %39 = vector.shape_cast %38 : vector<1x1x128x128xbf16> to vector<128x128xbf16>
    %cst_40 = arith.constant dense<0.000000e+00> : vector<256x128xf32>
    %40 = tpu.matmul %37, %39, %cst_40 {dimension_numbers = #tpu.dot_dimension_numbers<[1], [0], [0], [1], [0, 0, 1, 1], [], []>} : vector<256x128xbf16>, vector<128x128xbf16>, vector<256x128xf32> -> vector<256x128xf32>
    %41 = arith.addf %36, %40 : vector<256x128xf32>
    %c0_41 = arith.constant 0 : index
    %c0_42 = arith.constant 0 : index
    %42 = vector.load %arg9[%c0_41, %c0_42] : memref<256x128xf32, #tpu.memory_space<vmem>>, vector<256x128xf32>
    tpu.vector_store %arg9[%c0_41, %c0_42], %41 {strides = array<i32>} : memref<256x128xf32, #tpu.memory_space<vmem>>, vector<256x128xf32>,
    %c0_43 = arith.constant 0 : index
    %c0_44 = arith.constant 0 : index
    %c2_45 = arith.constant 2 : index
    %c0_46 = arith.constant 0 : index
    %43 = vector.load %arg2[%c0_43, %c0_44, %c2_45, %c0_46] : memref<1x18x18x128xbf16, #tpu.memory_space<vmem>>, vector<1x18x16x128xbf16>
    %44 = vector.shape_cast %43 : vector<1x18x16x128xbf16> to vector<18x16x128xbf16>
    %45 = vector.shape_cast %44 : vector<18x16x128xbf16> to vector<288x128xbf16>
    %c0_47 = arith.constant 0 : index
    %c0_48 = arith.constant 0 : index
    %46 = vector.load %arg9[%c0_47, %c0_48] : memref<256x128xf32, #tpu.memory_space<vmem>>, vector<256x128xf32>
    %47 = vector.extract_strided_slice %45 {offsets = [0, 0], sizes = [256, 128], strides = [1, 1]} : vector<288x128xbf16> to vector<256x128xbf16>
    %c0_49 = arith.constant 0 : index
    %c2_50 = arith.constant 2 : index
    %c0_51 = arith.constant 0 : index
    %c0_52 = arith.constant 0 : index
    %48 = vector.load %arg3[%c0_49, %c2_50, %c0_51, %c0_52] : memref<3x3x128x128xbf16, #tpu.memory_space<vmem>>, vector<1x1x128x128xbf16>
    %49 = vector.shape_cast %48 : vector<1x1x128x128xbf16> to vector<128x128xbf16>
    %cst_53 = arith.constant dense<0.000000e+00> : vector<256x128xf32>
    %50 = tpu.matmul %47, %49, %cst_53 {dimension_numbers = #tpu.dot_dimension_numbers<[1], [0], [0], [1], [0, 0, 1, 1], [], []>} : vector<256x128xbf16>, vector<128x128xbf16>, vector<256x128xf32> -> vector<256x128xf32>
    %51 = arith.addf %46, %50 : vector<256x128xf32>
    %52 = vector.extract_strided_slice %45 {offsets = [16, 0], sizes = [256, 128], strides = [1, 1]} : vector<288x128xbf16> to vector<256x128xbf16>
    %c1_54 = arith.constant 1 : index
    %c2_55 = arith.constant 2 : index
    %c0_56 = arith.constant 0 : index
    %c0_57 = arith.constant 0 : index
    %53 = vector.load %arg3[%c1_54, %c2_55, %c0_56, %c0_57] : memref<3x3x128x128xbf16, #tpu.memory_space<vmem>>, vector<1x1x128x128xbf16>
    %54 = vector.shape_cast %53 : vector<1x1x128x128xbf16> to vector<128x128xbf16>
    %cst_58 = arith.constant dense<0.000000e+00> : vector<256x128xf32>
    %55 = tpu.matmul %52, %54, %cst_58 {dimension_numbers = #tpu.dot_dimension_numbers<[1], [0], [0], [1], [0, 0, 1, 1], [], []>} : vector<256x128xbf16>, vector<128x128xbf16>, vector<256x128xf32> -> vector<256x128xf32>
    %56 = arith.addf %51, %55 : vector<256x128xf32>
    %57 = vector.extract_strided_slice %45 {offsets = [32, 0], sizes = [256, 128], strides = [1, 1]} : vector<288x128xbf16> to vector<256x128xbf16>
    %c2_59 = arith.constant 2 : index
    %c2_60 = arith.constant 2 : index
    %c0_61 = arith.constant 0 : index
    %c0_62 = arith.constant 0 : index
    %58 = vector.load %arg3[%c2_59, %c2_60, %c0_61, %c0_62] : memref<3x3x128x128xbf16, #tpu.memory_space<vmem>>, vector<1x1x128x128xbf16>
    %59 = vector.shape_cast %58 : vector<1x1x128x128xbf16> to vector<128x128xbf16>
    %cst_63 = arith.constant dense<0.000000e+00> : vector<256x128xf32>
    %60 = tpu.matmul %57, %59, %cst_63 {dimension_numbers = #tpu.dot_dimension_numbers<[1], [0], [0], [1], [0, 0, 1, 1], [], []>} : vector<256x128xbf16>, vector<128x128xbf16>, vector<256x128xf32> -> vector<256x128xf32>
    %61 = arith.addf %56, %60 : vector<256x128xf32>
    %c0_64 = arith.constant 0 : index
    %c0_65 = arith.constant 0 : index
    %62 = vector.load %arg9[%c0_64, %c0_65] : memref<256x128xf32, #tpu.memory_space<vmem>>, vector<256x128xf32>
    tpu.vector_store %arg9[%c0_64, %c0_65], %61 {strides = array<i32>} : memref<256x128xf32, #tpu.memory_space<vmem>>, vector<256x128xf32>,
    %c0_i32_66 = arith.constant 0 : i32
    %63 = arith.cmpi eq, %arg1, %c0_i32_66 : i32
    %64 = arith.extui %63 : i1 to i32
    %c0_i32_67 = arith.constant 0 : i32
    %65 = arith.cmpi ne, %64, %c0_i32_67 : i32
    scf.if %65 {
      %c0_68 = arith.constant 0 : index
      %c0_69 = arith.constant 0 : index
      %66 = vector.load %arg9[%c0_68, %c0_69] : memref<256x128xf32, #tpu.memory_space<vmem>>, vector<256x128xf32>
      %c0_70 = arith.constant 0 : index
      %c0_71 = arith.constant 0 : index
      %67 = vector.load %arg4[%c0_70, %c0_71] : memref<1x128xf32, #tpu.memory_space<vmem>>, vector<1x128xf32>
      %68 = vector.broadcast %67 : vector<1x128xf32> to vector<256x128xf32>
      %69 = arith.mulf %66, %68 : vector<256x128xf32>
      %c0_72 = arith.constant 0 : index
      %c0_73 = arith.constant 0 : index
      %70 = vector.load %arg5[%c0_72, %c0_73] : memref<1x128xf32, #tpu.memory_space<vmem>>, vector<1x128xf32>
      %71 = vector.broadcast %70 : vector<1x128xf32> to vector<256x128xf32>
      %72 = arith.addf %69, %71 : vector<256x128xf32>
      %cst_74 = arith.constant 0.000000e+00 : f32
      %73 = vector.broadcast %cst_74 : f32 to vector<256x128xf32>
      %74 = arith.maximumf %72, %73 : vector<256x128xf32>
      %75 = arith.truncf %74 : vector<256x128xf32> to vector<256x128xbf16>
      %c0_75 = arith.constant 0 : index
      %c0_76 = arith.constant 0 : index
      %76 = vector.load %arg6[%c0_75, %c0_76] : memref<128x128xbf16, #tpu.memory_space<vmem>>, vector<128x128xbf16>
      %cst_77 = arith.constant dense<0.000000e+00> : vector<256x128xf32>
      %77 = tpu.matmul %75, %76, %cst_77 {dimension_numbers = #tpu.dot_dimension_numbers<[1], [0], [0], [1], [0, 0, 1, 1], [], []>} : vector<256x128xbf16>, vector<128x128xbf16>, vector<256x128xf32> -> vector<256x128xf32>
      %c0_78 = arith.constant 0 : index
      %c0_79 = arith.constant 0 : index
      %78 = vector.load %arg7[%c0_78, %c0_79] : memref<1x128xf32, #tpu.memory_space<vmem>>, vector<1x128xf32>
      %79 = vector.broadcast %78 : vector<1x128xf32> to vector<256x128xf32>
      %80 = arith.addf %77, %79 : vector<256x128xf32>
      %81 = arith.truncf %80 : vector<256x128xf32> to vector<256x128xbf16>
      %c0_80 = arith.constant 0 : index
      %c0_81 = arith.constant 0 : index
      %c0_82 = arith.constant 0 : index
      %82 = vector.load %arg8[%c0_80, %c0_81, %c0_82] : memref<1x256x128xbf16, #tpu.memory_space<vmem>>, vector<1x256x128xbf16>
      %83 = vector.shape_cast %82 : vector<1x256x128xbf16> to vector<256x128xbf16>
      %84 = vector.shape_cast %81 : vector<256x128xbf16> to vector<1x256x128xbf16>
      tpu.vector_store %arg8[%c0_80, %c0_81, %c0_82], %84 {strides = array<i32>} : memref<1x256x128xbf16, #tpu.memory_space<vmem>>, vector<1x256x128xbf16>,
    } else {
    }
    return
  }
  func.func @transform_0(%arg0: i32, %arg1: i32) -> (i32, i32, i32, i32) {
    %c0_i32 = arith.constant 0 : i32
    %c0_i32_0 = arith.constant 0 : i32
    %c0_i32_1 = arith.constant 0 : i32
    return %arg0, %c0_i32, %c0_i32_0, %arg1 : i32, i32, i32, i32
  }
  func.func @transform_1(%arg0: i32, %arg1: i32) -> (i32, i32, i32, i32) {
    %c0_i32 = arith.constant 0 : i32
    %c0_i32_0 = arith.constant 0 : i32
    %c0_i32_1 = arith.constant 0 : i32
    %c0_i32_2 = arith.constant 0 : i32
    return %c0_i32, %c0_i32_0, %arg1, %c0_i32_1 : i32, i32, i32, i32
  }
  func.func @transform_2(%arg0: i32, %arg1: i32) -> (i32, i32) {
    %c0_i32 = arith.constant 0 : i32
    %c0_i32_0 = arith.constant 0 : i32
    %c0_i32_1 = arith.constant 0 : i32
    return %c0_i32, %c0_i32_0 : i32, i32
  }
  func.func @transform_3(%arg0: i32, %arg1: i32) -> (i32, i32) {
    %c0_i32 = arith.constant 0 : i32
    %c0_i32_0 = arith.constant 0 : i32
    %c0_i32_1 = arith.constant 0 : i32
    return %c0_i32, %c0_i32_0 : i32, i32
  }
  func.func @transform_4(%arg0: i32, %arg1: i32) -> (i32, i32) {
    %c0_i32 = arith.constant 0 : i32
    %c0_i32_0 = arith.constant 0 : i32
    %c0_i32_1 = arith.constant 0 : i32
    return %c0_i32, %c0_i32_0 : i32, i32
  }
  func.func @transform_5(%arg0: i32, %arg1: i32) -> (i32, i32) {
    %c0_i32 = arith.constant 0 : i32
    %c0_i32_0 = arith.constant 0 : i32
    %c0_i32_1 = arith.constant 0 : i32
    return %c0_i32, %c0_i32_0 : i32, i32
  }
  func.func @transform_6(%arg0: i32, %arg1: i32) -> (i32, i32, i32) {
    %c0_i32 = arith.constant 0 : i32
    %c0_i32_0 = arith.constant 0 : i32
    %c0_i32_1 = arith.constant 0 : i32
    return %arg0, %c0_i32, %c0_i32_0 : i32, i32, i32
  }
}

</mosaic_0001>

<llo_original>
// kernel: psp_head_forward.1
$region0: #{psp_head_forward.1}
  #allocation0 [shape = 'u32[]', space=smem, size = 0x4, offset = 0x4, fixed_abs, tag = 'smem constant byte address 0x4 - core index']
  #allocation1 [shape = 'u32[144,128]{1,0:T(1,128)}', space=vmem, size = 0x12000, scoped, tag = 'internal scratch']
  #allocation2 [shape = 'f32[256,128]{1,0:T(8,128)}', space=vmem, size = 0x20000, scoped, tag = 'scratch operand']
  %s0 = inlined_call_operand.vmem [shape: bf16[2,18,18,128], index: 0, kind: input, shape index: {}]
  %s1 = inlined_call_operand.vmem [shape: bf16[3,3,128,128], index: 1, kind: input, shape index: {}]
  %s2 = inlined_call_operand.vmem [shape: f32[1,128], index: 2, kind: input, shape index: {}]
  %s3 = inlined_call_operand.vmem [shape: f32[1,128], index: 3, kind: input, shape index: {}]
  %s4 = inlined_call_operand.vmem [shape: bf16[128,128], index: 4, kind: input, shape index: {}]
  %s5 = inlined_call_operand.vmem [shape: f32[1,128], index: 5, kind: input, shape index: {}]
  %s6 = inlined_call_operand.vmem [shape: bf16[2,256,128], index: 6, kind: output, shape index: {}]
  %s7 = sld [smem:[#allocation0]]
  $region65: #{psp_head_forward.1} parent=0
    _
  %s9 = ssub.s32 1, %s7
  %s10 = scalar_select 0, %s9, %s7
  loop: start=0, step=1, limit=4
  $region2: #{psp_head_forward.1} parent=0 // loop_pre_header
    _
  $region3: #{psp_head_forward.1} parent=0 // loop_header
    %s12 = sphi 0, %s16
    %p13 = scmp.ge.s32.totalorder %s12, 4
    %s19 = sphi 0, %s31
    %s20 = sphi 0, %s27
    %s21 = sphi 0, %s19
    %s22 = sphi 0, %s20
    %s23 = sphi 0, %s21
    %s24 = sphi 0, %s22
    %s36 = sphi 0, %s38
    %s39 = sphi 0, %s36
    %s40 = sphi 0, %s39
    %s56 = sphi 0, %s40
    %s62 = sphi 0, %s64
    %s65 = sphi 0, %s62
    %s66 = sphi 0, %s65
    %s82 = sphi 0, %s66
    %s86 = sphi 0, %s86
    %s88 = sphi 0, %s86
    %s89 = sphi 0, %s88
    %s103 = sphi 0, %s89
    %s107 = sphi 0, %s107
    %s109 = sphi 0, %s107
    %s110 = sphi 0, %s109
    %s124 = sphi 0, %s110
    %s128 = sphi 0, %s128
    %s130 = sphi 0, %s128
    %s131 = sphi 0, %s130
    %s145 = sphi 0, %s131
    %s149 = sphi 0, %s149
    %s151 = sphi 0, %s149
    %s152 = sphi 0, %s151
    %s166 = sphi 0, %s152
    %s172 = sphi 0, %s174
    %s175 = sphi 0, %s172
    %s176 = sphi 0, %s175
    %s192 = sphi 0, %s176
  $region4: #{psp_head_forward.1} parent=0 // loop_header_branch
    %15 = sbr.rel (%p13) target = $region8
  $region5: #{psp_head_forward.1} parent=0 // loop_body
    %s17 = ssub.s32 %s12, 1
    %s18 = ssub.s32 %s12, 2
    %s25 = sadd.s32 1, %s20
    %p26 = scmp.ge.s32.totalorder %s25, 1
    %s27 = scalar_select %p26, 0, %s25
    %s28 = sadd.s32 1, %s19
    %s29 = scalar_select %p26, %s28, %s19
    %p30 = scmp.ge.s32.totalorder %s29, 2
    %s31 = scalar_select %p30, 0, %s29
    %s32 = ssub.s32 %s19, %s31
    %s33 = ssub.s32 %s20, %s27
    %s34 = sor.u32 %s32, %s33
    %p35 = scmp.eq.s32.totalorder %s34, 0
    %s37 = sadd.s32 %s36, 1
    %s38 = scalar_select %p35, %s36, %s37
    %p41 = pneg %p35
    %p42 = scmp.eq.s32.totalorder %s12, 1
    %p43 = por %p41, %p42
    %p44 = scmp.ne.s32.totalorder %s36, %s39
    %p45 = scmp.eq.s32.totalorder %s12, 0
    %p46 = por %p44, %p45
    %p47 = scmp.ne.s32.totalorder %s36, %s39
    %p48 = scmp.eq.s32.totalorder %s17, 1
    %p49 = por %p47, %p48
    %p50 = scmp.ne.s32.totalorder %s39, %s40
    %p51 = scmp.eq.s32.totalorder %s17, 0
    %p52 = por %p50, %p51
    %p53 = scmp.ne.s32.totalorder %s39, %s40
    %p54 = scmp.eq.s32.totalorder %s18, 1
    %p55 = por %p53, %p54
    %p57 = scmp.ne.s32.totalorder %s40, %s56
    %p58 = scmp.eq.s32.totalorder %s18, 0
    %p59 = por %p57, %p58
    %s60 = ssub.s32 %s20, %s27
    %p61 = scmp.eq.s32.totalorder %s60, 0
    %s63 = sadd.s32 %s62, 1
    %s64 = scalar_select %p61, %s62, %s63
    %p67 = pneg %p61
    %p68 = scmp.eq.s32.totalorder %s12, 1
    %p69 = por %p67, %p68
    %p70 = scmp.ne.s32.totalorder %s62, %s65
    %p71 = scmp.eq.s32.totalorder %s12, 0
    %p72 = por %p70, %p71
    %p73 = scmp.ne.s32.totalorder %s62, %s65
    %p74 = scmp.eq.s32.totalorder %s17, 1
    %p75 = por %p73, %p74
    %p76 = scmp.ne.s32.totalorder %s65, %s66
    %p77 = scmp.eq.s32.totalorder %s17, 0
    %p78 = por %p76, %p77
    %p79 = scmp.ne.s32.totalorder %s65, %s66
    %p80 = scmp.eq.s32.totalorder %s18, 1
    %p81 = por %p79, %p80
    %p83 = scmp.ne.s32.totalorder %s66, %s82
    %p84 = scmp.eq.s32.totalorder %s18, 0
    %p85 = por %p83, %p84
    %s87 = sadd.s32 %s86, 1
    %p90 = scmp.eq.s32.totalorder %s12, 1
    %p91 = scmp.ne.s32.totalorder %s86, %s88
    %p92 = scmp.eq.s32.totalorder %s12, 0
    %p93 = por %p91, %p92
    %p94 = scmp.ne.s32.totalorder %s86, %s88
    %p95 = scmp.eq.s32.totalorder %s17, 1
    %p96 = por %p94, %p95
    %p97 = scmp.ne.s32.totalorder %s88, %s89
    %p98 = scmp.eq.s32.totalorder %s17, 0
    %p99 = por %p97, %p98
    %p100 = scmp.ne.s32.totalorder %s88, %s89
    %p101 = scmp.eq.s32.totalorder %s18, 1
    %p102 = por %p100, %p101
    %p104 = scmp.ne.s32.totalorder %s89, %s103
    %p105 = scmp.eq.s32.totalorder %s18, 0
    %p106 = por %p104, %p105
    %s108 = sadd.s32 %s107, 1
    %p111 = scmp.eq.s32.totalorder %s12, 1
    %p112 = scmp.ne.s32.totalorder %s107, %s109
    %p113 = scmp.eq.s32.totalorder %s12, 0
    %p114 = por %p112, %p113
    %p115 = scmp.ne.s32.totalorder %s107, %s109
    %p116 = scmp.eq.s32.totalorder %s17, 1
    %p117 = por %p115, %p116
    %p118 = scmp.ne.s32.totalorder %s109, %s110
    %p119 = scmp.eq.s32.totalorder %s17, 0
    %p120 = por %p118, %p119
    %p121 = scmp.ne.s32.totalorder %s109, %s110
    %p122 = scmp.eq.s32.totalorder %s18, 1
    %p123 = por %p121, %p122
    %p125 = scmp.ne.s32.totalorder %s110, %s124
    %p126 = scmp.eq.s32.totalorder %s18, 0
    %p127 = por %p125, %p126
    %s129 = sadd.s32 %s128, 1
    %p132 = scmp.eq.s32.totalorder %s12, 1
    %p133 = scmp.ne.s32.totalorder %s128, %s130
    %p134 = scmp.eq.s32.totalorder %s12, 0
    %p135 = por %p133, %p134
    %p136 = scmp.ne.s32.totalorder %s128, %s130
    %p137 = scmp.eq.s32.totalorder %s17, 1
    %p138 = por %p136, %p137
    %p139 = scmp.ne.s32.totalorder %s130, %s131
    %p140 = scmp.eq.s32.totalorder %s17, 0
    %p141 = por %p139, %p140
    %p142 = scmp.ne.s32.totalorder %s130, %s131
    %p143 = scmp.eq.s32.totalorder %s18, 1
    %p144 = por %p142, %p143
    %p146 = scmp.ne.s32.totalorder %s131, %s145
    %p147 = scmp.eq.s32.totalorder %s18, 0
    %p148 = por %p146, %p147
    %s150 = sadd.s32 %s149, 1
    %p153 = scmp.eq.s32.totalorder %s12, 1
    %p154 = scmp.ne.s32.totalorder %s149, %s151
    %p155 = scmp.eq.s32.totalorder %s12, 0
    %p156 = por %p154, %p155
    %p157 = scmp.ne.s32.totalorder %s149, %s151
    %p158 = scmp.eq.s32.totalorder %s17, 1
    %p159 = por %p157, %p158
    %p160 = scmp.ne.s32.totalorder %s151, %s152
    %p161 = scmp.eq.s32.totalorder %s17, 0
    %p162 = por %p160, %p161
    %p163 = scmp.ne.s32.totalorder %s151, %s152
    %p164 = scmp.eq.s32.totalorder %s18, 1
    %p165 = por %p163, %p164
    %p167 = scmp.ne.s32.totalorder %s152, %s166
    %p168 = scmp.eq.s32.totalorder %s18, 0
    %p169 = por %p167, %p168
    %s170 = ssub.s32 %s19, %s31
    %p171 = scmp.eq.s32.totalorder %s170, 0
    %s173 = sadd.s32 %s172, 1
    %s174 = scalar_select %p171, %s172, %s173
    %p177 = pneg %p171
    %p178 = scmp.eq.s32.totalorder %s12, 1
    %p179 = por %p177, %p178
    %p180 = scmp.ne.s32.totalorder %s172, %s175
    %p181 = scmp.eq.s32.totalorder %s12, 0
    %p182 = por %p180, %p181
    %p183 = scmp.ne.s32.totalorder %s172, %s175
    %p184 = scmp.eq.s32.totalorder %s17, 1
    %p185 = por %p183, %p184
    %p186 = scmp.ne.s32.totalorder %s175, %s176
    %p187 = scmp.eq.s32.totalorder %s17, 0
    %p188 = por %p186, %p187
    %p189 = scmp.ne.s32.totalorder %s175, %s176
    %p190 = scmp.eq.s32.totalorder %s18, 1
    %p191 = por %p189, %p190
    %p193 = scmp.ne.s32.totalorder %s176, %s192
    %p194 = scmp.eq.s32.totalorder %s18, 0
    %p195 = por %p193, %p194
    %p196 = scmp.le.s32.totalorder 1, %s12
    %p197 = scmp.lt.s32.totalorder %s12, 3
    %p198 = pnand %p196, %p197
    %p199 = pneg %p198
    // Predicated region
    $region9: #{psp_head_forward.1} parent=5 // pred_check
      _
    $region10: #{psp_head_forward.1} parent=5 // pred_check_branch
      %201 = sbr.rel (%p198) target = $region12
    $region11: #{psp_head_forward.1} parent=5 // pred_region
      %s202 = ssub.s32 %s12, 1
      // Predicated region
      $region13: #{psp_head_forward.1} parent=11 // pred_check
        %p203 = pneg %p78
      $region14: #{psp_head_forward.1} parent=11 // pred_check_branch
        %205 = sbr.rel (%p203) target = $region16
      $region15: #{psp_head_forward.1} parent=11 // pred_region
        %s206 = smul.u32 16, %s22
        %p207 = scmp.lt.s32.totalorder %s206, 15
        %s208 = scalar_select %p207, %s206, 15
        %s209 = smul.addr %s208, 4
        %s210 = scalar_lea.vmem %s1, %s209
        %s211 = smul.u32 16, %s22
      $region16: #{psp_head_forward.1} parent=11 // pred_fallthru
        _
      // Predicated region
      $region17: #{psp_head_forward.1} parent=11 // pred_check
        %p212 = pneg %p99
      $region18: #{psp_head_forward.1} parent=11 // pred_check_branch
        %214 = sbr.rel (%p212) target = $region20
      $region19: #{psp_head_forward.1} parent=11 // pred_region
        _
      $region20: #{psp_head_forward.1} parent=11 // pred_fallthru
        _
      // Predicated region
      $region21: #{psp_head_forward.1} parent=11 // pred_check
        %p215 = pneg %p120
      $region22: #{psp_head_forward.1} parent=11 // pred_check_branch
        %217 = sbr.rel (%p215) target = $region24
      $region23: #{psp_head_forward.1} parent=11 // pred_region
        _
      $region24: #{psp_head_forward.1} parent=11 // pred_fallthru
        _
      // Predicated region
      $region25: #{psp_head_forward.1} parent=11 // pred_check
        %p218 = pneg %p141
      $region26: #{psp_head_forward.1} parent=11 // pred_check_branch
        %220 = sbr.rel (%p218) target = $region28
      $region27: #{psp_head_forward.1} parent=11 // pred_region
        _
      $region28: #{psp_head_forward.1} parent=11 // pred_fallthru
        _
      // Predicated region
      $region29: #{psp_head_forward.1} parent=11 // pred_check
        %p221 = pneg %p162
      $region30: #{psp_head_forward.1} parent=11 // pred_check_branch
        %223 = sbr.rel (%p221) target = $region32
      $region31: #{psp_head_forward.1} parent=11 // pred_region
        _
      $region32: #{psp_head_forward.1} parent=11 // pred_fallthru
        _
    $region12: #{psp_head_forward.1} parent=5 // pred_fallthru
      _
    %p224 = scmp.lt.s32.totalorder %s12, 2
    // Predicated region
    $region33: #{psp_head_forward.1} parent=5 // pred_check
      %p225 = pneg %p224
    $region34: #{psp_head_forward.1} parent=5 // pred_check_branch
      %227 = sbr.rel (%p225) target = $region36
    $region35: #{psp_head_forward.1} parent=5 // pred_region
      // Predicated region
      $region37: #{psp_head_forward.1} parent=35 // pred_check
        %p228 = pneg %p46
      $region38: #{psp_head_forward.1} parent=35 // pred_check_branch
        %230 = sbr.rel (%p228) target = $region40
      $region39: #{psp_head_forward.1} parent=35 // pred_region
        %p231 = scmp.lt.s32.totalorder %s19, 1
        %s232 = scalar_select %p231, %s19, 1
        %p233 = scmp.lt.s32.totalorder %s20, 0
        %s234 = scalar_select %p233, %s20, 0
        %s235 = smul.addr %s232, 54
        %s236 = sadd.s32 %s234, %s235
        %s237 = smul.addr %s236, 4
        %s238 = scalar_lea.vmem %s0, %s237
      $region40: #{psp_head_forward.1} parent=35 // pred_fallthru
        _
    $region36: #{psp_head_forward.1} parent=5 // pred_fallthru
      _
    %p239 = scmp.le.s32.totalorder 1, %s12
    %p240 = scmp.lt.s32.totalorder %s12, 3
    %p241 = pnand %p239, %p240
    %p242 = pneg %p241
    // Predicated region
    $region41: #{psp_head_forward.1} parent=5 // pred_check
      _
    $region42: #{psp_head_forward.1} parent=5 // pred_check_branch
      %244 = sbr.rel (%p241) target = $region44
    $region43: #{psp_head_forward.1} parent=5 // pred_region
      %s245 = ssub.s32 %s12, 1
      %p246 = scmp.lt.s32.totalorder %s21, 1
      %s247 = scalar_select %p246, %s21, 1
      %p248 = scmp.lt.s32.totalorder %s22, 0
      %s249 = scalar_select %p248, %s22, 0
      %s250 = smul.addr %s247, 54
      %s251 = sadd.s32 %s249, %s250
      %s252 = smul.addr %s251, 4
      %s253 = scalar_lea.vmem %s0, %s252
      %p254 = pneg %p52
      %p255 = pneg %p49
      %s256 = smul.u32 16, %s22
      %p257 = scmp.lt.s32.totalorder %s256, 15
      %s258 = scalar_select %p257, %s256, 15
      %s259 = smul.addr %s258, 4
      %s260 = scalar_lea.vmem %s1, %s259
      %p261 = pneg %p78
      %p262 = pneg %p75
      %p263 = pneg %p99
      %p264 = pneg %p96
      %p265 = pneg %p120
      %p266 = pneg %p117
      %p267 = pneg %p141
      %p268 = pneg %p138
      %p269 = pneg %p162
      %p270 = pneg %p159
      %p271 = pneg %p188
      %p272 = pneg %p185
      %p273 = scmp.lt.s32.totalorder %s21, 1
      %s274 = scalar_select %p273, %s21, 1
      %s275 = smul.addr %s274, 32
      %s276 = smul.addr %s275, 4
      %s277 = scalar_lea.vmem %s6, %s276
      %p278 = scmp.lt.s32.totalorder %s21, 1
      %s279 = scalar_select %p278, %s21, 1
      %p280 = scmp.lt.s32.totalorder %s22, 0
      %s281 = scalar_select %p280, %s22, 0
      %s282 = smul.addr %s279, 54
      %s283 = sadd.s32 %s281, %s282
      %s284 = smul.addr %s283, 4
      %s285 = scalar_lea.vmem %s0, %s284
      %s286 = smul.u32 16, %s22
      %p287 = scmp.lt.s32.totalorder %s286, 15
      %s288 = scalar_select %p287, %s286, 15
      %s289 = smul.addr %s288, 4
      %s290 = scalar_lea.vmem %s1, %s289
      %s291 = smul.u32 16, %s22
      %p292 = scmp.lt.s32.totalorder %s21, 1
      %s293 = scalar_select %p292, %s21, 1
      %s294 = smul.addr %s293, 32
      %s295 = smul.addr %s294, 4
      %s296 = scalar_lea.vmem %s6, %s295
      %p298 = scmp.eq.s32.totalorder %s22, 0
      // Predicated region
      $region45: #{psp_head_forward.1} parent=43 // pred_check
        %p299 = pneg %p298
      $region46: #{psp_head_forward.1} parent=43 // pred_check_branch
        %301 = sbr.rel (%p299) target = $region48
      $region47: #{psp_head_forward.1} parent=43 // pred_region
        %302 = vst [vmem:[#allocation2] sm:$0xff] 0.0
        %303 = vst [vmem:[#allocation2 + $0x8] sm:$0xff] 0.0
        %304 = vst [vmem:[#allocation2 + $0x10] sm:$0xff] 0.0
        %305 = vst [vmem:[#allocation2 + $0x18] sm:$0xff] 0.0
        %306 = vst [vmem:[#allocation2 + $0x20] sm:$0xff] 0.0
        %307 = vst [vmem:[#allocation2 + $0x28] sm:$0xff] 0.0
        %308 = vst [vmem:[#allocation2 + $0x30] sm:$0xff] 0.0
        %309 = vst [vmem:[#allocation2 + $0x38] sm:$0xff] 0.0
        %310 = vst [vmem:[#allocation2 + $0x40] sm:$0xff] 0.0
        %311 = vst [vmem:[#allocation2 + $0x48] sm:$0xff] 0.0
        %312 = vst [vmem:[#allocation2 + $0x50] sm:$0xff] 0.0
        %313 = vst [vmem:[#allocation2 + $0x58] sm:$0xff] 0.0
        %314 = vst [vmem:[#allocation2 + $0x60] sm:$0xff] 0.0
        %315 = vst [vmem:[#allocation2 + $0x68] sm:$0xff] 0.0
        %316 = vst [vmem:[#allocation2 + $0x70] sm:$0xff] 0.0
        %317 = vst [vmem:[#allocation2 + $0x78] sm:$0xff] 0.0
        %318 = vst [vmem:[#allocation2 + $0x80] sm:$0xff] 0.0
        %319 = vst [vmem:[#allocation2 + $0x88] sm:$0xff] 0.0
        %320 = vst [vmem:[#allocation2 + $0x90] sm:$0xff] 0.0
        %321 = vst [vmem:[#allocation2 + $0x98] sm:$0xff] 0.0
        %322 = vst [vmem:[#allocation2 + $0xa0] sm:$0xff] 0.0
        %323 = vst [vmem:[#allocation2 + $0xa8] sm:$0xff] 0.0
        %324 = vst [vmem:[#allocation2 + $0xb0] sm:$0xff] 0.0
        %325 = vst [vmem:[#allocation2 + $0xb8] sm:$0xff] 0.0
        %326 = vst [vmem:[#allocation2 + $0xc0] sm:$0xff] 0.0
        %327 = vst [vmem:[#allocation2 + $0xc8] sm:$0xff] 0.0
        %328 = vst [vmem:[#allocation2 + $0xd0] sm:$0xff] 0.0
        %329 = vst [vmem:[#allocation2 + $0xd8] sm:$0xff] 0.0
        %330 = vst [vmem:[#allocation2 + $0xe0] sm:$0xff] 0.0
        %331 = vst [vmem:[#allocation2 + $0xe8] sm:$0xff] 0.0
        %332 = vst [vmem:[#allocation2 + $0xf0] sm:$0xff] 0.0
        %333 = vst [vmem:[#allocation2 + $0xf8] sm:$0xff] 0.0
      $region48: #{psp_head_forward.1} parent=43 // pred_fallthru
        _
      %v334 = vld [vmem:[%s285] sm:$0xf]
      %v335 = vld [vmem:[%s285 + $0x4] sm:$0xf]
      %v336 = vld [vmem:[%s285 + $0xc] sm:$0xf]
      %v337 = vld [vmem:[%s285 + $0x10] sm:$0xf]
      %v338 = vld [vmem:[%s285 + $0x18] sm:$0xf]
      %v339 = vld [vmem:[%s285 + $0x1c] sm:$0xf]
      %v340 = vld [vmem:[%s285 + $0x24] sm:$0xf]
      %v341 = vld [vmem:[%s285 + $0x28] sm:$0xf]
      %v342 = vld [vmem:[%s285 + $0x30] sm:$0xf]
      %v343 = vld [vmem:[%s285 + $0x34] sm:$0xf]
      %v344 = vld [vmem:[%s285 + $0x3c] sm:$0xf]
      %v345 = vld [vmem:[%s285 + $0x40] sm:$0xf]
      %v346 = vld [vmem:[%s285 + $0x48] sm:$0xf]
      %v347 = vld [vmem:[%s285 + $0x4c] sm:$0xf]
      %v348 = vld [vmem:[%s285 + $0x54] sm:$0xf]
      %v349 = vld [vmem:[%s285 + $0x58] sm:$0xf]
      %v350 = vld [vmem:[%s285 + $0x60] sm:$0xf]
      %v351 = vld [vmem:[%s285 + $0x64] sm:$0xf]
      %v352 = vld [vmem:[%s285 + $0x6c] sm:$0xf]
      %v353 = vld [vmem:[%s285 + $0x70] sm:$0xf]
      %v354 = vld [vmem:[%s285 + $0x78] sm:$0xf]
      %v355 = vld [vmem:[%s285 + $0x7c] sm:$0xf]
      %v356 = vld [vmem:[%s285 + $0x84] sm:$0xf]
      %v357 = vld [vmem:[%s285 + $0x88] sm:$0xf]
      %v358 = vld [vmem:[%s285 + $0x90] sm:$0xf]
      %v359 = vld [vmem:[%s285 + $0x94] sm:$0xf]
      %v360 = vld [vmem:[%s285 + $0x9c] sm:$0xf]
      %v361 = vld [vmem:[%s285 + $0xa0] sm:$0xf]
      %v362 = vld [vmem:[%s285 + $0xa8] sm:$0xf]
      %v363 = vld [vmem:[%s285 + $0xac] sm:$0xf]
      %v364 = vld [vmem:[%s285 + $0xb4] sm:$0xf]
      %v365 = vld [vmem:[%s285 + $0xb8] sm:$0xf]
      %v366 = vld [vmem:[%s285 + $0xc0] sm:$0xf]
      %v367 = vld [vmem:[%s285 + $0xc4] sm:$0xf]
      %v368 = vld [vmem:[%s285 + $0xcc] sm:$0xf]
      %v369 = vld [vmem:[%s285 + $0xd0] sm:$0xf]
      %v370 = vld [vmem:[#allocation2] sm:$0xff]
      %v371 = vld [vmem:[#allocation2 + $0x8] sm:$0xff]
      %v372 = vld [vmem:[#allocation2 + $0x10] sm:$0xff]
      %v373 = vld [vmem:[#allocation2 + $0x18] sm:$0xff]
      %v374 = vld [vmem:[#allocation2 + $0x20] sm:$0xff]
      %v375 = vld [vmem:[#allocation2 + $0x28] sm:$0xff]
      %v376 = vld [vmem:[#allocation2 + $0x30] sm:$0xff]
      %v377 = vld [vmem:[#allocation2 + $0x38] sm:$0xff]
      %v378 = vld [vmem:[#allocation2 + $0x40] sm:$0xff]
      %v379 = vld [vmem:[#allocation2 + $0x48] sm:$0xff]
      %v380 = vld [vmem:[#allocation2 + $0x50] sm:$0xff]
      %v381 = vld [vmem:[#allocation2 + $0x58] sm:$0xff]
      %v382 = vld [vmem:[#allocation2 + $0x60] sm:$0xff]
      %v383 = vld [vmem:[#allocation2 + $0x68] sm:$0xff]
      %v384 = vld [vmem:[#allocation2 + $0x70] sm:$0xff]
      %v385 = vld [vmem:[#allocation2 + $0x78] sm:$0xff]
      %v386 = vld [vmem:[#allocation2 + $0x80] sm:$0xff]
      %v387 = vld [vmem:[#allocation2 + $0x88] sm:$0xff]
      %v388 = vld [vmem:[#allocation2 + $0x90] sm:$0xff]
      %v389 = vld [vmem:[#allocation2 + $0x98] sm:$0xff]
      %v390 = vld [vmem:[#allocation2 + $0xa0] sm:$0xff]
      %v391 = vld [vmem:[#allocation2 + $0xa8] sm:$0xff]
      %v392 = vld [vmem:[#allocation2 + $0xb0] sm:$0xff]
      %v393 = vld [vmem:[#allocation2 + $0xb8] sm:$0xff]
      %v394 = vld [vmem:[#allocation2 + $0xc0] sm:$0xff]
      %v395 = vld [vmem:[#allocation2 + $0xc8] sm:$0xff]
      %v396 = vld [vmem:[#allocation2 + $0xd0] sm:$0xff]
      %v397 = vld [vmem:[#allocation2 + $0xd8] sm:$0xff]
      %v398 = vld [vmem:[#allocation2 + $0xe0] sm:$0xff]
      %v399 = vld [vmem:[#allocation2 + $0xe8] sm:$0xff]
      %v400 = vld [vmem:[#allocation2 + $0xf0] sm:$0xff]
      %v401 = vld [vmem:[#allocation2 + $0xf8] sm:$0xff]
      %v402 = vld [vmem:[%s290] sm:$0xf]
      %v403 = vld [vmem:[%s290 + $0x4] sm:$0xf]
      %v404 = vld [vmem:[%s290 + $0x8] sm:$0xf]
      %v405 = vld [vmem:[%s290 + $0xc] sm:$0xf]
      %v406 = vld [vmem:[%s290 + $0x10] sm:$0xf]
      %v407 = vld [vmem:[%s290 + $0x14] sm:$0xf]
      %v408 = vld [vmem:[%s290 + $0x18] sm:$0xf]
      %v409 = vld [vmem:[%s290 + $0x1c] sm:$0xf]
      %v410 = vld [vmem:[%s290 + $0x20] sm:$0xf]
      %v411 = vld [vmem:[%s290 + $0x24] sm:$0xf]
      %v412 = vld [vmem:[%s290 + $0x28] sm:$0xf]
      %v413 = vld [vmem:[%s290 + $0x2c] sm:$0xf]
      %v414 = vld [vmem:[%s290 + $0x30] sm:$0xf]
      %v415 = vld [vmem:[%s290 + $0x34] sm:$0xf]
      %v416 = vld [vmem:[%s290 + $0x38] sm:$0xf]
      %v417 = vld [vmem:[%s290 + $0x3c] sm:$0xf]
      %v450 = vunpack.c.l.b16 %v334
      %v451 = vunpack.c.l.b16 %v335
      %v452 = vunpack.c.l.b16 %v336
      %v453 = vunpack.c.l.b16 %v337
      %v454 = vunpack.c.l.b16 %v338
      %v455 = vunpack.c.l.b16 %v339
      %v456 = vunpack.c.l.b16 %v340
      %v457 = vunpack.c.l.b16 %v341
      %v458 = vunpack.c.l.b16 %v342
      %v459 = vunpack.c.l.b16 %v343
      %v460 = vunpack.c.l.b16 %v344
      %v461 = vunpack.c.l.b16 %v345
      %v462 = vunpack.c.l.b16 %v346
      %v463 = vunpack.c.l.b16 %v347
      %v464 = vunpack.c.l.b16 %v348
      %v465 = vunpack.c.l.b16 %v349
      %v466 = vunpack.c.l.b16 %v350
      %v467 = vunpack.c.l.b16 %v351
      %v468 = vunpack.c.l.b16 %v352
      %v469 = vunpack.c.l.b16 %v353
      %v470 = vunpack.c.l.b16 %v354
      %v471 = vunpack.c.l.b16 %v355
      %v472 = vunpack.c.l.b16 %v356
      %v473 = vunpack.c.l.b16 %v357
      %v474 = vunpack.c.l.b16 %v358
      %v475 = vunpack.c.l.b16 %v359
      %v476 = vunpack.c.l.b16 %v360
      %v477 = vunpack.c.l.b16 %v361
      %v478 = vunpack.c.l.b16 %v362
      %v479 = vunpack.c.l.b16 %v363
      %v480 = vunpack.c.l.b16 %v364
      %v481 = vunpack.c.l.b16 %v365
      %v482 = vpack.c.b16 %v451, %v450
      %v483 = vpack.c.b16 %v453, %v452
      %v484 = vpack.c.b16 %v455, %v454
      %v485 = vpack.c.b16 %v457, %v456
      %v486 = vpack.c.b16 %v459, %v458
      %v487 = vpack.c.b16 %v461, %v460
      %v488 = vpack.c.b16 %v463, %v462
      %v489 = vpack.c.b16 %v465, %v464
      %v490 = vpack.c.b16 %v467, %v466
      %v491 = vpack.c.b16 %v469, %v468
      %v492 = vpack.c.b16 %v471, %v470
      %v493 = vpack.c.b16 %v473, %v472
      %v494 = vpack.c.b16 %v475, %v474
      %v495 = vpack.c.b16 %v477, %v476
      %v496 = vpack.c.b16 %v479, %v478
      %v497 = vpack.c.b16 %v481, %v480
      %v530 = vunpack.c.l.b16 %v402
      %v531 = vunpack.c.l.b16 %v403
      %v532 = vunpack.c.l.b16 %v404
      %v533 = vunpack.c.l.b16 %v405
      %v534 = vunpack.c.l.b16 %v406
      %v535 = vunpack.c.l.b16 %v407
      %v536 = vunpack.c.l.b16 %v408
      %v537 = vunpack.c.l.b16 %v409
      %v538 = vunpack.c.l.b16 %v410
      %v539 = vunpack.c.l.b16 %v411
      %v540 = vunpack.c.l.b16 %v412
      %v541 = vunpack.c.l.b16 %v413
      %v542 = vunpack.c.l.b16 %v414
      %v543 = vunpack.c.l.b16 %v415
      %v544 = vunpack.c.l.b16 %v416
      %v545 = vunpack.c.l.b16 %v417
      %v546 = vpack.c.b16 %v531, %v530
      %v547 = vpack.c.b16 %v533, %v532
      %v548 = vpack.c.b16 %v535, %v534
      %v549 = vpack.c.b16 %v537, %v536
      %v550 = vpack.c.b16 %v539, %v538
      %v551 = vpack.c.b16 %v541, %v540
      %v552 = vpack.c.b16 %v543, %v542
      %v553 = vpack.c.b16 %v545, %v544
      %562 = vmatprep.subr.bf16.mxu0 0
      %563 = vmatpush1.bf16.msra.mxu0 %v546
      %564 = vmatprep.subr.bf16.mxu0 0
      %565 = vmatpush1.bf16.msra.mxu0 %v547
      %566 = vmatprep.subr.bf16.mxu0 0
      %567 = vmatpush1.bf16.msra.mxu0 %v548
      %568 = vmatprep.subr.bf16.mxu0 0
      %569 = vmatpush1.bf16.msra.mxu0 %v549
      %570 = vmatprep.subr.bf16.mxu0 0
      %571 = vmatpush1.bf16.msra.mxu0 %v550
      %572 = vmatprep.subr.bf16.mxu0 0
      %573 = vmatpush1.bf16.msra.mxu0 %v551
      %574 = vmatprep.subr.bf16.mxu0 0
      %575 = vmatpush1.bf16.msra.mxu0 %v552
      %576 = vmatprep.subr.bf16.mxu0 0
      %577 = vmatpush1.bf16.msra.mxu0 %v553
      %578 = vmatprep.subr.bf16.mxu0 0
      %579 = vmatpush1.bf16.msra.mxu0 0
      %580 = vmatprep.subr.bf16.mxu0 0
      %581 = vmatpush1.bf16.msra.mxu0 0
      %582 = vmatprep.subr.bf16.mxu0 0
      %583 = vmatpush1.bf16.msra.mxu0 0
      %584 = vmatprep.subr.bf16.mxu0 0
      %585 = vmatpush1.bf16.msra.mxu0 0
      %586 = vmatprep.subr.bf16.mxu0 0
      %587 = vmatpush1.bf16.msra.mxu0 0
      %588 = vmatprep.subr.bf16.mxu0 0
      %589 = vmatpush1.bf16.msra.mxu0 0
      %590 = vmatprep.subr.bf16.mxu0 0
      %591 = vmatpush1.bf16.msra.mxu0 0
      %592 = vmatprep.subr.bf16.mxu0 0
      %593 = vmatpush1.bf16.msra.mxu0 0
      %594 = vmatprep.mubr.bf16.mxu0 0
      %595 = vmatmul.mubr.bf16.gmra.mrb[0].mxu0 %v482
      %v596 = vpop.f32.mrb[0].mxu0
      %v597 = vadd.f32 0.0, %v596
      %v598 = vpop.f32.mrb[0].mxu0
      %v599 = vpop.f32.mrb[0].mxu0
      %v600 = vadd.f32 0.0, %v599
      %v601 = vpop.f32.mrb[0].mxu0
      %602 = vmatprep.mubr.bf16.mxu0 0
      %603 = vmatmul.mubr.bf16.gmra.mrb[0].mxu0 %v483
      %v604 = vpop.f32.mrb[0].mxu0
      %v605 = vadd.f32 0.0, %v604
      %v606 = vpop.f32.mrb[0].mxu0
      %v607 = vpop.f32.mrb[0].mxu0
      %v608 = vadd.f32 0.0, %v607
      %v609 = vpop.f32.mrb[0].mxu0
      %610 = vmatprep.mubr.bf16.mxu0 0
      %611 = vmatmul.mubr.bf16.gmra.mrb[0].mxu0 %v484
      %v612 = vpop.f32.mrb[0].mxu0
      %v613 = vadd.f32 0.0, %v612
      %v614 = vpop.f32.mrb[0].mxu0
      %v615 = vpop.f32.mrb[0].mxu0
      %v616 = vadd.f32 0.0, %v615
      %v617 = vpop.f32.mrb[0].mxu0
      %618 = vmatprep.mubr.bf16.mxu0 0
      %619 = vmatmul.mubr.bf16.gmra.mrb[0].mxu0 %v485
      %v620 = vpop.f32.mrb[0].mxu0
      %v621 = vadd.f32 0.0, %v620
      %v622 = vpop.f32.mrb[0].mxu0
      %v623 = vpop.f32.mrb[0].mxu0
      %v624 = vadd.f32 0.0, %v623
      %v625 = vpop.f32.mrb[0].mxu0
      %626 = vmatprep.mubr.bf16.mxu0 0
      %627 = vmatmul.mubr.bf16.gmra.mrb[0].mxu0 %v486
      %v628 = vpop.f32.mrb[0].mxu0
      %v629 = vadd.f32 0.0, %v628
      %v630 = vpop.f32.mrb[0].mxu0
      %v631 = vpop.f32.mrb[0].mxu0
      %v632 = vadd.f32 0.0, %v631
      %v633 = vpop.f32.mrb[0].mxu0
      %634 = vmatprep.mubr.bf16.mxu0 0
      %635 = vmatmul.mubr.bf16.gmra.mrb[0].mxu0 %v487
      %v636 = vpop.f32.mrb[0].mxu0
      %v637 = vadd.f32 0.0, %v636
      %v638 = vpop.f32.mrb[0].mxu0
      %v639 = vpop.f32.mrb[0].mxu0
      %v640 = vadd.f32 0.0, %v639
      %v641 = vpop.f32.mrb[0].mxu0
      %642 = vmatprep.mubr.bf16.mxu0 0
      %643 = vmatmul.mubr.bf16.gmra.mrb[0].mxu0 %v488
      %v644 = vpop.f32.mrb[0].mxu0
      %v645 = vadd.f32 0.0, %v644
      %v646 = vpop.f32.mrb[0].mxu0
      %v647 = vpop.f32.mrb[0].mxu0
      %v648 = vadd.f32 0.0, %v647
      %v649 = vpop.f32.mrb[0].mxu0
      %650 = vmatprep.mubr.bf16.mxu0 0
      %651 = vmatmul.mubr.bf16.gmra.mrb[0].mxu0 %v489
      %v652 = vpop.f32.mrb[0].mxu0
      %v653 = vadd.f32 0.0, %v652
      %v654 = vpop.f32.mrb[0].mxu0
      %v655 = vpop.f32.mrb[0].mxu0
      %v656 = vadd.f32 0.0, %v655
      %v657 = vpop.f32.mrb[0].mxu0
      %658 = vmatprep.mubr.bf16.mxu0 0
      %659 = vmatmul.mubr.bf16.gmra.mrb[0].mxu0 %v490
      %v660 = vpop.f32.mrb[0].mxu0
      %v661 = vadd.f32 0.0, %v660
      %v662 = vpop.f32.mrb[0].mxu0
      %v663 = vpop.f32.mrb[0].mxu0
      %v664 = vadd.f32 0.0, %v663
      %v665 = vpop.f32.mrb[0].mxu0
      %666 = vmatprep.mubr.bf16.mxu0 0
      %667 = vmatmul.mubr.bf16.gmra.mrb[0].mxu0 %v491
      %v668 = vpop.f32.mrb[0].mxu0
      %v669 = vadd.f32 0.0, %v668
      %v670 = vpop.f32.mrb[0].mxu0
      %v671 = vpop.f32.mrb[0].mxu0
      %v672 = vadd.f32 0.0, %v671
      %v673 = vpop.f32.mrb[0].mxu0
      %674 = vmatprep.mubr.bf16.mxu0 0
      %675 = vmatmul.mubr.bf16.gmra.mrb[0].mxu0 %v492
      %v676 = vpop.f32.mrb[0].mxu0
      %v677 = vadd.f32 0.0, %v676
      %v678 = vpop.f32.mrb[0].mxu0
      %v679 = vpop.f32.mrb[0].mxu0
      %v680 = vadd.f32 0.0, %v679
      %v681 = vpop.f32.mrb[0].mxu0
      %682 = vmatprep.mubr.bf16.mxu0 0
      %683 = vmatmul.mubr.bf16.gmra.mrb[0].mxu0 %v493
      %v684 = vpop.f32.mrb[0].mxu0
      %v685 = vadd.f32 0.0, %v684
      %v686 = vpop.f32.mrb[0].mxu0
      %v687 = vpop.f32.mrb[0].mxu0
      %v688 = vadd.f32 0.0, %v687
      %v689 = vpop.f32.mrb[0].mxu0
      %690 = vmatprep.mubr.bf16.mxu0 0
      %691 = vmatmul.mubr.bf16.gmra.mrb[0].mxu0 %v494
      %v692 = vpop.f32.mrb[0].mxu0
      %v693 = vadd.f32 0.0, %v692
      %v694 = vpop.f32.mrb[0].mxu0
      %v695 = vpop.f32.mrb[0].mxu0
      %v696 = vadd.f32 0.0, %v695
      %v697 = vpop.f32.mrb[0].mxu0
      %698 = vmatprep.mubr.bf16.mxu0 0
      %699 = vmatmul.mubr.bf16.gmra.mrb[0].mxu0 %v495
      %v700 = vpop.f32.mrb[0].mxu0
      %v701 = vadd.f32 0.0, %v700
      %v702 = vpop.f32.mrb[0].mxu0
      %v703 = vpop.f32.mrb[0].mxu0
      %v704 = vadd.f32 0.0, %v703
      %v705 = vpop.f32.mrb[0].mxu0
      %706 = vmatprep.mubr.bf16.mxu0 0
      %707 = vmatmul.mubr.bf16.gmra.mrb[0].mxu0 %v496
      %v708 = vpop.f32.mrb[0].mxu0
      %v709 = vadd.f32 0.0, %v708
      %v710 = vpop.f32.mrb[0].mxu0
      %v711 = vpop.f32.mrb[0].mxu0
      %v712 = vadd.f32 0.0, %v711
      %v713 = vpop.f32.mrb[0].mxu0
      %714 = vmatprep.mubr.bf16.mxu0 0
      %715 = vmatmul.mubr.bf16.gmra.mrb[0].mxu0 %v497
      %v716 = vpop.f32.mrb[0].mxu0
      %v717 = vadd.f32 0.0, %v716
      %v718 = vpop.f32.mrb[0].mxu0
      %v719 = vpop.f32.mrb[0].mxu0
      %v720 = vadd.f32 0.0, %v719
      %v721 = vpop.f32.mrb[0].mxu0
      %722 = vdwg.mxu0
      %v723 = vadd.f32 %v370, %v597
      %v724 = vadd.f32 %v371, %v600
      %v725 = vadd.f32 %v372, %v605
      %v726 = vadd.f32 %v373, %v608
      %v727 = vadd.f32 %v374, %v613
      %v728 = vadd.f32 %v375, %v616
      %v729 = vadd.f32 %v376, %v621
      %v730 = vadd.f32 %v377, %v624
      %v731 = vadd.f32 %v378, %v629
      %v732 = vadd.f32 %v379, %v632
      %v733 = vadd.f32 %v380, %v637
      %v734 = vadd.f32 %v381, %v640
      %v735 = vadd.f32 %v382, %v645
      %v736 = vadd.f32 %v383, %v648
      %v737 = vadd.f32 %v384, %v653
      %v738 = vadd.f32 %v385, %v656
      %v739 = vadd.f32 %v386, %v661
      %v740 = vadd.f32 %v387, %v664
      %v741 = vadd.f32 %v388, %v669
      %v742 = vadd.f32 %v389, %v672
      %v743 = vadd.f32 %v390, %v677
      %v744 = vadd.f32 %v391, %v680
      %v745 = vadd.f32 %v392, %v685
      %v746 = vadd.f32 %v393, %v688
      %v747 = vadd.f32 %v394, %v693
      %v748 = vadd.f32 %v395, %v696
      %v749 = vadd.f32 %v396, %v701
      %v750 = vadd.f32 %v397, %v704
      %v751 = vadd.f32 %v398, %v709
      %v752 = vadd.f32 %v399, %v712
      %v753 = vadd.f32 %v400, %v717
      %v754 = vadd.f32 %v401, %v720
      %s755 = scalar_lea.vmem %s290, 192
      %v756 = vld [vmem:[%s755] sm:$0xf]
      %v757 = vld [vmem:[%s755 + $0x4] sm:$0xf]
      %v758 = vld [vmem:[%s755 + $0x8] sm:$0xf]
      %v759 = vld [vmem:[%s755 + $0xc] sm:$0xf]
      %v760 = vld [vmem:[%s755 + $0x10] sm:$0xf]
      %v761 = vld [vmem:[%s755 + $0x14] sm:$0xf]
      %v762 = vld [vmem:[%s755 + $0x18] sm:$0xf]
      %v763 = vld [vmem:[%s755 + $0x1c] sm:$0xf]
      %v764 = vld [vmem:[%s755 + $0x20] sm:$0xf]
      %v765 = vld [vmem:[%s755 + $0x24] sm:$0xf]
      %v766 = vld [vmem:[%s755 + $0x28] sm:$0xf]
      %v767 = vld [vmem:[%s755 + $0x2c] sm:$0xf]
      %v768 = vld [vmem:[%s755 + $0x30] sm:$0xf]
      %v769 = vld [vmem:[%s755 + $0x34] sm:$0xf]
      %v770 = vld [vmem:[%s755 + $0x38] sm:$0xf]
      %v771 = vld [vmem:[%s755 + $0x3c] sm:$0xf]
      %v774 = vunpack.c.l.b16 %v366
      %v775 = vunpack.c.l.b16 %v367
      %v776 = vpack.c.b16 %v775, %v774
      %v794 = vunpack.c.l.b16 %v756
      %v795 = vunpack.c.l.b16 %v757
      %v796 = vunpack.c.l.b16 %v758
      %v797 = vunpack.c.l.b16 %v759
      %v798 = vunpack.c.l.b16 %v760
      %v799 = vunpack.c.l.b16 %v761
      %v800 = vunpack.c.l.b16 %v762
      %v801 = vunpack.c.l.b16 %v763
      %v802 = vunpack.c.l.b16 %v764
      %v803 = vunpack.c.l.b16 %v765
      %v804 = vunpack.c.l.b16 %v766
      %v805 = vunpack.c.l.b16 %v767
      %v806 = vunpack.c.l.b16 %v768
      %v807 = vunpack.c.l.b16 %v769
      %v808 = vunpack.c.l.b16 %v770
      %v809 = vunpack.c.l.b16 %v771
      %v810 = vpack.c.b16 %v795, %v794
      %v811 = vpack.c.b16 %v797, %v796
      %v812 = vpack.c.b16 %v799, %v798
      %v813 = vpack.c.b16 %v801, %v800
      %v814 = vpack.c.b16 %v803, %v802
      %v815 = vpack.c.b16 %v805, %v804
      %v816 = vpack.c.b16 %v807, %v806
      %v817 = vpack.c.b16 %v809, %v808
      %826 = vmatprep.subr.bf16.mxu0 0
      %827 = vmatpush1.bf16.msra.mxu0 %v810
      %828 = vmatprep.subr.bf16.mxu0 0
      %829 = vmatpush1.bf16.msra.mxu0 %v811
      %830 = vmatprep.subr.bf16.mxu0 0
      %831 = vmatpush1.bf16.msra.mxu0 %v812
      %832 = vmatprep.subr.bf16.mxu0 0
      %833 = vmatpush1.bf16.msra.mxu0 %v813
      %834 = vmatprep.subr.bf16.mxu0 0
      %835 = vmatpush1.bf16.msra.mxu0 %v814
      %836 = vmatprep.subr.bf16.mxu0 0
      %837 = vmatpush1.bf16.msra.mxu0 %v815
      %838 = vmatprep.subr.bf16.mxu0 0
      %839 = vmatpush1.bf16.msra.mxu0 %v816
      %840 = vmatprep.subr.bf16.mxu0 0
      %841 = vmatpush1.bf16.msra.mxu0 %v817
      %842 = vmatprep.subr.bf16.mxu0 0
      %843 = vmatpush1.bf16.msra.mxu0 0
      %844 = vmatprep.subr.bf16.mxu0 0
      %845 = vmatpush1.bf16.msra.mxu0 0
      %846 = vmatprep.subr.bf16.mxu0 0
      %847 = vmatpush1.bf16.msra.mxu0 0
      %848 = vmatprep.subr.bf16.mxu0 0
      %849 = vmatpush1.bf16.msra.mxu0 0
      %850 = vmatprep.subr.bf16.mxu0 0
      %851 = vmatpush1.bf16.msra.mxu0 0
      %852 = vmatprep.subr.bf16.mxu0 0
      %853 = vmatpush1.bf16.msra.mxu0 0
      %854 = vmatprep.subr.bf16.mxu0 0
      %855 = vmatpush1.bf16.msra.mxu0 0
      %856 = vmatprep.subr.bf16.mxu0 0
      %857 = vmatpush1.bf16.msra.mxu0 0
      %858 = vmatprep.mubr.bf16.mxu0 0
      %859 = vmatmul.mubr.bf16.gmra.mrb[0].mxu0 %v483
      %v860 = vpop.f32.mrb[0].mxu0
      %v861 = vadd.f32 0.0, %v860
      %v862 = vpop.f32.mrb[0].mxu0
      %v863 = vpop.f32.mrb[0].mxu0
      %v864 = vadd.f32 0.0, %v863
      %v865 = vpop.f32.mrb[0].mxu0
      %866 = vmatprep.mubr.bf16.mxu0 0
      %867 = vmatmul.mubr.bf16.gmra.mrb[0].mxu0 %v484
      %v868 = vpop.f32.mrb[0].mxu0
      %v869 = vadd.f32 0.0, %v868
      %v870 = vpop.f32.mrb[0].mxu0
      %v871 = vpop.f32.mrb[0].mxu0
      %v872 = vadd.f32 0.0, %v871
      %v873 = vpop.f32.mrb[0].mxu0
      %874 = vmatprep.mubr.bf16.mxu0 0
      %875 = vmatmul.mubr.bf16.gmra.mrb[0].mxu0 %v485
      %v876 = vpop.f32.mrb[0].mxu0
      %v877 = vadd.f32 0.0, %v876
      %v878 = vpop.f32.mrb[0].mxu0
      %v879 = vpop.f32.mrb[0].mxu0
      %v880 = vadd.f32 0.0, %v879
      %v881 = vpop.f32.mrb[0].mxu0
      %882 = vmatprep.mubr.bf16.mxu0 0
      %883 = vmatmul.mubr.bf16.gmra.mrb[0].mxu0 %v486
      %v884 = vpop.f32.mrb[0].mxu0
      %v885 = vadd.f32 0.0, %v884
      %v886 = vpop.f32.mrb[0].mxu0
      %v887 = vpop.f32.mrb[0].mxu0
      %v888 = vadd.f32 0.0, %v887
      %v889 = vpop.f32.mrb[0].mxu0
      %890 = vmatprep.mubr.bf16.mxu0 0
      %891 = vmatmul.mubr.bf16.gmra.mrb[0].mxu0 %v487
      %v892 = vpop.f32.mrb[0].mxu0
      %v893 = vadd.f32 0.0, %v892
      %v894 = vpop.f32.mrb[0].mxu0
      %v895 = vpop.f32.mrb[0].mxu0
      %v896 = vadd.f32 0.0, %v895
      %v897 = vpop.f32.mrb[0].mxu0
      %898 = vmatprep.mubr.bf16.mxu0 0
      %899 = vmatmul.mubr.bf16.gmra.mrb[0].mxu0 %v488
      %v900 = vpop.f32.mrb[0].mxu0
      %v901 = vadd.f32 0.0, %v900
      %v902 = vpop.f32.mrb[0].mxu0
      %v903 = vpop.f32.mrb[0].mxu0
      %v904 = vadd.f32 0.0, %v903
      %v905 = vpop.f32.mrb[0].mxu0
      %906 = vmatprep.mubr.bf16.mxu0 0
      %907 = vmatmul.mubr.bf16.gmra.mrb[0].mxu0 %v489
      %v908 = vpop.f32.mrb[0].mxu0
      %v909 = vadd.f32 0.0, %v908
      %v910 = vpop.f32.mrb[0].mxu0
      %v911 = vpop.f32.mrb[0].mxu0
      %v912 = vadd.f32 0.0, %v911
      %v913 = vpop.f32.mrb[0].mxu0
      %914 = vmatprep.mubr.bf16.mxu0 0
      %915 = vmatmul.mubr.bf16.gmra.mrb[0].mxu0 %v490
      %v916 = vpop.f32.mrb[0].mxu0
      %v917 = vadd.f32 0.0, %v916
      %v918 = vpop.f32.mrb[0].mxu0
      %v919 = vpop.f32.mrb[0].mxu0
      %v920 = vadd.f32 0.0, %v919
      %v921 = vpop.f32.mrb[0].mxu0
      %922 = vmatprep.mubr.bf16.mxu0 0
      %923 = vmatmul.mubr.bf16.gmra.mrb[0].mxu0 %v491
      %v924 = vpop.f32.mrb[0].mxu0
      %v925 = vadd.f32 0.0, %v924
      %v926 = vpop.f32.mrb[0].mxu0
      %v927 = vpop.f32.mrb[0].mxu0
      %v928 = vadd.f32 0.0, %v927
      %v929 = vpop.f32.mrb[0].mxu0
      %930 = vmatprep.mubr.bf16.mxu0 0
      %931 = vmatmul.mubr.bf16.gmra.mrb[0].mxu0 %v492
      %v932 = vpop.f32.mrb[0].mxu0
      %v933 = vadd.f32 0.0, %v932
      %v934 = vpop.f32.mrb[0].mxu0
      %v935 = vpop.f32.mrb[0].mxu0
      %v936 = vadd.f32 0.0, %v935
      %v937 = vpop.f32.mrb[0].mxu0
      %938 = vmatprep.mubr.bf16.mxu0 0
      %939 = vmatmul.mubr.bf16.gmra.mrb[0].mxu0 %v493
      %v940 = vpop.f32.mrb[0].mxu0
      %v941 = vadd.f32 0.0, %v940
      %v942 = vpop.f32.mrb[0].mxu0
      %v943 = vpop.f32.mrb[0].mxu0
      %v944 = vadd.f32 0.0, %v943
      %v945 = vpop.f32.mrb[0].mxu0
      %946 = vmatprep.mubr.bf16.mxu0 0
      %947 = vmatmul.mubr.bf16.gmra.mrb[0].mxu0 %v494
      %v948 = vpop.f32.mrb[0].mxu0
      %v949 = vadd.f32 0.0, %v948
      %v950 = vpop.f32.mrb[0].mxu0
      %v951 = vpop.f32.mrb[0].mxu0
      %v952 = vadd.f32 0.0, %v951
      %v953 = vpop.f32.mrb[0].mxu0
      %954 = vmatprep.mubr.bf16.mxu0 0
      %955 = vmatmul.mubr.bf16.gmra.mrb[0].mxu0 %v495
      %v956 = vpop.f32.mrb[0].mxu0
      %v957 = vadd.f32 0.0, %v956
      %v958 = vpop.f32.mrb[0].mxu0
      %v959 = vpop.f32.mrb[0].mxu0
      %v960 = vadd.f32 0.0, %v959
      %v961 = vpop.f32.mrb[0].mxu0
      %962 = vmatprep.mubr.bf16.mxu0 0
      %963 = vmatmul.mubr.bf16.gmra.mrb[0].mxu0 %v496
      %v964 = vpop.f32.mrb[0].mxu0
      %v965 = vadd.f32 0.0, %v964
      %v966 = vpop.f32.mrb[0].mxu0
      %v967 = vpop.f32.mrb[0].mxu0
      %v968 = vadd.f32 0.0, %v967
      %v969 = vpop.f32.mrb[0].mxu0
      %970 = vmatprep.mubr.bf16.mxu0 0
      %971 = vmatmul.mubr.bf16.gmra.mrb[0].mxu0 %v497
      %v972 = vpop.f32.mrb[0].mxu0
      %v973 = vadd.f32 0.0, %v972
      %v974 = vpop.f32.mrb[0].mxu0
      %v975 = vpop.f32.mrb[0].mxu0
      %v976 = vadd.f32 0.0, %v975
      %v977 = vpop.f32.mrb[0].mxu0
      %978 = vmatprep.mubr.bf16.mxu0 0
      %979 = vmatmul.mubr.bf16.gmra.mrb[0].mxu0 %v776
      %v980 = vpop.f32.mrb[0].mxu0
      %v981 = vadd.f32 0.0, %v980
      %v982 = vpop.f32.mrb[0].mxu0
      %v983 = vpop.f32.mrb[0].mxu0
      %v984 = vadd.f32 0.0, %v983
      %v985 = vpop.f32.mrb[0].mxu0
      %986 = vdwg.mxu0
      %v987 = vadd.f32 %v723, %v861
      %v988 = vadd.f32 %v724, %v864
      %v989 = vadd.f32 %v725, %v869
      %v990 = vadd.f32 %v726, %v872
      %v991 = vadd.f32 %v727, %v877
      %v992 = vadd.f32 %v728, %v880
      %v993 = vadd.f32 %v729, %v885
      %v994 = vadd.f32 %v730, %v888
      %v995 = vadd.f32 %v731, %v893
      %v996 = vadd.f32 %v732, %v896
      %v997 = vadd.f32 %v733, %v901
      %v998 = vadd.f32 %v734, %v904
      %v999 = vadd.f32 %v735, %v909
      %v1000 = vadd.f32 %v736, %v912
      %v1001 = vadd.f32 %v737, %v917
      %v1002 = vadd.f32 %v738, %v920
      %v1003 = vadd.f32 %v739, %v925
      %v1004 = vadd.f32 %v740, %v928
      %v1005 = vadd.f32 %v741, %v933
      %v1006 = vadd.f32 %v742, %v936
      %v1007 = vadd.f32 %v743, %v941
      %v1008 = vadd.f32 %v744, %v944
      %v1009 = vadd.f32 %v745, %v949
      %v1010 = vadd.f32 %v746, %v952
      %v1011 = vadd.f32 %v747, %v957
      %v1012 = vadd.f32 %v748, %v960
      %v1013 = vadd.f32 %v749, %v965
      %v1014 = vadd.f32 %v750, %v968
      %v1015 = vadd.f32 %v751, %v973
      %v1016 = vadd.f32 %v752, %v976
      %v1017 = vadd.f32 %v753, %v981
      %v1018 = vadd.f32 %v754, %v984
      %s1019 = scalar_lea.vmem %s290, 384
      %v1020 = vld [vmem:[%s1019] sm:$0xf]
      %v1021 = vld [vmem:[%s1019 + $0x4] sm:$0xf]
      %v1022 = vld [vmem:[%s1019 + $0x8] sm:$0xf]
      %v1023 = vld [vmem:[%s1019 + $0xc] sm:$0xf]
      %v1024 = vld [vmem:[%s1019 + $0x10] sm:$0xf]
      %v1025 = vld [vmem:[%s1019 + $0x14] sm:$0xf]
      %v1026 = vld [vmem:[%s1019 + $0x18] sm:$0xf]
      %v1027 = vld [vmem:[%s1019 + $0x1c] sm:$0xf]
      %v1028 = vld [vmem:[%s1019 + $0x20] sm:$0xf]
      %v1029 = vld [vmem:[%s1019 + $0x24] sm:$0xf]
      %v1030 = vld [vmem:[%s1019 + $0x28] sm:$0xf]
      %v1031 = vld [vmem:[%s1019 + $0x2c] sm:$0xf]
      %v1032 = vld [vmem:[%s1019 + $0x30] sm:$0xf]
      %v1033 = vld [vmem:[%s1019 + $0x34] sm:$0xf]
      %v1034 = vld [vmem:[%s1019 + $0x38] sm:$0xf]
      %v1035 = vld [vmem:[%s1019 + $0x3c] sm:$0xf]
      %v1038 = vunpack.c.l.b16 %v368
      %v1039 = vunpack.c.l.b16 %v369
      %v1040 = vpack.c.b16 %v1039, %v1038
      %v1058 = vunpack.c.l.b16 %v1020
      %v1059 = vunpack.c.l.b16 %v1021
      %v1060 = vunpack.c.l.b16 %v1022
      %v1061 = vunpack.c.l.b16 %v1023
      %v1062 = vunpack.c.l.b16 %v1024
      %v1063 = vunpack.c.l.b16 %v1025
      %v1064 = vunpack.c.l.b16 %v1026
      %v1065 = vunpack.c.l.b16 %v1027
      %v1066 = vunpack.c.l.b16 %v1028
      %v1067 = vunpack.c.l.b16 %v1029
      %v1068 = vunpack.c.l.b16 %v1030
      %v1069 = vunpack.c.l.b16 %v1031
      %v1070 = vunpack.c.l.b16 %v1032
      %v1071 = vunpack.c.l.b16 %v1033
      %v1072 = vunpack.c.l.b16 %v1034
      %v1073 = vunpack.c.l.b16 %v1035
      %v1074 = vpack.c.b16 %v1059, %v1058
      %v1075 = vpack.c.b16 %v1061, %v1060
      %v1076 = vpack.c.b16 %v1063, %v1062
      %v1077 = vpack.c.b16 %v1065, %v1064
      %v1078 = vpack.c.b16 %v1067, %v1066
      %v1079 = vpack.c.b16 %v1069, %v1068
      %v1080 = vpack.c.b16 %v1071, %v1070
      %v1081 = vpack.c.b16 %v1073, %v1072
      %1090 = vmatprep.subr.bf16.mxu0 0
      %1091 = vmatpush1.bf16.msra.mxu0 %v1074
      %1092 = vmatprep.subr.bf16.mxu0 0
      %1093 = vmatpush1.bf16.msra.mxu0 %v1075
      %1094 = vmatprep.subr.bf16.mxu0 0
      %1095 = vmatpush1.bf16.msra.mxu0 %v1076
      %1096 = vmatprep.subr.bf16.mxu0 0
      %1097 = vmatpush1.bf16.msra.mxu0 %v1077
      %1098 = vmatprep.subr.bf16.mxu0 0
      %1099 = vmatpush1.bf16.msra.mxu0 %v1078
      %1100 = vmatprep.subr.bf16.mxu0 0
      %1101 = vmatpush1.bf16.msra.mxu0 %v1079
      %1102 = vmatprep.subr.bf16.mxu0 0
      %1103 = vmatpush1.bf16.msra.mxu0 %v1080
      %1104 = vmatprep.subr.bf16.mxu0 0
      %1105 = vmatpush1.bf16.msra.mxu0 %v1081
      %1106 = vmatprep.subr.bf16.mxu0 0
      %1107 = vmatpush1.bf16.msra.mxu0 0
      %1108 = vmatprep.subr.bf16.mxu0 0
      %1109 = vmatpush1.bf16.msra.mxu0 0
      %1110 = vmatprep.subr.bf16.mxu0 0
      %1111 = vmatpush1.bf16.msra.mxu0 0
      %1112 = vmatprep.subr.bf16.mxu0 0
      %1113 = vmatpush1.bf16.msra.mxu0 0
      %1114 = vmatprep.subr.bf16.mxu0 0
      %1115 = vmatpush1.bf16.msra.mxu0 0
      %1116 = vmatprep.subr.bf16.mxu0 0
      %1117 = vmatpush1.bf16.msra.mxu0 0
      %1118 = vmatprep.subr.bf16.mxu0 0
      %1119 = vmatpush1.bf16.msra.mxu0 0
      %1120 = vmatprep.subr.bf16.mxu0 0
      %1121 = vmatpush1.bf16.msra.mxu0 0
      %1122 = vmatprep.mubr.bf16.mxu0 0
      %1123 = vmatmul.mubr.bf16.gmra.mrb[0].mxu0 %v484
      %v1124 = vpop.f32.mrb[0].mxu0
      %v1125 = vadd.f32 0.0, %v1124
      %v1126 = vpop.f32.mrb[0].mxu0
      %v1127 = vpop.f32.mrb[0].mxu0
      %v1128 = vadd.f32 0.0, %v1127
      %v1129 = vpop.f32.mrb[0].mxu0
      %1130 = vmatprep.mubr.bf16.mxu0 0
      %1131 = vmatmul.mubr.bf16.gmra.mrb[0].mxu0 %v485
      %v1132 = vpop.f32.mrb[0].mxu0
      %v1133 = vadd.f32 0.0, %v1132
      %v1134 = vpop.f32.mrb[0].mxu0
      %v1135 = vpop.f32.mrb[0].mxu0
      %v1136 = vadd.f32 0.0, %v1135
      %v1137 = vpop.f32.mrb[0].mxu0
      %1138 = vmatprep.mubr.bf16.mxu0 0
      %1139 = vmatmul.mubr.bf16.gmra.mrb[0].mxu0 %v486
      %v1140 = vpop.f32.mrb[0].mxu0
      %v1141 = vadd.f32 0.0, %v1140
      %v1142 = vpop.f32.mrb[0].mxu0
      %v1143 = vpop.f32.mrb[0].mxu0
      %v1144 = vadd.f32 0.0, %v1143
      %v1145 = vpop.f32.mrb[0].mxu0
      %1146 = vmatprep.mubr.bf16.mxu0 0
      %1147 = vmatmul.mubr.bf16.gmra.mrb[0].mxu0 %v487
      %v1148 = vpop.f32.mrb[0].mxu0
      %v1149 = vadd.f32 0.0, %v1148
      %v1150 = vpop.f32.mrb[0].mxu0
      %v1151 = vpop.f32.mrb[0].mxu0
      %v1152 = vadd.f32 0.0, %v1151
      %v1153 = vpop.f32.mrb[0].mxu0
      %1154 = vmatprep.mubr.bf16.mxu0 0
      %1155 = vmatmul.mubr.bf16.gmra.mrb[0].mxu0 %v488
      %v1156 = vpop.f32.mrb[0].mxu0
      %v1157 = vadd.f32 0.0, %v1156
      %v1158 = vpop.f32.mrb[0].mxu0
      %v1159 = vpop.f32.mrb[0].mxu0
      %v1160 = vadd.f32 0.0, %v1159
      %v1161 = vpop.f32.mrb[0].mxu0
      %1162 = vmatprep.mubr.bf16.mxu0 0
      %1163 = vmatmul.mubr.bf16.gmra.mrb[0].mxu0 %v489
      %v1164 = vpop.f32.mrb[0].mxu0
      %v1165 = vadd.f32 0.0, %v1164
      %v1166 = vpop.f32.mrb[0].mxu0
      %v1167 = vpop.f32.mrb[0].mxu0
      %v1168 = vadd.f32 0.0, %v1167
      %v1169 = vpop.f32.mrb[0].mxu0
      %1170 = vmatprep.mubr.bf16.mxu0 0
      %1171 = vmatmul.mubr.bf16.gmra.mrb[0].mxu0 %v490
      %v1172 = vpop.f32.mrb[0].mxu0
      %v1173 = vadd.f32 0.0, %v1172
      %v1174 = vpop.f32.mrb[0].mxu0
      %v1175 = vpop.f32.mrb[0].mxu0
      %v1176 = vadd.f32 0.0, %v1175
      %v1177 = vpop.f32.mrb[0].mxu0
      %1178 = vmatprep.mubr.bf16.mxu0 0
      %1179 = vmatmul.mubr.bf16.gmra.mrb[0].mxu0 %v491
      %v1180 = vpop.f32.mrb[0].mxu0
      %v1181 = vadd.f32 0.0, %v1180
      %v1182 = vpop.f32.mrb[0].mxu0
      %v1183 = vpop.f32.mrb[0].mxu0
      %v1184 = vadd.f32 0.0, %v1183
      %v1185 = vpop.f32.mrb[0].mxu0
      %1186 = vmatprep.mubr.bf16.mxu0 0
      %1187 = vmatmul.mubr.bf16.gmra.mrb[0].mxu0 %v492
      %v1188 = vpop.f32.mrb[0].mxu0
      %v1189 = vadd.f32 0.0, %v1188
      %v1190 = vpop.f32.mrb[0].mxu0
      %v1191 = vpop.f32.mrb[0].mxu0
      %v1192 = vadd.f32 0.0, %v1191
      %v1193 = vpop.f32.mrb[0].mxu0
      %1194 = vmatprep.mubr.bf16.mxu0 0
      %1195 = vmatmul.mubr.bf16.gmra.mrb[0].mxu0 %v493
      %v1196 = vpop.f32.mrb[0].mxu0
      %v1197 = vadd.f32 0.0, %v1196
      %v1198 = vpop.f32.mrb[0].mxu0
      %v1199 = vpop.f32.mrb[0].mxu0
      %v1200 = vadd.f32 0.0, %v1199
      %v1201 = vpop.f32.mrb[0].mxu0
      %1202 = vmatprep.mubr.bf16.mxu0 0
      %1203 = vmatmul.mubr.bf16.gmra.mrb[0].mxu0 %v494
      %v1204 = vpop.f32.mrb[0].mxu0
      %v1205 = vadd.f32 0.0, %v1204
      %v1206 = vpop.f32.mrb[0].mxu0
      %v1207 = vpop.f32.mrb[0].mxu0
      %v1208 = vadd.f32 0.0, %v1207
      %v1209 = vpop.f32.mrb[0].mxu0
      %1210 = vmatprep.mubr.bf16.mxu0 0
      %1211 = vmatmul.mubr.bf16.gmra.mrb[0].mxu0 %v495
      %v1212 = vpop.f32.mrb[0].mxu0
      %v1213 = vadd.f32 0.0, %v1212
      %v1214 = vpop.f32.mrb[0].mxu0
      %v1215 = vpop.f32.mrb[0].mxu0
      %v1216 = vadd.f32 0.0, %v1215
      %v1217 = vpop.f32.mrb[0].mxu0
      %1218 = vmatprep.mubr.bf16.mxu0 0
      %1219 = vmatmul.mubr.bf16.gmra.mrb[0].mxu0 %v496
      %v1220 = vpop.f32.mrb[0].mxu0
      %v1221 = vadd.f32 0.0, %v1220
      %v1222 = vpop.f32.mrb[0].mxu0
      %v1223 = vpop.f32.mrb[0].mxu0
      %v1224 = vadd.f32 0.0, %v1223
      %v1225 = vpop.f32.mrb[0].mxu0
      %1226 = vmatprep.mubr.bf16.mxu0 0
      %1227 = vmatmul.mubr.bf16.gmra.mrb[0].mxu0 %v497
      %v1228 = vpop.f32.mrb[0].mxu0
      %v1229 = vadd.f32 0.0, %v1228
      %v1230 = vpop.f32.mrb[0].mxu0
      %v1231 = vpop.f32.mrb[0].mxu0
      %v1232 = vadd.f32 0.0, %v1231
      %v1233 = vpop.f32.mrb[0].mxu0
      %1234 = vmatprep.mubr.bf16.mxu0 0
      %1235 = vmatmul.mubr.bf16.gmra.mrb[0].mxu0 %v776
      %v1236 = vpop.f32.mrb[0].mxu0
      %v1237 = vadd.f32 0.0, %v1236
      %v1238 = vpop.f32.mrb[0].mxu0
      %v1239 = vpop.f32.mrb[0].mxu0
      %v1240 = vadd.f32 0.0, %v1239
      %v1241 = vpop.f32.mrb[0].mxu0
      %1242 = vmatprep.mubr.bf16.mxu0 0
      %1243 = vmatmul.mubr.bf16.gmra.mrb[0].mxu0 %v1040
      %v1244 = vpop.f32.mrb[0].mxu0
      %v1245 = vadd.f32 0.0, %v1244
      %v1246 = vpop.f32.mrb[0].mxu0
      %v1247 = vpop.f32.mrb[0].mxu0
      %v1248 = vadd.f32 0.0, %v1247
      %v1249 = vpop.f32.mrb[0].mxu0
      %1250 = vdwg.mxu0
      %v1251 = vadd.f32 %v987, %v1125
      %v1252 = vadd.f32 %v988, %v1128
      %v1253 = vadd.f32 %v989, %v1133
      %v1254 = vadd.f32 %v990, %v1136
      %v1255 = vadd.f32 %v991, %v1141
      %v1256 = vadd.f32 %v992, %v1144
      %v1257 = vadd.f32 %v993, %v1149
      %v1258 = vadd.f32 %v994, %v1152
      %v1259 = vadd.f32 %v995, %v1157
      %v1260 = vadd.f32 %v996, %v1160
      %v1261 = vadd.f32 %v997, %v1165
      %v1262 = vadd.f32 %v998, %v1168
      %v1263 = vadd.f32 %v999, %v1173
      %v1264 = vadd.f32 %v1000, %v1176
      %v1265 = vadd.f32 %v1001, %v1181
      %v1266 = vadd.f32 %v1002, %v1184
      %v1267 = vadd.f32 %v1003, %v1189
      %v1268 = vadd.f32 %v1004, %v1192
      %v1269 = vadd.f32 %v1005, %v1197
      %v1270 = vadd.f32 %v1006, %v1200
      %v1271 = vadd.f32 %v1007, %v1205
      %v1272 = vadd.f32 %v1008, %v1208
      %v1273 = vadd.f32 %v1009, %v1213
      %v1274 = vadd.f32 %v1010, %v1216
      %v1275 = vadd.f32 %v1011, %v1221
      %v1276 = vadd.f32 %v1012, %v1224
      %v1277 = vadd.f32 %v1013, %v1229
      %v1278 = vadd.f32 %v1014, %v1232
      %v1279 = vadd.f32 %v1015, %v1237
      %v1280 = vadd.f32 %v1016, %v1240
      %v1281 = vadd.f32 %v1017, %v1245
      %v1282 = vadd.f32 %v1018, %v1248
      %1283 = vst [vmem:[#allocation2] sm:$0xff] %v1251
      %1284 = vst [vmem:[#allocation2 + $0x8] sm:$0xff] %v1252
      %1285 = vst [vmem:[#allocation2 + $0x10] sm:$0xff] %v1253
      %1286 = vst [vmem:[#allocation2 + $0x18] sm:$0xff] %v1254
      %1287 = vst [vmem:[#allocation2 + $0x20] sm:$0xff] %v1255
      %1288 = vst [vmem:[#allocation2 + $0x28] sm:$0xff] %v1256
      %1289 = vst [vmem:[#allocation2 + $0x30] sm:$0xff] %v1257
      %1290 = vst [vmem:[#allocation2 + $0x38] sm:$0xff] %v1258
      %1291 = vst [vmem:[#allocation2 + $0x40] sm:$0xff] %v1259
      %1292 = vst [vmem:[#allocation2 + $0x48] sm:$0xff] %v1260
      %1293 = vst [vmem:[#allocation2 + $0x50] sm:$0xff] %v1261
      %1294 = vst [vmem:[#allocation2 + $0x58] sm:$0xff] %v1262
      %1295 = vst [vmem:[#allocation2 + $0x60] sm:$0xff] %v1263
      %1296 = vst [vmem:[#allocation2 + $0x68] sm:$0xff] %v1264
      %1297 = vst [vmem:[#allocation2 + $0x70] sm:$0xff] %v1265
      %1298 = vst [vmem:[#allocation2 + $0x78] sm:$0xff] %v1266
      %1299 = vst [vmem:[#allocation2 + $0x80] sm:$0xff] %v1267
      %1300 = vst [vmem:[#allocation2 + $0x88] sm:$0xff] %v1268
      %1301 = vst [vmem:[#allocation2 + $0x90] sm:$0xff] %v1269
      %1302 = vst [vmem:[#allocation2 + $0x98] sm:$0xff] %v1270
      %1303 = vst [vmem:[#allocation2 + $0xa0] sm:$0xff] %v1271
      %1304 = vst [vmem:[#allocation2 + $0xa8] sm:$0xff] %v1272
      %1305 = vst [vmem:[#allocation2 + $0xb0] sm:$0xff] %v1273
      %1306 = vst [vmem:[#allocation2 + $0xb8] sm:$0xff] %v1274
      %1307 = vst [vmem:[#allocation2 + $0xc0] sm:$0xff] %v1275
      %1308 = vst [vmem:[#allocation2 + $0xc8] sm:$0xff] %v1276
      %1309 = vst [vmem:[#allocation2 + $0xd0] sm:$0xff] %v1277
      %1310 = vst [vmem:[#allocation2 + $0xd8] sm:$0xff] %v1278
      %1311 = vst [vmem:[#allocation2 + $0xe0] sm:$0xff] %v1279
      %1312 = vst [vmem:[#allocation2 + $0xe8] sm:$0xff] %v1280
      %1313 = vst [vmem:[#allocation2 + $0xf0] sm:$0xff] %v1281
      %1314 = vst [vmem:[#allocation2 + $0xf8] sm:$0xff] %v1282
      %v1315 = vld [vmem:[%s285] sm:$0xf]
      %v1316 = vld [vmem:[%s285 + $0x4] sm:$0xf]
      %v1317 = vld [vmem:[%s285 + $0x8] sm:$0x1]
      %v1318 = vld [vmem:[%s285 + $0xc] sm:$0xf]
      %v1319 = vld [vmem:[%s285 + $0x10] sm:$0xf]
      %v1320 = vld [vmem:[%s285 + $0x14] sm:$0x1]
      %v1321 = vld [vmem:[%s285 + $0x18] sm:$0xf]
      %v1322 = vld [vmem:[%s285 + $0x1c] sm:$0xf]
      %v1323 = vld [vmem:[%s285 + $0x20] sm:$0x1]
      %v1324 = vld [vmem:[%s285 + $0x24] sm:$0xf]
      %v1325 = vld [vmem:[%s285 + $0x28] sm:$0xf]
      %v1326 = vld [vmem:[%s285 + $0x2c] sm:$0x1]
      %v1327 = vld [vmem:[%s285 + $0x30] sm:$0xf]
      %v1328 = vld [vmem:[%s285 + $0x34] sm:$0xf]
      %v1329 = vld [vmem:[%s285 + $0x38] sm:$0x1]
      %v1330 = vld [vmem:[%s285 + $0x3c] sm:$0xf]
      %v1331 = vld [vmem:[%s285 + $0x40] sm:$0xf]
      %v1332 = vld [vmem:[%s285 + $0x44] sm:$0x1]
      %v1333 = vld [vmem:[%s285 + $0x48] sm:$0xf]
      %v1334 = vld [vmem:[%s285 + $0x4c] sm:$0xf]
      %v1335 = vld [vmem:[%s285 + $0x50] sm:$0x1]
      %v1336 = vld [vmem:[%s285 + $0x54] sm:$0xf]
      %v1337 = vld [vmem:[%s285 + $0x58] sm:$0xf]
      %v1338 = vld [vmem:[%s285 + $0x5c] sm:$0x1]
      %v1339 = vld [vmem:[%s285 + $0x60] sm:$0xf]
      %v1340 = vld [vmem:[%s285 + $0x64] sm:$0xf]
      %v1341 = vld [vmem:[%s285 + $0x68] sm:$0x1]
      %v1342 = vld [vmem:[%s285 + $0x6c] sm:$0xf]
      %v1343 = vld [vmem:[%s285 + $0x70] sm:$0xf]
      %v1344 = vld [vmem:[%s285 + $0x74] sm:$0x1]
      %v1345 = vld [vmem:[%s285 + $0x78] sm:$0xf]
      %v1346 = vld [vmem:[%s285 + $0x7c] sm:$0xf]
      %v1347 = vld [vmem:[%s285 + $0x80] sm:$0x1]
      %v1348 = vld [vmem:[%s285 + $0x84] sm:$0xf]
      %v1349 = vld [vmem:[%s285 + $0x88] sm:$0xf]
      %v1350 = vld [vmem:[%s285 + $0x8c] sm:$0x1]
      %v1351 = vld [vmem:[%s285 + $0x90] sm:$0xf]
      %v1352 = vld [vmem:[%s285 + $0x94] sm:$0xf]
      %v1353 = vld [vmem:[%s285 + $0x98] sm:$0x1]
      %v1354 = vld [vmem:[%s285 + $0x9c] sm:$0xf]
      %v1355 = vld [vmem:[%s285 + $0xa0] sm:$0xf]
      %v1356 = vld [vmem:[%s285 + $0xa4] sm:$0x1]
      %v1357 = vld [vmem:[%s285 + $0xa8] sm:$0xf]
      %v1358 = vld [vmem:[%s285 + $0xac] sm:$0xf]
      %v1359 = vld [vmem:[%s285 + $0xb0] sm:$0x1]
      %v1360 = vld [vmem:[%s285 + $0xb4] sm:$0xf]
      %v1361 = vld [vmem:[%s285 + $0xb8] sm:$0xf]
      %v1362 = vld [vmem:[%s285 + $0xbc] sm:$0x1]
      %v1363 = vld [vmem:[%s285 + $0xc0] sm:$0xf]
      %v1364 = vld [vmem:[%s285 + $0xc4] sm:$0xf]
      %v1365 = vld [vmem:[%s285 + $0xc8] sm:$0x1]
      %v1366 = vld [vmem:[%s285 + $0xcc] sm:$0xf]
      %v1367 = vld [vmem:[%s285 + $0xd0] sm:$0xf]
      %v1368 = vld [vmem:[%s285 + $0xd4] sm:$0x1]
      %vm1369 = vsmask.f32 3328
      %vm1370 = vsmask.f32 7440
      %vm1371 = vmor %vm1369, %vm1370
      %v1373 = vshrl.u32 %v1315, 16
      %v1375 = vrot.slane %v1373, 4
      %v1376 = vshll.u32 %v1315, 16
      %v1378 = vrot.slane %v1376, 5
      %v1379 = vor.u32 %v1375, %v1378
      %v1380 = vrot.slane %v1379, 4
      %v1382 = vshll.u32 %v1316, 16
      %v1384 = vrot.slane %v1382, 5
      %v1385 = vsel %vm1371, %v1380, %v1384
      %v1386 = vshrl.u32 %v1316, 16
      %v1388 = vrot.slane %v1386, 4
      %v1389 = vor.u32 %v1388, %v1384
      %v1390 = vrot.slane %v1389, 4
      %v1392 = vshll.u32 %v1317, 16
      %v1394 = vrot.slane %v1392, 5
      %v1395 = vsel %vm1371, %v1390, %v1394
      %v1397 = vshrl.u32 %v1318, 16
      %v1399 = vrot.slane %v1397, 4
      %v1400 = vshll.u32 %v1318, 16
      %v1402 = vrot.slane %v1400, 5
      %v1403 = vor.u32 %v1399, %v1402
      %v1404 = vrot.slane %v1403, 4
      %v1406 = vshll.u32 %v1319, 16
      %v1408 = vrot.slane %v1406, 5
      %v1409 = vsel %vm1371, %v1404, %v1408
      %v1410 = vshrl.u32 %v1319, 16
      %v1412 = vrot.slane %v1410, 4
      %v1413 = vor.u32 %v1412, %v1408
      %v1414 = vrot.slane %v1413, 4
      %v1416 = vshll.u32 %v1320, 16
      %v1418 = vrot.slane %v1416, 5
      %v1419 = vsel %vm1371, %v1414, %v1418
      %v1421 = vshrl.u32 %v1321, 16
      %v1423 = vrot.slane %v1421, 4
      %v1424 = vshll.u32 %v1321, 16
      %v1426 = vrot.slane %v1424, 5
      %v1427 = vor.u32 %v1423, %v1426
      %v1428 = vrot.slane %v1427, 4
      %v1430 = vshll.u32 %v1322, 16
      %v1432 = vrot.slane %v1430, 5
      %v1433 = vsel %vm1371, %v1428, %v1432
      %v1434 = vshrl.u32 %v1322, 16
      %v1436 = vrot.slane %v1434, 4
      %v1437 = vor.u32 %v1436, %v1432
      %v1438 = vrot.slane %v1437, 4
      %v1440 = vshll.u32 %v1323, 16
      %v1442 = vrot.slane %v1440, 5
      %v1443 = vsel %vm1371, %v1438, %v1442
      %v1445 = vshrl.u32 %v1324, 16
      %v1447 = vrot.slane %v1445, 4
      %v1448 = vshll.u32 %v1324, 16
      %v1450 = vrot.slane %v1448, 5
      %v1451 = vor.u32 %v1447, %v1450
      %v1452 = vrot.slane %v1451, 4
      %v1454 = vshll.u32 %v1325, 16
      %v1456 = vrot.slane %v1454, 5
      %v1457 = vsel %vm1371, %v1452, %v1456
      %v1458 = vshrl.u32 %v1325, 16
      %v1460 = vrot.slane %v1458, 4
      %v1461 = vor.u32 %v1460, %v1456
      %v1462 = vrot.slane %v1461, 4
      %v1464 = vshll.u32 %v1326, 16
      %v1466 = vrot.slane %v1464, 5
      %v1467 = vsel %vm1371, %v1462, %v1466
      %v1469 = vshrl.u32 %v1327, 16
      %v1471 = vrot.slane %v1469, 4
      %v1472 = vshll.u32 %v1327, 16
      %v1474 = vrot.slane %v1472, 5
      %v1475 = vor.u32 %v1471, %v1474
      %v1476 = vrot.slane %v1475, 4
      %v1478 = vshll.u32 %v1328, 16
      %v1480 = vrot.slane %v1478, 5
      %v1481 = vsel %vm1371, %v1476, %v1480
      %v1482 = vshrl.u32 %v1328, 16
      %v1484 = vrot.slane %v1482, 4
      %v1485 = vor.u32 %v1484, %v1480
      %v1486 = vrot.slane %v1485, 4
      %v1488 = vshll.u32 %v1329, 16
      %v1490 = vrot.slane %v1488, 5
      %v1491 = vsel %vm1371, %v1486, %v1490
      %v1493 = vshrl.u32 %v1330, 16
      %v1495 = vrot.slane %v1493, 4
      %v1496 = vshll.u32 %v1330, 16
      %v1498 = vrot.slane %v1496, 5
      %v1499 = vor.u32 %v1495, %v1498
      %v1500 = vrot.slane %v1499, 4
      %v1502 = vshll.u32 %v1331, 16
      %v1504 = vrot.slane %v1502, 5
      %v1505 = vsel %vm1371, %v1500, %v1504
      %v1506 = vshrl.u32 %v1331, 16
      %v1508 = vrot.slane %v1506, 4
      %v1509 = vor.u32 %v1508, %v1504
      %v1510 = vrot.slane %v1509, 4
      %v1512 = vshll.u32 %v1332, 16
      %v1514 = vrot.slane %v1512, 5
      %v1515 = vsel %vm1371, %v1510, %v1514
      %v1517 = vshrl.u32 %v1333, 16
      %v1519 = vrot.slane %v1517, 4
      %v1520 = vshll.u32 %v1333, 16
      %v1522 = vrot.slane %v1520, 5
      %v1523 = vor.u32 %v1519, %v1522
      %v1524 = vrot.slane %v1523, 4
      %v1526 = vshll.u32 %v1334, 16
      %v1528 = vrot.slane %v1526, 5
      %v1529 = vsel %vm1371, %v1524, %v1528
      %v1530 = vshrl.u32 %v1334, 16
      %v1532 = vrot.slane %v1530, 4
      %v1533 = vor.u32 %v1532, %v1528
      %v1534 = vrot.slane %v1533, 4
      %v1536 = vshll.u32 %v1335, 16
      %v1538 = vrot.slane %v1536, 5
      %v1539 = vsel %vm1371, %v1534, %v1538
      %v1541 = vshrl.u32 %v1336, 16
      %v1543 = vrot.slane %v1541, 4
      %v1544 = vshll.u32 %v1336, 16
      %v1546 = vrot.slane %v1544, 5
      %v1547 = vor.u32 %v1543, %v1546
      %v1548 = vrot.slane %v1547, 4
      %v1550 = vshll.u32 %v1337, 16
      %v1552 = vrot.slane %v1550, 5
      %v1553 = vsel %vm1371, %v1548, %v1552
      %v1554 = vshrl.u32 %v1337, 16
      %v1556 = vrot.slane %v1554, 4
      %v1557 = vor.u32 %v1556, %v1552
      %v1558 = vrot.slane %v1557, 4
      %v1560 = vshll.u32 %v1338, 16
      %v1562 = vrot.slane %v1560, 5
      %v1563 = vsel %vm1371, %v1558, %v1562
      %v1565 = vshrl.u32 %v1339, 16
      %v1567 = vrot.slane %v1565, 4
      %v1568 = vshll.u32 %v1339, 16
      %v1570 = vrot.slane %v1568, 5
      %v1571 = vor.u32 %v1567, %v1570
      %v1572 = vrot.slane %v1571, 4
      %v1574 = vshll.u32 %v1340, 16
      %v1576 = vrot.slane %v1574, 5
      %v1577 = vsel %vm1371, %v1572, %v1576
      %v1578 = vshrl.u32 %v1340, 16
      %v1580 = vrot.slane %v1578, 4
      %v1581 = vor.u32 %v1580, %v1576
      %v1582 = vrot.slane %v1581, 4
      %v1584 = vshll.u32 %v1341, 16
      %v1586 = vrot.slane %v1584, 5
      %v1587 = vsel %vm1371, %v1582, %v1586
      %v1589 = vshrl.u32 %v1342, 16
      %v1591 = vrot.slane %v1589, 4
      %v1592 = vshll.u32 %v1342, 16
      %v1594 = vrot.slane %v1592, 5
      %v1595 = vor.u32 %v1591, %v1594
      %v1596 = vrot.slane %v1595, 4
      %v1598 = vshll.u32 %v1343, 16
      %v1600 = vrot.slane %v1598, 5
      %v1601 = vsel %vm1371, %v1596, %v1600
      %v1602 = vshrl.u32 %v1343, 16
      %v1604 = vrot.slane %v1602, 4
      %v1605 = vor.u32 %v1604, %v1600
      %v1606 = vrot.slane %v1605, 4
      %v1608 = vshll.u32 %v1344, 16
      %v1610 = vrot.slane %v1608, 5
      %v1611 = vsel %vm1371, %v1606, %v1610
      %v1613 = vshrl.u32 %v1345, 16
      %v1615 = vrot.slane %v1613, 4
      %v1616 = vshll.u32 %v1345, 16
      %v1618 = vrot.slane %v1616, 5
      %v1619 = vor.u32 %v1615, %v1618
      %v1620 = vrot.slane %v1619, 4
      %v1622 = vshll.u32 %v1346, 16
      %v1624 = vrot.slane %v1622, 5
      %v1625 = vsel %vm1371, %v1620, %v1624
      %v1626 = vshrl.u32 %v1346, 16
      %v1628 = vrot.slane %v1626, 4
      %v1629 = vor.u32 %v1628, %v1624
      %v1630 = vrot.slane %v1629, 4
      %v1632 = vshll.u32 %v1347, 16
      %v1634 = vrot.slane %v1632, 5
      %v1635 = vsel %vm1371, %v1630, %v1634
      %v1637 = vshrl.u32 %v1348, 16
      %v1639 = vrot.slane %v1637, 4
      %v1640 = vshll.u32 %v1348, 16
      %v1642 = vrot.slane %v1640, 5
      %v1643 = vor.u32 %v1639, %v1642
      %v1644 = vrot.slane %v1643, 4
      %v1646 = vshll.u32 %v1349, 16
      %v1648 = vrot.slane %v1646, 5
      %v1649 = vsel %vm1371, %v1644, %v1648
      %v1650 = vshrl.u32 %v1349, 16
      %v1652 = vrot.slane %v1650, 4
      %v1653 = vor.u32 %v1652, %v1648
      %v1654 = vrot.slane %v1653, 4
      %v1656 = vshll.u32 %v1350, 16
      %v1658 = vrot.slane %v1656, 5
      %v1659 = vsel %vm1371, %v1654, %v1658
      %v1661 = vshrl.u32 %v1351, 16
      %v1663 = vrot.slane %v1661, 4
      %v1664 = vshll.u32 %v1351, 16
      %v1666 = vrot.slane %v1664, 5
      %v1667 = vor.u32 %v1663, %v1666
      %v1668 = vrot.slane %v1667, 4
      %v1670 = vshll.u32 %v1352, 16
      %v1672 = vrot.slane %v1670, 5
      %v1673 = vsel %vm1371, %v1668, %v1672
      %v1674 = vshrl.u32 %v1352, 16
      %v1676 = vrot.slane %v1674, 4
      %v1677 = vor.u32 %v1676, %v1672
      %v1678 = vrot.slane %v1677, 4
      %v1680 = vshll.u32 %v1353, 16
      %v1682 = vrot.slane %v1680, 5
      %v1683 = vsel %vm1371, %v1678, %v1682
      %v1685 = vshrl.u32 %v1354, 16
      %v1687 = vrot.slane %v1685, 4
      %v1688 = vshll.u32 %v1354, 16
      %v1690 = vrot.slane %v1688, 5
      %v1691 = vor.u32 %v1687, %v1690
      %v1692 = vrot.slane %v1691, 4
      %v1694 = vshll.u32 %v1355, 16
      %v1696 = vrot.slane %v1694, 5
      %v1697 = vsel %vm1371, %v1692, %v1696
      %v1698 = vshrl.u32 %v1355, 16
      %v1700 = vrot.slane %v1698, 4
      %v1701 = vor.u32 %v1700, %v1696
      %v1702 = vrot.slane %v1701, 4
      %v1704 = vshll.u32 %v1356, 16
      %v1706 = vrot.slane %v1704, 5
      %v1707 = vsel %vm1371, %v1702, %v1706
      %v1709 = vshrl.u32 %v1357, 16
      %v1711 = vrot.slane %v1709, 4
      %v1712 = vshll.u32 %v1357, 16
      %v1714 = vrot.slane %v1712, 5
      %v1715 = vor.u32 %v1711, %v1714
      %v1716 = vrot.slane %v1715, 4
      %v1718 = vshll.u32 %v1358, 16
      %v1720 = vrot.slane %v1718, 5
      %v1721 = vsel %vm1371, %v1716, %v1720
      %v1722 = vshrl.u32 %v1358, 16
      %v1724 = vrot.slane %v1722, 4
      %v1725 = vor.u32 %v1724, %v1720
      %v1726 = vrot.slane %v1725, 4
      %v1728 = vshll.u32 %v1359, 16
      %v1730 = vrot.slane %v1728, 5
      %v1731 = vsel %vm1371, %v1726, %v1730
      %v1733 = vshrl.u32 %v1360, 16
      %v1735 = vrot.slane %v1733, 4
      %v1736 = vshll.u32 %v1360, 16
      %v1738 = vrot.slane %v1736, 5
      %v1739 = vor.u32 %v1735, %v1738
      %v1740 = vrot.slane %v1739, 4
      %v1742 = vshll.u32 %v1361, 16
      %v1744 = vrot.slane %v1742, 5
      %v1745 = vsel %vm1371, %v1740, %v1744
      %v1746 = vshrl.u32 %v1361, 16
      %v1748 = vrot.slane %v1746, 4
      %v1749 = vor.u32 %v1748, %v1744
      %v1750 = vrot.slane %v1749, 4
      %v1752 = vshll.u32 %v1362, 16
      %v1754 = vrot.slane %v1752, 5
      %v1755 = vsel %vm1371, %v1750, %v1754
      %v1757 = vshrl.u32 %v1363, 16
      %v1759 = vrot.slane %v1757, 4
      %v1760 = vshll.u32 %v1363, 16
      %v1762 = vrot.slane %v1760, 5
      %v1763 = vor.u32 %v1759, %v1762
      %v1764 = vrot.slane %v1763, 4
      %v1766 = vshll.u32 %v1364, 16
      %v1768 = vrot.slane %v1766, 5
      %v1769 = vsel %vm1371, %v1764, %v1768
      %v1770 = vshrl.u32 %v1364, 16
      %v1772 = vrot.slane %v1770, 4
      %v1773 = vor.u32 %v1772, %v1768
      %v1774 = vrot.slane %v1773, 4
      %v1776 = vshll.u32 %v1365, 16
      %v1778 = vrot.slane %v1776, 5
      %v1779 = vsel %vm1371, %v1774, %v1778
      %v1781 = vshrl.u32 %v1366, 16
      %v1783 = vrot.slane %v1781, 4
      %v1784 = vshll.u32 %v1366, 16
      %v1786 = vrot.slane %v1784, 5
      %v1787 = vor.u32 %v1783, %v1786
      %v1788 = vrot.slane %v1787, 4
      %v1790 = vshll.u32 %v1367, 16
      %v1792 = vrot.slane %v1790, 5
      %v1793 = vsel %vm1371, %v1788, %v1792
      %v1794 = vshrl.u32 %v1367, 16
      %v1796 = vrot.slane %v1794, 4
      %v1797 = vor.u32 %v1796, %v1792
      %v1798 = vrot.slane %v1797, 4
      %v1800 = vshll.u32 %v1368, 16
      %v1802 = vrot.slane %v1800, 5
      %v1803 = vsel %vm1371, %v1798, %v1802
      %v1804 = vld [vmem:[#allocation2] sm:$0xff]
      %v1805 = vld [vmem:[#allocation2 + $0x8] sm:$0xff]
      %v1806 = vld [vmem:[#allocation2 + $0x10] sm:$0xff]
      %v1807 = vld [vmem:[#allocation2 + $0x18] sm:$0xff]
      %v1808 = vld [vmem:[#allocation2 + $0x20] sm:$0xff]
      %v1809 = vld [vmem:[#allocation2 + $0x28] sm:$0xff]
      %v1810 = vld [vmem:[#allocation2 + $0x30] sm:$0xff]
      %v1811 = vld [vmem:[#allocation2 + $0x38] sm:$0xff]
      %v1812 = vld [vmem:[#allocation2 + $0x40] sm:$0xff]
      %v1813 = vld [vmem:[#allocation2 + $0x48] sm:$0xff]
      %v1814 = vld [vmem:[#allocation2 + $0x50] sm:$0xff]
      %v1815 = vld [vmem:[#allocation2 + $0x58] sm:$0xff]
      %v1816 = vld [vmem:[#allocation2 + $0x60] sm:$0xff]
      %v1817 = vld [vmem:[#allocation2 + $0x68] sm:$0xff]
      %v1818 = vld [vmem:[#allocation2 + $0x70] sm:$0xff]
      %v1819 = vld [vmem:[#allocation2 + $0x78] sm:$0xff]
      %v1820 = vld [vmem:[#allocation2 + $0x80] sm:$0xff]
      %v1821 = vld [vmem:[#allocation2 + $0x88] sm:$0xff]
      %v1822 = vld [vmem:[#allocation2 + $0x90] sm:$0xff]
      %v1823 = vld [vmem:[#allocation2 + $0x98] sm:$0xff]
      %v1824 = vld [vmem:[#allocation2 + $0xa0] sm:$0xff]
      %v1825 = vld [vmem:[#allocation2 + $0xa8] sm:$0xff]
      %v1826 = vld [vmem:[#allocation2 + $0xb0] sm:$0xff]
      %v1827 = vld [vmem:[#allocation2 + $0xb8] sm:$0xff]
      %v1828 = vld [vmem:[#allocation2 + $0xc0] sm:$0xff]
      %v1829 = vld [vmem:[#allocation2 + $0xc8] sm:$0xff]
      %v1830 = vld [vmem:[#allocation2 + $0xd0] sm:$0xff]
      %v1831 = vld [vmem:[#allocation2 + $0xd8] sm:$0xff]
      %v1832 = vld [vmem:[#allocation2 + $0xe0] sm:$0xff]
      %v1833 = vld [vmem:[#allocation2 + $0xe8] sm:$0xff]
      %v1834 = vld [vmem:[#allocation2 + $0xf0] sm:$0xff]
      %v1835 = vld [vmem:[#allocation2 + $0xf8] sm:$0xff]
      %s1836 = scalar_lea.vmem %s290, 64
      %v1837 = vld [vmem:[%s1836] sm:$0xf]
      %v1838 = vld [vmem:[%s1836 + $0x4] sm:$0xf]
      %v1839 = vld [vmem:[%s1836 + $0x8] sm:$0xf]
      %v1840 = vld [vmem:[%s1836 + $0xc] sm:$0xf]
      %v1841 = vld [vmem:[%s1836 + $0x10] sm:$0xf]
      %v1842 = vld [vmem:[%s1836 + $0x14] sm:$0xf]
      %v1843 = vld [vmem:[%s1836 + $0x18] sm:$0xf]
      %v1844 = vld [vmem:[%s1836 + $0x1c] sm:$0xf]
      %v1845 = vld [vmem:[%s1836 + $0x20] sm:$0xf]
      %v1846 = vld [vmem:[%s1836 + $0x24] sm:$0xf]
      %v1847 = vld [vmem:[%s1836 + $0x28] sm:$0xf]
      %v1848 = vld [vmem:[%s1836 + $0x2c] sm:$0xf]
      %v1849 = vld [vmem:[%s1836 + $0x30] sm:$0xf]
      %v1850 = vld [vmem:[%s1836 + $0x34] sm:$0xf]
      %v1851 = vld [vmem:[%s1836 + $0x38] sm:$0xf]
      %v1852 = vld [vmem:[%s1836 + $0x3c] sm:$0xf]
      %v1853 = vunpack.c.l.b16 %v1385
      %v1854 = vunpack.c.l.b16 %v1395
      %v1855 = vunpack.c.l.b16 %v1409
      %v1856 = vunpack.c.l.b16 %v1419
      %v1857 = vunpack.c.l.b16 %v1433
      %v1858 = vunpack.c.l.b16 %v1443
      %v1859 = vunpack.c.l.b16 %v1457
      %v1860 = vunpack.c.l.b16 %v1467
      %v1861 = vunpack.c.l.b16 %v1481
      %v1862 = vunpack.c.l.b16 %v1491
      %v1863 = vunpack.c.l.b16 %v1505
      %v1864 = vunpack.c.l.b16 %v1515
      %v1865 = vunpack.c.l.b16 %v1529
      %v1866 = vunpack.c.l.b16 %v1539
      %v1867 = vunpack.c.l.b16 %v1553
      %v1868 = vunpack.c.l.b16 %v1563
      %v1869 = vunpack.c.l.b16 %v1577
      %v1870 = vunpack.c.l.b16 %v1587
      %v1871 = vunpack.c.l.b16 %v1601
      %v1872 = vunpack.c.l.b16 %v1611
      %v1873 = vunpack.c.l.b16 %v1625
      %v1874 = vunpack.c.l.b16 %v1635
      %v1875 = vunpack.c.l.b16 %v1649
      %v1876 = vunpack.c.l.b16 %v1659
      %v1877 = vunpack.c.l.b16 %v1673
      %v1878 = vunpack.c.l.b16 %v1683
      %v1879 = vunpack.c.l.b16 %v1697
      %v1880 = vunpack.c.l.b16 %v1707
      %v1881 = vunpack.c.l.b16 %v1721
      %v1882 = vunpack.c.l.b16 %v1731
      %v1883 = vunpack.c.l.b16 %v1745
      %v1884 = vunpack.c.l.b16 %v1755
      %v1885 = vpack.c.b16 %v1854, %v1853
      %v1886 = vpack.c.b16 %v1856, %v1855
      %v1887 = vpack.c.b16 %v1858, %v1857
      %v1888 = vpack.c.b16 %v1860, %v1859
      %v1889 = vpack.c.b16 %v1862, %v1861
      %v1890 = vpack.c.b16 %v1864, %v1863
      %v1891 = vpack.c.b16 %v1866, %v1865
      %v1892 = vpack.c.b16 %v1868, %v1867
      %v1893 = vpack.c.b16 %v1870, %v1869
      %v1894 = vpack.c.b16 %v1872, %v1871
      %v1895 = vpack.c.b16 %v1874, %v1873
      %v1896 = vpack.c.b16 %v1876, %v1875
      %v1897 = vpack.c.b16 %v1878, %v1877
      %v1898 = vpack.c.b16 %v1880, %v1879
      %v1899 = vpack.c.b16 %v1882, %v1881
      %v1900 = vpack.c.b16 %v1884, %v1883
      %v1933 = vunpack.c.l.b16 %v1837
      %v1934 = vunpack.c.l.b16 %v1838
      %v1935 = vunpack.c.l.b16 %v1839
      %v1936 = vunpack.c.l.b16 %v1840
      %v1937 = vunpack.c.l.b16 %v1841
      %v1938 = vunpack.c.l.b16 %v1842
      %v1939 = vunpack.c.l.b16 %v1843
      %v1940 = vunpack.c.l.b16 %v1844
      %v1941 = vunpack.c.l.b16 %v1845
      %v1942 = vunpack.c.l.b16 %v1846
      %v1943 = vunpack.c.l.b16 %v1847
      %v1944 = vunpack.c.l.b16 %v1848
      %v1945 = vunpack.c.l.b16 %v1849
      %v1946 = vunpack.c.l.b16 %v1850
      %v1947 = vunpack.c.l.b16 %v1851
      %v1948 = vunpack.c.l.b16 %v1852
      %v1949 = vpack.c.b16 %v1934, %v1933
      %v1950 = vpack.c.b16 %v1936, %v1935
      %v1951 = vpack.c.b16 %v1938, %v1937
      %v1952 = vpack.c.b16 %v1940, %v1939
      %v1953 = vpack.c.b16 %v1942, %v1941
      %v1954 = vpack.c.b16 %v1944, %v1943
      %v1955 = vpack.c.b16 %v1946, %v1945
      %v1956 = vpack.c.b16 %v1948, %v1947
      %1965 = vmatprep.subr.bf16.mxu0 0
      %1966 = vmatpush1.bf16.msra.mxu0 %v1949
      %1967 = vmatprep.subr.bf16.mxu0 0
      %1968 = vmatpush1.bf16.msra.mxu0 %v1950
      %1969 = vmatprep.subr.bf16.mxu0 0
      %1970 = vmatpush1.bf16.msra.mxu0 %v1951
      %1971 = vmatprep.subr.bf16.mxu0 0
      %1972 = vmatpush1.bf16.msra.mxu0 %v1952
      %1973 = vmatprep.subr.bf16.mxu0 0
      %1974 = vmatpush1.bf16.msra.mxu0 %v1953
      %1975 = vmatprep.subr.bf16.mxu0 0
      %1976 = vmatpush1.bf16.msra.mxu0 %v1954
      %1977 = vmatprep.subr.bf16.mxu0 0
      %1978 = vmatpush1.bf16.msra.mxu0 %v1955
      %1979 = vmatprep.subr.bf16.mxu0 0
      %1980 = vmatpush1.bf16.msra.mxu0 %v1956
      %1981 = vmatprep.subr.bf16.mxu0 0
      %1982 = vmatpush1.bf16.msra.mxu0 0
      %1983 = vmatprep.subr.bf16.mxu0 0
      %1984 = vmatpush1.bf16.msra.mxu0 0
      %1985 = vmatprep.subr.bf16.mxu0 0
      %1986 = vmatpush1.bf16.msra.mxu0 0
      %1987 = vmatprep.subr.bf16.mxu0 0
      %1988 = vmatpush1.bf16.msra.mxu0 0
      %1989 = vmatprep.subr.bf16.mxu0 0
      %1990 = vmatpush1.bf16.msra.mxu0 0
      %1991 = vmatprep.subr.bf16.mxu0 0
      %1992 = vmatpush1.bf16.msra.mxu0 0
      %1993 = vmatprep.subr.bf16.mxu0 0
      %1994 = vmatpush1.bf16.msra.mxu0 0
      %1995 = vmatprep.subr.bf16.mxu0 0
      %1996 = vmatpush1.bf16.msra.mxu0 0
      %1997 = vmatprep.mubr.bf16.mxu0 0
      %1998 = vmatmul.mubr.bf16.gmra.mrb[0].mxu0 %v1885
      %v1999 = vpop.f32.mrb[0].mxu0
      %v2000 = vadd.f32 0.0, %v1999
      %v2001 = vpop.f32.mrb[0].mxu0
      %v2002 = vpop.f32.mrb[0].mxu0
      %v2003 = vadd.f32 0.0, %v2002
      %v2004 = vpop.f32.mrb[0].mxu0
      %2005 = vmatprep.mubr.bf16.mxu0 0
      %2006 = vmatmul.mubr.bf16.gmra.mrb[0].mxu0 %v1886
      %v2007 = vpop.f32.mrb[0].mxu0
      %v2008 = vadd.f32 0.0, %v2007
      %v2009 = vpop.f32.mrb[0].mxu0
      %v2010 = vpop.f32.mrb[0].mxu0
      %v2011 = vadd.f32 0.0, %v2010
      %v2012 = vpop.f32.mrb[0].mxu0
      %2013 = vmatprep.mubr.bf16.mxu0 0
      %2014 = vmatmul.mubr.bf16.gmra.mrb[0].mxu0 %v1887
      %v2015 = vpop.f32.mrb[0].mxu0
      %v2016 = vadd.f32 0.0, %v2015
      %v2017 = vpop.f32.mrb[0].mxu0
      %v2018 = vpop.f32.mrb[0].mxu0
      %v2019 = vadd.f32 0.0, %v2018
      %v2020 = vpop.f32.mrb[0].mxu0
      %2021 = vmatprep.mubr.bf16.mxu0 0
      %2022 = vmatmul.mubr.bf16.gmra.mrb[0].mxu0 %v1888
      %v2023 = vpop.f32.mrb[0].mxu0
      %v2024 = vadd.f32 0.0, %v2023
      %v2025 = vpop.f32.mrb[0].mxu0
      %v2026 = vpop.f32.mrb[0].mxu0
      %v2027 = vadd.f32 0.0, %v2026
      %v2028 = vpop.f32.mrb[0].mxu0
      %2029 = vmatprep.mubr.bf16.mxu0 0
      %2030 = vmatmul.mubr.bf16.gmra.mrb[0].mxu0 %v1889
      %v2031 = vpop.f32.mrb[0].mxu0
      %v2032 = vadd.f32 0.0, %v2031
      %v2033 = vpop.f32.mrb[0].mxu0
      %v2034 = vpop.f32.mrb[0].mxu0
      %v2035 = vadd.f32 0.0, %v2034
      %v2036 = vpop.f32.mrb[0].mxu0
      %2037 = vmatprep.mubr.bf16.mxu0 0
      %2038 = vmatmul.mubr.bf16.gmra.mrb[0].mxu0 %v1890
      %v2039 = vpop.f32.mrb[0].mxu0
      %v2040 = vadd.f32 0.0, %v2039
      %v2041 = vpop.f32.mrb[0].mxu0
      %v2042 = vpop.f32.mrb[0].mxu0
      %v2043 = vadd.f32 0.0, %v2042
      %v2044 = vpop.f32.mrb[0].mxu0
      %2045 = vmatprep.mubr.bf16.mxu0 0
      %2046 = vmatmul.mubr.bf16.gmra.mrb[0].mxu0 %v1891
      %v2047 = vpop.f32.mrb[0].mxu0
      %v2048 = vadd.f32 0.0, %v2047
      %v2049 = vpop.f32.mrb[0].mxu0
      %v2050 = vpop.f32.mrb[0].mxu0
      %v2051 = vadd.f32 0.0, %v2050
      %v2052 = vpop.f32.mrb[0].mxu0
      %2053 = vmatprep.mubr.bf16.mxu0 0
      %2054 = vmatmul.mubr.bf16.gmra.mrb[0].mxu0 %v1892
      %v2055 = vpop.f32.mrb[0].mxu0
      %v2056 = vadd.f32 0.0, %v2055
      %v2057 = vpop.f32.mrb[0].mxu0
      %v2058 = vpop.f32.mrb[0].mxu0
      %v2059 = vadd.f32 0.0, %v2058
      %v2060 = vpop.f32.mrb[0].mxu0
      %2061 = vmatprep.mubr.bf16.mxu0 0
      %2062 = vmatmul.mubr.bf16.gmra.mrb[0].mxu0 %v1893
      %v2063 = vpop.f32.mrb[0].mxu0
      %v2064 = vadd.f32 0.0, %v2063
      %v2065 = vpop.f32.mrb[0].mxu0
      %v2066 = vpop.f32.mrb[0].mxu0
      %v2067 = vadd.f32 0.0, %v2066
      %v2068 = vpop.f32.mrb[0].mxu0
      %2069 = vmatprep.mubr.bf16.mxu0 0
      %2070 = vmatmul.mubr.bf16.gmra.mrb[0].mxu0 %v1894
      %v2071 = vpop.f32.mrb[0].mxu0
      %v2072 = vadd.f32 0.0, %v2071
      %v2073 = vpop.f32.mrb[0].mxu0
      %v2074 = vpop.f32.mrb[0].mxu0
      %v2075 = vadd.f32 0.0, %v2074
      %v2076 = vpop.f32.mrb[0].mxu0
      %2077 = vmatprep.mubr.bf16.mxu0 0
      %2078 = vmatmul.mubr.bf16.gmra.mrb[0].mxu0 %v1895
      %v2079 = vpop.f32.mrb[0].mxu0
      %v2080 = vadd.f32 0.0, %v2079
      %v2081 = vpop.f32.mrb[0].mxu0
      %v2082 = vpop.f32.mrb[0].mxu0
      %v2083 = vadd.f32 0.0, %v2082
      %v2084 = vpop.f32.mrb[0].mxu0
      %2085 = vmatprep.mubr.bf16.mxu0 0
      %2086 = vmatmul.mubr.bf16.gmra.mrb[0].mxu0 %v1896
      %v2087 = vpop.f32.mrb[0].mxu0
      %v2088 = vadd.f32 0.0, %v2087
      %v2089 = vpop.f32.mrb[0].mxu0
      %v2090 = vpop.f32.mrb[0].mxu0
      %v2091 = vadd.f32 0.0, %v2090
      %v2092 = vpop.f32.mrb[0].mxu0
      %2093 = vmatprep.mubr.bf16.mxu0 0
      %2094 = vmatmul.mubr.bf16.gmra.mrb[0].mxu0 %v1897
      %v2095 = vpop.f32.mrb[0].mxu0
      %v2096 = vadd.f32 0.0, %v2095
      %v2097 = vpop.f32.mrb[0].mxu0
      %v2098 = vpop.f32.mrb[0].mxu0
      %v2099 = vadd.f32 0.0, %v2098
      %v2100 = vpop.f32.mrb[0].mxu0
      %2101 = vmatprep.mubr.bf16.mxu0 0
      %2102 = vmatmul.mubr.bf16.gmra.mrb[0].mxu0 %v1898
      %v2103 = vpop.f32.mrb[0].mxu0
      %v2104 = vadd.f32 0.0, %v2103
      %v2105 = vpop.f32.mrb[0].mxu0
      %v2106 = vpop.f32.mrb[0].mxu0
      %v2107 = vadd.f32 0.0, %v2106
      %v2108 = vpop.f32.mrb[0].mxu0
      %2109 = vmatprep.mubr.bf16.mxu0 0
      %2110 = vmatmul.mubr.bf16.gmra.mrb[0].mxu0 %v1899
      %v2111 = vpop.f32.mrb[0].mxu0
      %v2112 = vadd.f32 0.0, %v2111
      %v2113 = vpop.f32.mrb[0].mxu0
      %v2114 = vpop.f32.mrb[0].mxu0
      %v2115 = vadd.f32 0.0, %v2114
      %v2116 = vpop.f32.mrb[0].mxu0
      %2117 = vmatprep.mubr.bf16.mxu0 0
      %2118 = vmatmul.mubr.bf16.gmra.mrb[0].mxu0 %v1900
      %v2119 = vpop.f32.mrb[0].mxu0
      %v2120 = vadd.f32 0.0, %v2119
      %v2121 = vpop.f32.mrb[0].mxu0
      %v2122 = vpop.f32.mrb[0].mxu0
      %v2123 = vadd.f32 0.0, %v2122
      %v2124 = vpop.f32.mrb[0].mxu0
      %2125 = vdwg.mxu0
      %v2126 = vadd.f32 %v1804, %v2000
      %v2127 = vadd.f32 %v1805, %v2003
      %v2128 = vadd.f32 %v1806, %v2008
      %v2129 = vadd.f32 %v1807, %v2011
      %v2130 = vadd.f32 %v1808, %v2016
      %v2131 = vadd.f32 %v1809, %v2019
      %v2132 = vadd.f32 %v1810, %v2024
      %v2133 = vadd.f32 %v1811, %v2027
      %v2134 = vadd.f32 %v1812, %v2032
      %v2135 = vadd.f32 %v1813, %v2035
      %v2136 = vadd.f32 %v1814, %v2040
      %v2137 = vadd.f32 %v1815, %v2043
      %v2138 = vadd.f32 %v1816, %v2048
      %v2139 = vadd.f32 %v1817, %v2051
      %v2140 = vadd.f32 %v1818, %v2056
      %v2141 = vadd.f32 %v1819, %v2059
      %v2142 = vadd.f32 %v1820, %v2064
      %v2143 = vadd.f32 %v1821, %v2067
      %v2144 = vadd.f32 %v1822, %v2072
      %v2145 = vadd.f32 %v1823, %v2075
      %v2146 = vadd.f32 %v1824, %v2080
      %v2147 = vadd.f32 %v1825, %v2083
      %v2148 = vadd.f32 %v1826, %v2088
      %v2149 = vadd.f32 %v1827, %v2091
      %v2150 = vadd.f32 %v1828, %v2096
      %v2151 = vadd.f32 %v1829, %v2099
      %v2152 = vadd.f32 %v1830, %v2104
      %v2153 = vadd.f32 %v1831, %v2107
      %v2154 = vadd.f32 %v1832, %v2112
      %v2155 = vadd.f32 %v1833, %v2115
      %v2156 = vadd.f32 %v1834, %v2120
      %v2157 = vadd.f32 %v1835, %v2123
      %s2158 = scalar_lea.vmem %s290, 256
      %v2159 = vld [vmem:[%s2158] sm:$0xf]
      %v2160 = vld [vmem:[%s2158 + $0x4] sm:$0xf]
      %v2161 = vld [vmem:[%s2158 + $0x8] sm:$0xf]
      %v2162 = vld [vmem:[%s2158 + $0xc] sm:$0xf]
      %v2163 = vld [vmem:[%s2158 + $0x10] sm:$0xf]
      %v2164 = vld [vmem:[%s2158 + $0x14] sm:$0xf]
      %v2165 = vld [vmem:[%s2158 + $0x18] sm:$0xf]
      %v2166 = vld [vmem:[%s2158 + $0x1c] sm:$0xf]
      %v2167 = vld [vmem:[%s2158 + $0x20] sm:$0xf]
      %v2168 = vld [vmem:[%s2158 + $0x24] sm:$0xf]
      %v2169 = vld [vmem:[%s2158 + $0x28] sm:$0xf]
      %v2170 = vld [vmem:[%s2158 + $0x2c] sm:$0xf]
      %v2171 = vld [vmem:[%s2158 + $0x30] sm:$0xf]
      %v2172 = vld [vmem:[%s2158 + $0x34] sm:$0xf]
      %v2173 = vld [vmem:[%s2158 + $0x38] sm:$0xf]
      %v2174 = vld [vmem:[%s2158 + $0x3c] sm:$0xf]
      %v2175 = vunpack.c.l.b16 %v1769
      %v2176 = vunpack.c.l.b16 %v1779
      %v2177 = vpack.c.b16 %v2176, %v2175
      %v2195 = vunpack.c.l.b16 %v2159
      %v2196 = vunpack.c.l.b16 %v2160
      %v2197 = vunpack.c.l.b16 %v2161
      %v2198 = vunpack.c.l.b16 %v2162
      %v2199 = vunpack.c.l.b16 %v2163
      %v2200 = vunpack.c.l.b16 %v2164
      %v2201 = vunpack.c.l.b16 %v2165
      %v2202 = vunpack.c.l.b16 %v2166
      %v2203 = vunpack.c.l.b16 %v2167
      %v2204 = vunpack.c.l.b16 %v2168
      %v2205 = vunpack.c.l.b16 %v2169
      %v2206 = vunpack.c.l.b16 %v2170
      %v2207 = vunpack.c.l.b16 %v2171
      %v2208 = vunpack.c.l.b16 %v2172
      %v2209 = vunpack.c.l.b16 %v2173
      %v2210 = vunpack.c.l.b16 %v2174
      %v2211 = vpack.c.b16 %v2196, %v2195
      %v2212 = vpack.c.b16 %v2198, %v2197
      %v2213 = vpack.c.b16 %v2200, %v2199
      %v2214 = vpack.c.b16 %v2202, %v2201
      %v2215 = vpack.c.b16 %v2204, %v2203
      %v2216 = vpack.c.b16 %v2206, %v2205
      %v2217 = vpack.c.b16 %v2208, %v2207
      %v2218 = vpack.c.b16 %v2210, %v2209
      %2227 = vmatprep.subr.bf16.mxu0 0
      %2228 = vmatpush1.bf16.msra.mxu0 %v2211
      %2229 = vmatprep.subr.bf16.mxu0 0
      %2230 = vmatpush1.bf16.msra.mxu0 %v2212
      %2231 = vmatprep.subr.bf16.mxu0 0
      %2232 = vmatpush1.bf16.msra.mxu0 %v2213
      %2233 = vmatprep.subr.bf16.mxu0 0
      %2234 = vmatpush1.bf16.msra.mxu0 %v2214
      %2235 = vmatprep.subr.bf16.mxu0 0
      %2236 = vmatpush1.bf16.msra.mxu0 %v2215
      %2237 = vmatprep.subr.bf16.mxu0 0
      %2238 = vmatpush1.bf16.msra.mxu0 %v2216
      %2239 = vmatprep.subr.bf16.mxu0 0
      %2240 = vmatpush1.bf16.msra.mxu0 %v2217
      %2241 = vmatprep.subr.bf16.mxu0 0
      %2242 = vmatpush1.bf16.msra.mxu0 %v2218
      %2243 = vmatprep.subr.bf16.mxu0 0
      %2244 = vmatpush1.bf16.msra.mxu0 0
      %2245 = vmatprep.subr.bf16.mxu0 0
      %2246 = vmatpush1.bf16.msra.mxu0 0
      %2247 = vmatprep.subr.bf16.mxu0 0
      %2248 = vmatpush1.bf16.msra.mxu0 0
      %2249 = vmatprep.subr.bf16.mxu0 0
      %2250 = vmatpush1.bf16.msra.mxu0 0
      %2251 = vmatprep.subr.bf16.mxu0 0
      %2252 = vmatpush1.bf16.msra.mxu0 0
      %2253 = vmatprep.subr.bf16.mxu0 0
      %2254 = vmatpush1.bf16.msra.mxu0 0
      %2255 = vmatprep.subr.bf16.mxu0 0
      %2256 = vmatpush1.bf16.msra.mxu0 0
      %2257 = vmatprep.subr.bf16.mxu0 0
      %2258 = vmatpush1.bf16.msra.mxu0 0
      %2259 = vmatprep.mubr.bf16.mxu0 0
      %2260 = vmatmul.mubr.bf16.gmra.mrb[0].mxu0 %v1886
      %v2261 = vpop.f32.mrb[0].mxu0
      %v2262 = vadd.f32 0.0, %v2261
      %v2263 = vpop.f32.mrb[0].mxu0
      %v2264 = vpop.f32.mrb[0].mxu0
      %v2265 = vadd.f32 0.0, %v2264
      %v2266 = vpop.f32.mrb[0].mxu0
      %2267 = vmatprep.mubr.bf16.mxu0 0
      %2268 = vmatmul.mubr.bf16.gmra.mrb[0].mxu0 %v1887
      %v2269 = vpop.f32.mrb[0].mxu0
      %v2270 = vadd.f32 0.0, %v2269
      %v2271 = vpop.f32.mrb[0].mxu0
      %v2272 = vpop.f32.mrb[0].mxu0
      %v2273 = vadd.f32 0.0, %v2272
      %v2274 = vpop.f32.mrb[0].mxu0
      %2275 = vmatprep.mubr.bf16.mxu0 0
      %2276 = vmatmul.mubr.bf16.gmra.mrb[0].mxu0 %v1888
      %v2277 = vpop.f32.mrb[0].mxu0
      %v2278 = vadd.f32 0.0, %v2277
      %v2279 = vpop.f32.mrb[0].mxu0
      %v2280 = vpop.f32.mrb[0].mxu0
      %v2281 = vadd.f32 0.0, %v2280
      %v2282 = vpop.f32.mrb[0].mxu0
      %2283 = vmatprep.mubr.bf16.mxu0 0
      %2284 = vmatmul.mubr.bf16.gmra.mrb[0].mxu0 %v1889
      %v2285 = vpop.f32.mrb[0].mxu0
      %v2286 = vadd.f32 0.0, %v2285
      %v2287 = vpop.f32.mrb[0].mxu0
      %v2288 = vpop.f32.mrb[0].mxu0
      %v2289 = vadd.f32 0.0, %v2288
      %v2290 = vpop.f32.mrb[0].mxu0
      %2291 = vmatprep.mubr.bf16.mxu0 0
      %2292 = vmatmul.mubr.bf16.gmra.mrb[0].mxu0 %v1890
      %v2293 = vpop.f32.mrb[0].mxu0
      %v2294 = vadd.f32 0.0, %v2293
      %v2295 = vpop.f32.mrb[0].mxu0
      %v2296 = vpop.f32.mrb[0].mxu0
      %v2297 = vadd.f32 0.0, %v2296
      %v2298 = vpop.f32.mrb[0].mxu0
      %2299 = vmatprep.mubr.bf16.mxu0 0
      %2300 = vmatmul.mubr.bf16.gmra.mrb[0].mxu0 %v1891
      %v2301 = vpop.f32.mrb[0].mxu0
      %v2302 = vadd.f32 0.0, %v2301
      %v2303 = vpop.f32.mrb[0].mxu0
      %v2304 = vpop.f32.mrb[0].mxu0
      %v2305 = vadd.f32 0.0, %v2304
      %v2306 = vpop.f32.mrb[0].mxu0
      %2307 = vmatprep.mubr.bf16.mxu0 0
      %2308 = vmatmul.mubr.bf16.gmra.mrb[0].mxu0 %v1892
      %v2309 = vpop.f32.mrb[0].mxu0
      %v2310 = vadd.f32 0.0, %v2309
      %v2311 = vpop.f32.mrb[0].mxu0
      %v2312 = vpop.f32.mrb[0].mxu0
      %v2313 = vadd.f32 0.0, %v2312
      %v2314 = vpop.f32.mrb[0].mxu0
      %2315 = vmatprep.mubr.bf16.mxu0 0
      %2316 = vmatmul.mubr.bf16.gmra.mrb[0].mxu0 %v1893
      %v2317 = vpop.f32.mrb[0].mxu0
      %v2318 = vadd.f32 0.0, %v2317
      %v2319 = vpop.f32.mrb[0].mxu0
      %v2320 = vpop.f32.mrb[0].mxu0
      %v2321 = vadd.f32 0.0, %v2320
      %v2322 = vpop.f32.mrb[0].mxu0
      %2323 = vmatprep.mubr.bf16.mxu0 0
      %2324 = vmatmul.mubr.bf16.gmra.mrb[0].mxu0 %v1894
      %v2325 = vpop.f32.mrb[0].mxu0
      %v2326 = vadd.f32 0.0, %v2325
      %v2327 = vpop.f32.mrb[0].mxu0
      %v2328 = vpop.f32.mrb[0].mxu0
      %v2329 = vadd.f32 0.0, %v2328
      %v2330 = vpop.f32.mrb[0].mxu0
      %2331 = vmatprep.mubr.bf16.mxu0 0
      %2332 = vmatmul.mubr.bf16.gmra.mrb[0].mxu0 %v1895
      %v2333 = vpop.f32.mrb[0].mxu0
      %v2334 = vadd.f32 0.0, %v2333
      %v2335 = vpop.f32.mrb[0].mxu0
      %v2336 = vpop.f32.mrb[0].mxu0
      %v2337 = vadd.f32 0.0, %v2336
      %v2338 = vpop.f32.mrb[0].mxu0
      %2339 = vmatprep.mubr.bf16.mxu0 0
      %2340 = vmatmul.mubr.bf16.gmra.mrb[0].mxu0 %v1896
      %v2341 = vpop.f32.mrb[0].mxu0
      %v2342 = vadd.f32 0.0, %v2341
      %v2343 = vpop.f32.mrb[0].mxu0
      %v2344 = vpop.f32.mrb[0].mxu0
      %v2345 = vadd.f32 0.0, %v2344
      %v2346 = vpop.f32.mrb[0].mxu0
      %2347 = vmatprep.mubr.bf16.mxu0 0
      %2348 = vmatmul.mubr.bf16.gmra.mrb[0].mxu0 %v1897
      %v2349 = vpop.f32.mrb[0].mxu0
      %v2350 = vadd.f32 0.0, %v2349
      %v2351 = vpop.f32.mrb[0].mxu0
      %v2352 = vpop.f32.mrb[0].mxu0
      %v2353 = vadd.f32 0.0, %v2352
      %v2354 = vpop.f32.mrb[0].mxu0
      %2355 = vmatprep.mubr.bf16.mxu0 0
      %2356 = vmatmul.mubr.bf16.gmra.mrb[0].mxu0 %v1898
      %v2357 = vpop.f32.mrb[0].mxu0
      %v2358 = vadd.f32 0.0, %v2357
      %v2359 = vpop.f32.mrb[0].mxu0
      %v2360 = vpop.f32.mrb[0].mxu0
      %v2361 = vadd.f32 0.0, %v2360
      %v2362 = vpop.f32.mrb[0].mxu0
      %2363 = vmatprep.mubr.bf16.mxu0 0
      %2364 = vmatmul.mubr.bf16.gmra.mrb[0].mxu0 %v1899
      %v2365 = vpop.f32.mrb[0].mxu0
      %v2366 = vadd.f32 0.0, %v2365
      %v2367 = vpop.f32.mrb[0].mxu0
      %v2368 = vpop.f32.mrb[0].mxu0
      %v2369 = vadd.f32 0.0, %v2368
      %v2370 = vpop.f32.mrb[0].mxu0
      %2371 = vmatprep.mubr.bf16.mxu0 0
      %2372 = vmatmul.mubr.bf16.gmra.mrb[0].mxu0 %v1900
      %v2373 = vpop.f32.mrb[0].mxu0
      %v2374 = vadd.f32 0.0, %v2373
      %v2375 = vpop.f32.mrb[0].mxu0
      %v2376 = vpop.f32.mrb[0].mxu0
      %v2377 = vadd.f32 0.0, %v2376
      %v2378 = vpop.f32.mrb[0].mxu0
      %2379 = vmatprep.mubr.bf16.mxu0 0
      %2380 = vmatmul.mubr.bf16.gmra.mrb[0].mxu0 %v2177
      %v2381 = vpop.f32.mrb[0].mxu0
      %v2382 = vadd.f32 0.0, %v2381
      %v2383 = vpop.f32.mrb[0].mxu0
      %v2384 = vpop.f32.mrb[0].mxu0
      %v2385 = vadd.f32 0.0, %v2384
      %v2386 = vpop.f32.mrb[0].mxu0
      %2387 = vdwg.mxu0
      %v2388 = vadd.f32 %v2126, %v2262
      %v2389 = vadd.f32 %v2127, %v2265
      %v2390 = vadd.f32 %v2128, %v2270
      %v2391 = vadd.f32 %v2129, %v2273
      %v2392 = vadd.f32 %v2130, %v2278
      %v2393 = vadd.f32 %v2131, %v2281
      %v2394 = vadd.f32 %v2132, %v2286
      %v2395 = vadd.f32 %v2133, %v2289
      %v2396 = vadd.f32 %v2134, %v2294
      %v2397 = vadd.f32 %v2135, %v2297
      %v2398 = vadd.f32 %v2136, %v2302
      %v2399 = vadd.f32 %v2137, %v2305
      %v2400 = vadd.f32 %v2138, %v2310
      %v2401 = vadd.f32 %v2139, %v2313
      %v2402 = vadd.f32 %v2140, %v2318
      %v2403 = vadd.f32 %v2141, %v2321
      %v2404 = vadd.f32 %v2142, %v2326
      %v2405 = vadd.f32 %v2143, %v2329
      %v2406 = vadd.f32 %v2144, %v2334
      %v2407 = vadd.f32 %v2145, %v2337
      %v2408 = vadd.f32 %v2146, %v2342
      %v2409 = vadd.f32 %v2147, %v2345
      %v2410 = vadd.f32 %v2148, %v2350
      %v2411 = vadd.f32 %v2149, %v2353
      %v2412 = vadd.f32 %v2150, %v2358
      %v2413 = vadd.f32 %v2151, %v2361
      %v2414 = vadd.f32 %v2152, %v2366
      %v2415 = vadd.f32 %v2153, %v2369
      %v2416 = vadd.f32 %v2154, %v2374
      %v2417 = vadd.f32 %v2155, %v2377
      %v2418 = vadd.f32 %v2156, %v2382
      %v2419 = vadd.f32 %v2157, %v2385
      %s2420 = scalar_lea.vmem %s290, 448
      %v2421 = vld [vmem:[%s2420] sm:$0xf]
      %v2422 = vld [vmem:[%s2420 + $0x4] sm:$0xf]
      %v2423 = vld [vmem:[%s2420 + $0x8] sm:$0xf]
      %v2424 = vld [vmem:[%s2420 + $0xc] sm:$0xf]
      %v2425 = vld [vmem:[%s2420 + $0x10] sm:$0xf]
      %v2426 = vld [vmem:[%s2420 + $0x14] sm:$0xf]
      %v2427 = vld [vmem:[%s2420 + $0x18] sm:$0xf]
      %v2428 = vld [vmem:[%s2420 + $0x1c] sm:$0xf]
      %v2429 = vld [vmem:[%s2420 + $0x20] sm:$0xf]
      %v2430 = vld [vmem:[%s2420 + $0x24] sm:$0xf]
      %v2431 = vld [vmem:[%s2420 + $0x28] sm:$0xf]
      %v2432 = vld [vmem:[%s2420 + $0x2c] sm:$0xf]
      %v2433 = vld [vmem:[%s2420 + $0x30] sm:$0xf]
      %v2434 = vld [vmem:[%s2420 + $0x34] sm:$0xf]
      %v2435 = vld [vmem:[%s2420 + $0x38] sm:$0xf]
      %v2436 = vld [vmem:[%s2420 + $0x3c] sm:$0xf]
      %v2437 = vunpack.c.l.b16 %v1793
      %v2438 = vunpack.c.l.b16 %v1803
      %v2439 = vpack.c.b16 %v2438, %v2437
      %v2457 = vunpack.c.l.b16 %v2421
      %v2458 = vunpack.c.l.b16 %v2422
      %v2459 = vunpack.c.l.b16 %v2423
      %v2460 = vunpack.c.l.b16 %v2424
      %v2461 = vunpack.c.l.b16 %v2425
      %v2462 = vunpack.c.l.b16 %v2426
      %v2463 = vunpack.c.l.b16 %v2427
      %v2464 = vunpack.c.l.b16 %v2428
      %v2465 = vunpack.c.l.b16 %v2429
      %v2466 = vunpack.c.l.b16 %v2430
      %v2467 = vunpack.c.l.b16 %v2431
      %v2468 = vunpack.c.l.b16 %v2432
      %v2469 = vunpack.c.l.b16 %v2433
      %v2470 = vunpack.c.l.b16 %v2434
      %v2471 = vunpack.c.l.b16 %v2435
      %v2472 = vunpack.c.l.b16 %v2436
      %v2473 = vpack.c.b16 %v2458, %v2457
      %v2474 = vpack.c.b16 %v2460, %v2459
      %v2475 = vpack.c.b16 %v2462, %v2461
      %v2476 = vpack.c.b16 %v2464, %v2463
      %v2477 = vpack.c.b16 %v2466, %v2465
      %v2478 = vpack.c.b16 %v2468, %v2467
      %v2479 = vpack.c.b16 %v2470, %v2469
      %v2480 = vpack.c.b16 %v2472, %v2471
      %2489 = vmatprep.subr.bf16.mxu0 0
      %2490 = vmatpush1.bf16.msra.mxu0 %v2473
      %2491 = vmatprep.subr.bf16.mxu0 0
      %2492 = vmatpush1.bf16.msra.mxu0 %v2474
      %2493 = vmatprep.subr.bf16.mxu0 0
      %2494 = vmatpush1.bf16.msra.mxu0 %v2475
      %2495 = vmatprep.subr.bf16.mxu0 0
      %2496 = vmatpush1.bf16.msra.mxu0 %v2476
      %2497 = vmatprep.subr.bf16.mxu0 0
      %2498 = vmatpush1.bf16.msra.mxu0 %v2477
      %2499 = vmatprep.subr.bf16.mxu0 0
      %2500 = vmatpush1.bf16.msra.mxu0 %v2478
      %2501 = vmatprep.subr.bf16.mxu0 0
      %2502 = vmatpush1.bf16.msra.mxu0 %v2479
      %2503 = vmatprep.subr.bf16.mxu0 0
      %2504 = vmatpush1.bf16.msra.mxu0 %v2480
      %2505 = vmatprep.subr.bf16.mxu0 0
      %2506 = vmatpush1.bf16.msra.mxu0 0
      %2507 = vmatprep.subr.bf16.mxu0 0
      %2508 = vmatpush1.bf16.msra.mxu0 0
      %2509 = vmatprep.subr.bf16.mxu0 0
      %2510 = vmatpush1.bf16.msra.mxu0 0
      %2511 = vmatprep.subr.bf16.mxu0 0
      %2512 = vmatpush1.bf16.msra.mxu0 0
      %2513 = vmatprep.subr.bf16.mxu0 0
      %2514 = vmatpush1.bf16.msra.mxu0 0
      %2515 = vmatprep.subr.bf16.mxu0 0
      %2516 = vmatpush1.bf16.msra.mxu0 0
      %2517 = vmatprep.subr.bf16.mxu0 0
      %2518 = vmatpush1.bf16.msra.mxu0 0
      %2519 = vmatprep.subr.bf16.mxu0 0
      %2520 = vmatpush1.bf16.msra.mxu0 0
      %2521 = vmatprep.mubr.bf16.mxu0 0
      %2522 = vmatmul.mubr.bf16.gmra.mrb[0].mxu0 %v1887
      %v2523 = vpop.f32.mrb[0].mxu0
      %v2524 = vadd.f32 0.0, %v2523
      %v2525 = vpop.f32.mrb[0].mxu0
      %v2526 = vpop.f32.mrb[0].mxu0
      %v2527 = vadd.f32 0.0, %v2526
      %v2528 = vpop.f32.mrb[0].mxu0
      %2529 = vmatprep.mubr.bf16.mxu0 0
      %2530 = vmatmul.mubr.bf16.gmra.mrb[0].mxu0 %v1888
      %v2531 = vpop.f32.mrb[0].mxu0
      %v2532 = vadd.f32 0.0, %v2531
      %v2533 = vpop.f32.mrb[0].mxu0
      %v2534 = vpop.f32.mrb[0].mxu0
      %v2535 = vadd.f32 0.0, %v2534
      %v2536 = vpop.f32.mrb[0].mxu0
      %2537 = vmatprep.mubr.bf16.mxu0 0
      %2538 = vmatmul.mubr.bf16.gmra.mrb[0].mxu0 %v1889
      %v2539 = vpop.f32.mrb[0].mxu0
      %v2540 = vadd.f32 0.0, %v2539
      %v2541 = vpop.f32.mrb[0].mxu0
      %v2542 = vpop.f32.mrb[0].mxu0
      %v2543 = vadd.f32 0.0, %v2542
      %v2544 = vpop.f32.mrb[0].mxu0
      %2545 = vmatprep.mubr.bf16.mxu0 0
      %2546 = vmatmul.mubr.bf16.gmra.mrb[0].mxu0 %v1890
      %v2547 = vpop.f32.mrb[0].mxu0
      %v2548 = vadd.f32 0.0, %v2547
      %v2549 = vpop.f32.mrb[0].mxu0
      %v2550 = vpop.f32.mrb[0].mxu0
      %v2551 = vadd.f32 0.0, %v2550
      %v2552 = vpop.f32.mrb[0].mxu0
      %2553 = vmatprep.mubr.bf16.mxu0 0
      %2554 = vmatmul.mubr.bf16.gmra.mrb[0].mxu0 %v1891
      %v2555 = vpop.f32.mrb[0].mxu0
      %v2556 = vadd.f32 0.0, %v2555
      %v2557 = vpop.f32.mrb[0].mxu0
      %v2558 = vpop.f32.mrb[0].mxu0
      %v2559 = vadd.f32 0.0, %v2558
      %v2560 = vpop.f32.mrb[0].mxu0
      %2561 = vmatprep.mubr.bf16.mxu0 0
      %2562 = vmatmul.mubr.bf16.gmra.mrb[0].mxu0 %v1892
      %v2563 = vpop.f32.mrb[0].mxu0
      %v2564 = vadd.f32 0.0, %v2563
      %v2565 = vpop.f32.mrb[0].mxu0
      %v2566 = vpop.f32.mrb[0].mxu0
      %v2567 = vadd.f32 0.0, %v2566
      %v2568 = vpop.f32.mrb[0].mxu0
      %2569 = vmatprep.mubr.bf16.mxu0 0
      %2570 = vmatmul.mubr.bf16.gmra.mrb[0].mxu0 %v1893
      %v2571 = vpop.f32.mrb[0].mxu0
      %v2572 = vadd.f32 0.0, %v2571
      %v2573 = vpop.f32.mrb[0].mxu0
      %v2574 = vpop.f32.mrb[0].mxu0
      %v2575 = vadd.f32 0.0, %v2574
      %v2576 = vpop.f32.mrb[0].mxu0
      %2577 = vmatprep.mubr.bf16.mxu0 0
      %2578 = vmatmul.mubr.bf16.gmra.mrb[0].mxu0 %v1894
      %v2579 = vpop.f32.mrb[0].mxu0
      %v2580 = vadd.f32 0.0, %v2579
      %v2581 = vpop.f32.mrb[0].mxu0
      %v2582 = vpop.f32.mrb[0].mxu0
      %v2583 = vadd.f32 0.0, %v2582
      %v2584 = vpop.f32.mrb[0].mxu0
      %2585 = vmatprep.mubr.bf16.mxu0 0
      %2586 = vmatmul.mubr.bf16.gmra.mrb[0].mxu0 %v1895
      %v2587 = vpop.f32.mrb[0].mxu0
      %v2588 = vadd.f32 0.0, %v2587
      %v2589 = vpop.f32.mrb[0].mxu0
      %v2590 = vpop.f32.mrb[0].mxu0
      %v2591 = vadd.f32 0.0, %v2590
      %v2592 = vpop.f32.mrb[0].mxu0
      %2593 = vmatprep.mubr.bf16.mxu0 0
      %2594 = vmatmul.mubr.bf16.gmra.mrb[0].mxu0 %v1896
      %v2595 = vpop.f32.mrb[0].mxu0
      %v2596 = vadd.f32 0.0, %v2595
      %v2597 = vpop.f32.mrb[0].mxu0
      %v2598 = vpop.f32.mrb[0].mxu0
      %v2599 = vadd.f32 0.0, %v2598
      %v2600 = vpop.f32.mrb[0].mxu0
      %2601 = vmatprep.mubr.bf16.mxu0 0
      %2602 = vmatmul.mubr.bf16.gmra.mrb[0].mxu0 %v1897
      %v2603 = vpop.f32.mrb[0].mxu0
      %v2604 = vadd.f32 0.0, %v2603
      %v2605 = vpop.f32.mrb[0].mxu0
      %v2606 = vpop.f32.mrb[0].mxu0
      %v2607 = vadd.f32 0.0, %v2606
      %v2608 = vpop.f32.mrb[0].mxu0
      %2609 = vmatprep.mubr.bf16.mxu0 0
      %2610 = vmatmul.mubr.bf16.gmra.mrb[0].mxu0 %v1898
      %v2611 = vpop.f32.mrb[0].mxu0
      %v2612 = vadd.f32 0.0, %v2611
      %v2613 = vpop.f32.mrb[0].mxu0
      %v2614 = vpop.f32.mrb[0].mxu0
      %v2615 = vadd.f32 0.0, %v2614
      %v2616 = vpop.f32.mrb[0].mxu0
      %2617 = vmatprep.mubr.bf16.mxu0 0
      %2618 = vmatmul.mubr.bf16.gmra.mrb[0].mxu0 %v1899
      %v2619 = vpop.f32.mrb[0].mxu0
      %v2620 = vadd.f32 0.0, %v2619
      %v2621 = vpop.f32.mrb[0].mxu0
      %v2622 = vpop.f32.mrb[0].mxu0
      %v2623 = vadd.f32 0.0, %v2622
      %v2624 = vpop.f32.mrb[0].mxu0
      %2625 = vmatprep.mubr.bf16.mxu0 0
      %2626 = vmatmul.mubr.bf16.gmra.mrb[0].mxu0 %v1900
      %v2627 = vpop.f32.mrb[0].mxu0
      %v2628 = vadd.f32 0.0, %v2627
      %v2629 = vpop.f32.mrb[0].mxu0
      %v2630 = vpop.f32.mrb[0].mxu0
      %v2631 = vadd.f32 0.0, %v2630
      %v2632 = vpop.f32.mrb[0].mxu0
      %2633 = vmatprep.mubr.bf16.mxu0 0
      %2634 = vmatmul.mubr.bf16.gmra.mrb[0].mxu0 %v2177
      %v2635 = vpop.f32.mrb[0].mxu0
      %v2636 = vadd.f32 0.0, %v2635
      %v2637 = vpop.f32.mrb[0].mxu0
      %v2638 = vpop.f32.mrb[0].mxu0
      %v2639 = vadd.f32 0.0, %v2638
      %v2640 = vpop.f32.mrb[0].mxu0
      %2641 = vmatprep.mubr.bf16.mxu0 0
      %2642 = vmatmul.mubr.bf16.gmra.mrb[0].mxu0 %v2439
      %v2643 = vpop.f32.mrb[0].mxu0
      %v2644 = vadd.f32 0.0, %v2643
      %v2645 = vpop.f32.mrb[0].mxu0
      %v2646 = vpop.f32.mrb[0].mxu0
      %v2647 = vadd.f32 0.0, %v2646
      %v2648 = vpop.f32.mrb[0].mxu0
      %2649 = vdwg.mxu0
      %v2650 = vadd.f32 %v2388, %v2524
      %v2651 = vadd.f32 %v2389, %v2527
      %v2652 = vadd.f32 %v2390, %v2532
      %v2653 = vadd.f32 %v2391, %v2535
      %v2654 = vadd.f32 %v2392, %v2540
      %v2655 = vadd.f32 %v2393, %v2543
      %v2656 = vadd.f32 %v2394, %v2548
      %v2657 = vadd.f32 %v2395, %v2551
      %v2658 = vadd.f32 %v2396, %v2556
      %v2659 = vadd.f32 %v2397, %v2559
      %v2660 = vadd.f32 %v2398, %v2564
      %v2661 = vadd.f32 %v2399, %v2567
      %v2662 = vadd.f32 %v2400, %v2572
      %v2663 = vadd.f32 %v2401, %v2575
      %v2664 = vadd.f32 %v2402, %v2580
      %v2665 = vadd.f32 %v2403, %v2583
      %v2666 = vadd.f32 %v2404, %v2588
      %v2667 = vadd.f32 %v2405, %v2591
      %v2668 = vadd.f32 %v2406, %v2596
      %v2669 = vadd.f32 %v2407, %v2599
      %v2670 = vadd.f32 %v2408, %v2604
      %v2671 = vadd.f32 %v2409, %v2607
      %v2672 = vadd.f32 %v2410, %v2612
      %v2673 = vadd.f32 %v2411, %v2615
      %v2674 = vadd.f32 %v2412, %v2620
      %v2675 = vadd.f32 %v2413, %v2623
      %v2676 = vadd.f32 %v2414, %v2628
      %v2677 = vadd.f32 %v2415, %v2631
      %v2678 = vadd.f32 %v2416, %v2636
      %v2679 = vadd.f32 %v2417, %v2639
      %v2680 = vadd.f32 %v2418, %v2644
      %v2681 = vadd.f32 %v2419, %v2647
      %2682 = vst [vmem:[#allocation2] sm:$0xff] %v2650
      %2683 = vst [vmem:[#allocation2 + $0x8] sm:$0xff] %v2651
      %2684 = vst [vmem:[#allocation2 + $0x10] sm:$0xff] %v2652
      %2685 = vst [vmem:[#allocation2 + $0x18] sm:$0xff] %v2653
      %2686 = vst [vmem:[#allocation2 + $0x20] sm:$0xff] %v2654
      %2687 = vst [vmem:[#allocation2 + $0x28] sm:$0xff] %v2655
      %2688 = vst [vmem:[#allocation2 + $0x30] sm:$0xff] %v2656
      %2689 = vst [vmem:[#allocation2 + $0x38] sm:$0xff] %v2657
      %2690 = vst [vmem:[#allocation2 + $0x40] sm:$0xff] %v2658
      %2691 = vst [vmem:[#allocation2 + $0x48] sm:$0xff] %v2659
      %2692 = vst [vmem:[#allocation2 + $0x50] sm:$0xff] %v2660
      %2693 = vst [vmem:[#allocation2 + $0x58] sm:$0xff] %v2661
      %2694 = vst [vmem:[#allocation2 + $0x60] sm:$0xff] %v2662
      %2695 = vst [vmem:[#allocation2 + $0x68] sm:$0xff] %v2663
      %2696 = vst [vmem:[#allocation2 + $0x70] sm:$0xff] %v2664
      %2697 = vst [vmem:[#allocation2 + $0x78] sm:$0xff] %v2665
      %2698 = vst [vmem:[#allocation2 + $0x80] sm:$0xff] %v2666
      %2699 = vst [vmem:[#allocation2 + $0x88] sm:$0xff] %v2667
      %2700 = vst [vmem:[#allocation2 + $0x90] sm:$0xff] %v2668
      %2701 = vst [vmem:[#allocation2 + $0x98] sm:$0xff] %v2669
      %2702 = vst [vmem:[#allocation2 + $0xa0] sm:$0xff] %v2670
      %2703 = vst [vmem:[#allocation2 + $0xa8] sm:$0xff] %v2671
      %2704 = vst [vmem:[#allocation2 + $0xb0] sm:$0xff] %v2672
      %2705 = vst [vmem:[#allocation2 + $0xb8] sm:$0xff] %v2673
      %2706 = vst [vmem:[#allocation2 + $0xc0] sm:$0xff] %v2674
      %2707 = vst [vmem:[#allocation2 + $0xc8] sm:$0xff] %v2675
      %2708 = vst [vmem:[#allocation2 + $0xd0] sm:$0xff] %v2676
      %2709 = vst [vmem:[#allocation2 + $0xd8] sm:$0xff] %v2677
      %2710 = vst [vmem:[#allocation2 + $0xe0] sm:$0xff] %v2678
      %2711 = vst [vmem:[#allocation2 + $0xe8] sm:$0xff] %v2679
      %2712 = vst [vmem:[#allocation2 + $0xf0] sm:$0xff] %v2680
      %2713 = vst [vmem:[#allocation2 + $0xf8] sm:$0xff] %v2681
      %v2714 = vld [vmem:[%s285] sm:$0xe]
      %v2715 = vld [vmem:[%s285 + $0x4] sm:$0xf]
      %v2716 = vld [vmem:[%s285 + $0x8] sm:$0x1]
      %v2717 = vld [vmem:[%s285 + $0xc] sm:$0xe]
      %v2718 = vld [vmem:[%s285 + $0x10] sm:$0xf]
      %v2719 = vld [vmem:[%s285 + $0x14] sm:$0x1]
      %v2720 = vld [vmem:[%s285 + $0x18] sm:$0xe]
      %v2721 = vld [vmem:[%s285 + $0x1c] sm:$0xf]
      %v2722 = vld [vmem:[%s285 + $0x20] sm:$0x1]
      %v2723 = vld [vmem:[%s285 + $0x24] sm:$0xe]
      %v2724 = vld [vmem:[%s285 + $0x28] sm:$0xf]
      %v2725 = vld [vmem:[%s285 + $0x2c] sm:$0x1]
      %v2726 = vld [vmem:[%s285 + $0x30] sm:$0xe]
      %v2727 = vld [vmem:[%s285 + $0x34] sm:$0xf]
      %v2728 = vld [vmem:[%s285 + $0x38] sm:$0x1]
      %v2729 = vld [vmem:[%s285 + $0x3c] sm:$0xe]
      %v2730 = vld [vmem:[%s285 + $0x40] sm:$0xf]
      %v2731 = vld [vmem:[%s285 + $0x44] sm:$0x1]
      %v2732 = vld [vmem:[%s285 + $0x48] sm:$0xe]
      %v2733 = vld [vmem:[%s285 + $0x4c] sm:$0xf]
      %v2734 = vld [vmem:[%s285 + $0x50] sm:$0x1]
      %v2735 = vld [vmem:[%s285 + $0x54] sm:$0xe]
      %v2736 = vld [vmem:[%s285 + $0x58] sm:$0xf]
      %v2737 = vld [vmem:[%s285 + $0x5c] sm:$0x1]
      %v2738 = vld [vmem:[%s285 + $0x60] sm:$0xe]
      %v2739 = vld [vmem:[%s285 + $0x64] sm:$0xf]
      %v2740 = vld [vmem:[%s285 + $0x68] sm:$0x1]
      %v2741 = vld [vmem:[%s285 + $0x6c] sm:$0xe]
      %v2742 = vld [vmem:[%s285 + $0x70] sm:$0xf]
      %v2743 = vld [vmem:[%s285 + $0x74] sm:$0x1]
      %v2744 = vld [vmem:[%s285 + $0x78] sm:$0xe]
      %v2745 = vld [vmem:[%s285 + $0x7c] sm:$0xf]
      %v2746 = vld [vmem:[%s285 + $0x80] sm:$0x1]
      %v2747 = vld [vmem:[%s285 + $0x84] sm:$0xe]
      %v2748 = vld [vmem:[%s285 + $0x88] sm:$0xf]
      %v2749 = vld [vmem:[%s285 + $0x8c] sm:$0x1]
      %v2750 = vld [vmem:[%s285 + $0x90] sm:$0xe]
      %v2751 = vld [vmem:[%s285 + $0x94] sm:$0xf]
      %v2752 = vld [vmem:[%s285 + $0x98] sm:$0x1]
      %v2753 = vld [vmem:[%s285 + $0x9c] sm:$0xe]
      %v2754 = vld [vmem:[%s285 + $0xa0] sm:$0xf]
      %v2755 = vld [vmem:[%s285 + $0xa4] sm:$0x1]
      %v2756 = vld [vmem:[%s285 + $0xa8] sm:$0xe]
      %v2757 = vld [vmem:[%s285 + $0xac] sm:$0xf]
      %v2758 = vld [vmem:[%s285 + $0xb0] sm:$0x1]
      %v2759 = vld [vmem:[%s285 + $0xb4] sm:$0xe]
      %v2760 = vld [vmem:[%s285 + $0xb8] sm:$0xf]
      %v2761 = vld [vmem:[%s285 + $0xbc] sm:$0x1]
      %v2762 = vld [vmem:[%s285 + $0xc0] sm:$0xe]
      %v2763 = vld [vmem:[%s285 + $0xc4] sm:$0xf]
      %v2764 = vld [vmem:[%s285 + $0xc8] sm:$0x1]
      %v2765 = vld [vmem:[%s285 + $0xcc] sm:$0xe]
      %v2766 = vld [vmem:[%s285 + $0xd0] sm:$0xf]
      %v2767 = vld [vmem:[%s285 + $0xd4] sm:$0x1]
      %vm2822 = vcmask 1042432
      %vm2823 = vcmask 1046532
      %vm2824 = vmor %vm2822, %vm2823
      %v2825 = vrot.slane %v2714, 5
      %v2826 = vrot.slane %v2825, 4
      %v2827 = vrot.slane %v2715, 5
      %v2828 = vsel %vm2824, %v2826, %v2827
      %v2829 = vrot.slane %v2827, 4
      %v2830 = vrot.slane %v2716, 5
      %v2831 = vsel %vm2824, %v2829, %v2830
      %v2832 = vrot.slane %v2717, 5
      %v2833 = vrot.slane %v2832, 4
      %v2834 = vrot.slane %v2718, 5
      %v2835 = vsel %vm2824, %v2833, %v2834
      %v2836 = vrot.slane %v2834, 4
      %v2837 = vrot.slane %v2719, 5
      %v2838 = vsel %vm2824, %v2836, %v2837
      %v2839 = vrot.slane %v2720, 5
      %v2840 = vrot.slane %v2839, 4
      %v2841 = vrot.slane %v2721, 5
      %v2842 = vsel %vm2824, %v2840, %v2841
      %v2843 = vrot.slane %v2841, 4
      %v2844 = vrot.slane %v2722, 5
      %v2845 = vsel %vm2824, %v2843, %v2844
      %v2846 = vrot.slane %v2723, 5
      %v2847 = vrot.slane %v2846, 4
      %v2848 = vrot.slane %v2724, 5
      %v2849 = vsel %vm2824, %v2847, %v2848
      %v2850 = vrot.slane %v2848, 4
      %v2851 = vrot.slane %v2725, 5
      %v2852 = vsel %vm2824, %v2850, %v2851
      %v2853 = vrot.slane %v2726, 5
      %v2854 = vrot.slane %v2853, 4
      %v2855 = vrot.slane %v2727, 5
      %v2856 = vsel %vm2824, %v2854, %v2855
      %v2857 = vrot.slane %v2855, 4
      %v2858 = vrot.slane %v2728, 5
      %v2859 = vsel %vm2824, %v2857, %v2858
      %v2860 = vrot.slane %v2729, 5
      %v2861 = vrot.slane %v2860, 4
      %v2862 = vrot.slane %v2730, 5
      %v2863 = vsel %vm2824, %v2861, %v2862
      %v2864 = vrot.slane %v2862, 4
      %v2865 = vrot.slane %v2731, 5
      %v2866 = vsel %vm2824, %v2864, %v2865
      %v2867 = vrot.slane %v2732, 5
      %v2868 = vrot.slane %v2867, 4
      %v2869 = vrot.slane %v2733, 5
      %v2870 = vsel %vm2824, %v2868, %v2869
      %v2871 = vrot.slane %v2869, 4
      %v2872 = vrot.slane %v2734, 5
      %v2873 = vsel %vm2824, %v2871, %v2872
      %v2874 = vrot.slane %v2735, 5
      %v2875 = vrot.slane %v2874, 4
      %v2876 = vrot.slane %v2736, 5
      %v2877 = vsel %vm2824, %v2875, %v2876
      %v2878 = vrot.slane %v2876, 4
      %v2879 = vrot.slane %v2737, 5
      %v2880 = vsel %vm2824, %v2878, %v2879
      %v2881 = vrot.slane %v2738, 5
      %v2882 = vrot.slane %v2881, 4
      %v2883 = vrot.slane %v2739, 5
      %v2884 = vsel %vm2824, %v2882, %v2883
      %v2885 = vrot.slane %v2883, 4
      %v2886 = vrot.slane %v2740, 5
      %v2887 = vsel %vm2824, %v2885, %v2886
      %v2888 = vrot.slane %v2741, 5
      %v2889 = vrot.slane %v2888, 4
      %v2890 = vrot.slane %v2742, 5
      %v2891 = vsel %vm2824, %v2889, %v2890
      %v2892 = vrot.slane %v2890, 4
      %v2893 = vrot.slane %v2743, 5
      %v2894 = vsel %vm2824, %v2892, %v2893
      %v2895 = vrot.slane %v2744, 5
      %v2896 = vrot.slane %v2895, 4
      %v2897 = vrot.slane %v2745, 5
      %v2898 = vsel %vm2824, %v2896, %v2897
      %v2899 = vrot.slane %v2897, 4
      %v2900 = vrot.slane %v2746, 5
      %v2901 = vsel %vm2824, %v2899, %v2900
      %v2902 = vrot.slane %v2747, 5
      %v2903 = vrot.slane %v2902, 4
      %v2904 = vrot.slane %v2748, 5
      %v2905 = vsel %vm2824, %v2903, %v2904
      %v2906 = vrot.slane %v2904, 4
      %v2907 = vrot.slane %v2749, 5
      %v2908 = vsel %vm2824, %v2906, %v2907
      %v2909 = vrot.slane %v2750, 5
      %v2910 = vrot.slane %v2909, 4
      %v2911 = vrot.slane %v2751, 5
      %v2912 = vsel %vm2824, %v2910, %v2911
      %v2913 = vrot.slane %v2911, 4
      %v2914 = vrot.slane %v2752, 5
      %v2915 = vsel %vm2824, %v2913, %v2914
      %v2916 = vrot.slane %v2753, 5
      %v2917 = vrot.slane %v2916, 4
      %v2918 = vrot.slane %v2754, 5
      %v2919 = vsel %vm2824, %v2917, %v2918
      %v2920 = vrot.slane %v2918, 4
      %v2921 = vrot.slane %v2755, 5
      %v2922 = vsel %vm2824, %v2920, %v2921
      %v2923 = vrot.slane %v2756, 5
      %v2924 = vrot.slane %v2923, 4
      %v2925 = vrot.slane %v2757, 5
      %v2926 = vsel %vm2824, %v2924, %v2925
      %v2927 = vrot.slane %v2925, 4
      %v2928 = vrot.slane %v2758, 5
      %v2929 = vsel %vm2824, %v2927, %v2928
      %v2930 = vrot.slane %v2759, 5
      %v2931 = vrot.slane %v2930, 4
      %v2932 = vrot.slane %v2760, 5
      %v2933 = vsel %vm2824, %v2931, %v2932
      %v2934 = vrot.slane %v2932, 4
      %v2935 = vrot.slane %v2761, 5
      %v2936 = vsel %vm2824, %v2934, %v2935
      %v2937 = vrot.slane %v2762, 5
      %v2938 = vrot.slane %v2937, 4
      %v2939 = vrot.slane %v2763, 5
      %v2940 = vsel %vm2824, %v2938, %v2939
      %v2941 = vrot.slane %v2939, 4
      %v2942 = vrot.slane %v2764, 5
      %v2943 = vsel %vm2824, %v2941, %v2942
      %v2944 = vrot.slane %v2765, 5
      %v2945 = vrot.slane %v2944, 4
      %v2946 = vrot.slane %v2766, 5
      %v2947 = vsel %vm2824, %v2945, %v2946
      %v2948 = vrot.slane %v2946, 4
      %v2949 = vrot.slane %v2767, 5
      %v2950 = vsel %vm2824, %v2948, %v2949
      %v2951 = vld [vmem:[#allocation2] sm:$0xff]
      %v2952 = vld [vmem:[#allocation2 + $0x8] sm:$0xff]
      %v2953 = vld [vmem:[#allocation2 + $0x10] sm:$0xff]
      %v2954 = vld [vmem:[#allocation2 + $0x18] sm:$0xff]
      %v2955 = vld [vmem:[#allocation2 + $0x20] sm:$0xff]
      %v2956 = vld [vmem:[#allocation2 + $0x28] sm:$0xff]
      %v2957 = vld [vmem:[#allocation2 + $0x30] sm:$0xff]
      %v2958 = vld [vmem:[#allocation2 + $0x38] sm:$0xff]
      %v2959 = vld [vmem:[#allocation2 + $0x40] sm:$0xff]
      %v2960 = vld [vmem:[#allocation2 + $0x48] sm:$0xff]
      %v2961 = vld [vmem:[#allocation2 + $0x50] sm:$0xff]
      %v2962 = vld [vmem:[#allocation2 + $0x58] sm:$0xff]
      %v2963 = vld [vmem:[#allocation2 + $0x60] sm:$0xff]
      %v2964 = vld [vmem:[#allocation2 + $0x68] sm:$0xff]
      %v2965 = vld [vmem:[#allocation2 + $0x70] sm:$0xff]
      %v2966 = vld [vmem:[#allocation2 + $0x78] sm:$0xff]
      %v2967 = vld [vmem:[#allocation2 + $0x80] sm:$0xff]
      %v2968 = vld [vmem:[#allocation2 + $0x88] sm:$0xff]
      %v2969 = vld [vmem:[#allocation2 + $0x90] sm:$0xff]
      %v2970 = vld [vmem:[#allocation2 + $0x98] sm:$0xff]
      %v2971 = vld [vmem:[#allocation2 + $0xa0] sm:$0xff]
      %v2972 = vld [vmem:[#allocation2 + $0xa8] sm:$0xff]
      %v2973 = vld [vmem:[#allocation2 + $0xb0] sm:$0xff]
      %v2974 = vld [vmem:[#allocation2 + $0xb8] sm:$0xff]
      %v2975 = vld [vmem:[#allocation2 + $0xc0] sm:$0xff]
      %v2976 = vld [vmem:[#allocation2 + $0xc8] sm:$0xff]
      %v2977 = vld [vmem:[#allocation2 + $0xd0] sm:$0xff]
      %v2978 = vld [vmem:[#allocation2 + $0xd8] sm:$0xff]
      %v2979 = vld [vmem:[#allocation2 + $0xe0] sm:$0xff]
      %v2980 = vld [vmem:[#allocation2 + $0xe8] sm:$0xff]
      %v2981 = vld [vmem:[#allocation2 + $0xf0] sm:$0xff]
      %v2982 = vld [vmem:[#allocation2 + $0xf8] sm:$0xff]
      %s2983 = scalar_lea.vmem %s290, 128
      %v2984 = vld [vmem:[%s2983] sm:$0xf]
      %v2985 = vld [vmem:[%s2983 + $0x4] sm:$0xf]
      %v2986 = vld [vmem:[%s2983 + $0x8] sm:$0xf]
      %v2987 = vld [vmem:[%s2983 + $0xc] sm:$0xf]
      %v2988 = vld [vmem:[%s2983 + $0x10] sm:$0xf]
      %v2989 = vld [vmem:[%s2983 + $0x14] sm:$0xf]
      %v2990 = vld [vmem:[%s2983 + $0x18] sm:$0xf]
      %v2991 = vld [vmem:[%s2983 + $0x1c] sm:$0xf]
      %v2992 = vld [vmem:[%s2983 + $0x20] sm:$0xf]
      %v2993 = vld [vmem:[%s2983 + $0x24] sm:$0xf]
      %v2994 = vld [vmem:[%s2983 + $0x28] sm:$0xf]
      %v2995 = vld [vmem:[%s2983 + $0x2c] sm:$0xf]
      %v2996 = vld [vmem:[%s2983 + $0x30] sm:$0xf]
      %v2997 = vld [vmem:[%s2983 + $0x34] sm:$0xf]
      %v2998 = vld [vmem:[%s2983 + $0x38] sm:$0xf]
      %v2999 = vld [vmem:[%s2983 + $0x3c] sm:$0xf]
      %v3000 = vunpack.c.l.b16 %v2828
      %v3001 = vunpack.c.l.b16 %v2831
      %v3002 = vunpack.c.l.b16 %v2835
      %v3003 = vunpack.c.l.b16 %v2838
      %v3004 = vunpack.c.l.b16 %v2842
      %v3005 = vunpack.c.l.b16 %v2845
      %v3006 = vunpack.c.l.b16 %v2849
      %v3007 = vunpack.c.l.b16 %v2852
      %v3008 = vunpack.c.l.b16 %v2856
      %v3009 = vunpack.c.l.b16 %v2859
      %v3010 = vunpack.c.l.b16 %v2863
      %v3011 = vunpack.c.l.b16 %v2866
      %v3012 = vunpack.c.l.b16 %v2870
      %v3013 = vunpack.c.l.b16 %v2873
      %v3014 = vunpack.c.l.b16 %v2877
      %v3015 = vunpack.c.l.b16 %v2880
      %v3016 = vunpack.c.l.b16 %v2884
      %v3017 = vunpack.c.l.b16 %v2887
      %v3018 = vunpack.c.l.b16 %v2891
      %v3019 = vunpack.c.l.b16 %v2894
      %v3020 = vunpack.c.l.b16 %v2898
      %v3021 = vunpack.c.l.b16 %v2901
      %v3022 = vunpack.c.l.b16 %v2905
      %v3023 = vunpack.c.l.b16 %v2908
      %v3024 = vunpack.c.l.b16 %v2912
      %v3025 = vunpack.c.l.b16 %v2915
      %v3026 = vunpack.c.l.b16 %v2919
      %v3027 = vunpack.c.l.b16 %v2922
      %v3028 = vunpack.c.l.b16 %v2926
      %v3029 = vunpack.c.l.b16 %v2929
      %v3030 = vunpack.c.l.b16 %v2933
      %v3031 = vunpack.c.l.b16 %v2936
      %v3032 = vpack.c.b16 %v3001, %v3000
      %v3033 = vpack.c.b16 %v3003, %v3002
      %v3034 = vpack.c.b16 %v3005, %v3004
      %v3035 = vpack.c.b16 %v3007, %v3006
      %v3036 = vpack.c.b16 %v3009, %v3008
      %v3037 = vpack.c.b16 %v3011, %v3010
      %v3038 = vpack.c.b16 %v3013, %v3012
      %v3039 = vpack.c.b16 %v3015, %v3014
      %v3040 = vpack.c.b16 %v3017, %v3016
      %v3041 = vpack.c.b16 %v3019, %v3018
      %v3042 = vpack.c.b16 %v3021, %v3020
      %v3043 = vpack.c.b16 %v3023, %v3022
      %v3044 = vpack.c.b16 %v3025, %v3024
      %v3045 = vpack.c.b16 %v3027, %v3026
      %v3046 = vpack.c.b16 %v3029, %v3028
      %v3047 = vpack.c.b16 %v3031, %v3030
      %v3080 = vunpack.c.l.b16 %v2984
      %v3081 = vunpack.c.l.b16 %v2985
      %v3082 = vunpack.c.l.b16 %v2986
      %v3083 = vunpack.c.l.b16 %v2987
      %v3084 = vunpack.c.l.b16 %v2988
      %v3085 = vunpack.c.l.b16 %v2989
      %v3086 = vunpack.c.l.b16 %v2990
      %v3087 = vunpack.c.l.b16 %v2991
      %v3088 = vunpack.c.l.b16 %v2992
      %v3089 = vunpack.c.l.b16 %v2993
      %v3090 = vunpack.c.l.b16 %v2994
      %v3091 = vunpack.c.l.b16 %v2995
      %v3092 = vunpack.c.l.b16 %v2996
      %v3093 = vunpack.c.l.b16 %v2997
      %v3094 = vunpack.c.l.b16 %v2998
      %v3095 = vunpack.c.l.b16 %v2999
      %v3096 = vpack.c.b16 %v3081, %v3080
      %v3097 = vpack.c.b16 %v3083, %v3082
      %v3098 = vpack.c.b16 %v3085, %v3084
      %v3099 = vpack.c.b16 %v3087, %v3086
      %v3100 = vpack.c.b16 %v3089, %v3088
      %v3101 = vpack.c.b16 %v3091, %v3090
      %v3102 = vpack.c.b16 %v3093, %v3092
      %v3103 = vpack.c.b16 %v3095, %v3094
      %3112 = vmatprep.subr.bf16.mxu0 0
      %3113 = vmatpush1.bf16.msra.mxu0 %v3096
      %3114 = vmatprep.subr.bf16.mxu0 0
      %3115 = vmatpush1.bf16.msra.mxu0 %v3097
      %3116 = vmatprep.subr.bf16.mxu0 0
      %3117 = vmatpush1.bf16.msra.mxu0 %v3098
      %3118 = vmatprep.subr.bf16.mxu0 0
      %3119 = vmatpush1.bf16.msra.mxu0 %v3099
      %3120 = vmatprep.subr.bf16.mxu0 0
      %3121 = vmatpush1.bf16.msra.mxu0 %v3100
      %3122 = vmatprep.subr.bf16.mxu0 0
      %3123 = vmatpush1.bf16.msra.mxu0 %v3101
      %3124 = vmatprep.subr.bf16.mxu0 0
      %3125 = vmatpush1.bf16.msra.mxu0 %v3102
      %3126 = vmatprep.subr.bf16.mxu0 0
      %3127 = vmatpush1.bf16.msra.mxu0 %v3103
      %3128 = vmatprep.subr.bf16.mxu0 0
      %3129 = vmatpush1.bf16.msra.mxu0 0
      %3130 = vmatprep.subr.bf16.mxu0 0
      %3131 = vmatpush1.bf16.msra.mxu0 0
      %3132 = vmatprep.subr.bf16.mxu0 0
      %3133 = vmatpush1.bf16.msra.mxu0 0
      %3134 = vmatprep.subr.bf16.mxu0 0
      %3135 = vmatpush1.bf16.msra.mxu0 0
      %3136 = vmatprep.subr.bf16.mxu0 0
      %3137 = vmatpush1.bf16.msra.mxu0 0
      %3138 = vmatprep.subr.bf16.mxu0 0
      %3139 = vmatpush1.bf16.msra.mxu0 0
      %3140 = vmatprep.subr.bf16.mxu0 0
      %3141 = vmatpush1.bf16.msra.mxu0 0
      %3142 = vmatprep.subr.bf16.mxu0 0
      %3143 = vmatpush1.bf16.msra.mxu0 0
      %3144 = vmatprep.mubr.bf16.mxu0 0
      %3145 = vmatmul.mubr.bf16.gmra.mrb[0].mxu0 %v3032
      %v3146 = vpop.f32.mrb[0].mxu0
      %v3147 = vadd.f32 0.0, %v3146
      %v3148 = vpop.f32.mrb[0].mxu0
      %v3149 = vpop.f32.mrb[0].mxu0
      %v3150 = vadd.f32 0.0, %v3149
      %v3151 = vpop.f32.mrb[0].mxu0
      %3152 = vmatprep.mubr.bf16.mxu0 0
      %3153 = vmatmul.mubr.bf16.gmra.mrb[0].mxu0 %v3033
      %v3154 = vpop.f32.mrb[0].mxu0
      %v3155 = vadd.f32 0.0, %v3154
      %v3156 = vpop.f32.mrb[0].mxu0
      %v3157 = vpop.f32.mrb[0].mxu0
      %v3158 = vadd.f32 0.0, %v3157
      %v3159 = vpop.f32.mrb[0].mxu0
      %3160 = vmatprep.mubr.bf16.mxu0 0
      %3161 = vmatmul.mubr.bf16.gmra.mrb[0].mxu0 %v3034
      %v3162 = vpop.f32.mrb[0].mxu0
      %v3163 = vadd.f32 0.0, %v3162
      %v3164 = vpop.f32.mrb[0].mxu0
      %v3165 = vpop.f32.mrb[0].mxu0
      %v3166 = vadd.f32 0.0, %v3165
      %v3167 = vpop.f32.mrb[0].mxu0
      %3168 = vmatprep.mubr.bf16.mxu0 0
      %3169 = vmatmul.mubr.bf16.gmra.mrb[0].mxu0 %v3035
      %v3170 = vpop.f32.mrb[0].mxu0
      %v3171 = vadd.f32 0.0, %v3170
      %v3172 = vpop.f32.mrb[0].mxu0
      %v3173 = vpop.f32.mrb[0].mxu0
      %v3174 = vadd.f32 0.0, %v3173
      %v3175 = vpop.f32.mrb[0].mxu0
      %3176 = vmatprep.mubr.bf16.mxu0 0
      %3177 = vmatmul.mubr.bf16.gmra.mrb[0].mxu0 %v3036
      %v3178 = vpop.f32.mrb[0].mxu0
      %v3179 = vadd.f32 0.0, %v3178
      %v3180 = vpop.f32.mrb[0].mxu0
      %v3181 = vpop.f32.mrb[0].mxu0
      %v3182 = vadd.f32 0.0, %v3181
      %v3183 = vpop.f32.mrb[0].mxu0
      %3184 = vmatprep.mubr.bf16.mxu0 0
      %3185 = vmatmul.mubr.bf16.gmra.mrb[0].mxu0 %v3037
      %v3186 = vpop.f32.mrb[0].mxu0
      %v3187 = vadd.f32 0.0, %v3186
      %v3188 = vpop.f32.mrb[0].mxu0
      %v3189 = vpop.f32.mrb[0].mxu0
      %v3190 = vadd.f32 0.0, %v3189
      %v3191 = vpop.f32.mrb[0].mxu0
      %3192 = vmatprep.mubr.bf16.mxu0 0
      %3193 = vmatmul.mubr.bf16.gmra.mrb[0].mxu0 %v3038
      %v3194 = vpop.f32.mrb[0].mxu0
      %v3195 = vadd.f32 0.0, %v3194
      %v3196 = vpop.f32.mrb[0].mxu0
      %v3197 = vpop.f32.mrb[0].mxu0
      %v3198 = vadd.f32 0.0, %v3197
      %v3199 = vpop.f32.mrb[0].mxu0
      %3200 = vmatprep.mubr.bf16.mxu0 0
      %3201 = vmatmul.mubr.bf16.gmra.mrb[0].mxu0 %v3039
      %v3202 = vpop.f32.mrb[0].mxu0
      %v3203 = vadd.f32 0.0, %v3202
      %v3204 = vpop.f32.mrb[0].mxu0
      %v3205 = vpop.f32.mrb[0].mxu0
      %v3206 = vadd.f32 0.0, %v3205
      %v3207 = vpop.f32.mrb[0].mxu0
      %3208 = vmatprep.mubr.bf16.mxu0 0
      %3209 = vmatmul.mubr.bf16.gmra.mrb[0].mxu0 %v3040
      %v3210 = vpop.f32.mrb[0].mxu0
      %v3211 = vadd.f32 0.0, %v3210
      %v3212 = vpop.f32.mrb[0].mxu0
      %v3213 = vpop.f32.mrb[0].mxu0
      %v3214 = vadd.f32 0.0, %v3213
      %v3215 = vpop.f32.mrb[0].mxu0
      %3216 = vmatprep.mubr.bf16.mxu0 0
      %3217 = vmatmul.mubr.bf16.gmra.mrb[0].mxu0 %v3041
      %v3218 = vpop.f32.mrb[0].mxu0
      %v3219 = vadd.f32 0.0, %v3218
      %v3220 = vpop.f32.mrb[0].mxu0
      %v3221 = vpop.f32.mrb[0].mxu0
      %v3222 = vadd.f32 0.0, %v3221
      %v3223 = vpop.f32.mrb[0].mxu0
      %3224 = vmatprep.mubr.bf16.mxu0 0
      %3225 = vmatmul.mubr.bf16.gmra.mrb[0].mxu0 %v3042
      %v3226 = vpop.f32.mrb[0].mxu0
      %v3227 = vadd.f32 0.0, %v3226
      %v3228 = vpop.f32.mrb[0].mxu0
      %v3229 = vpop.f32.mrb[0].mxu0
      %v3230 = vadd.f32 0.0, %v3229
      %v3231 = vpop.f32.mrb[0].mxu0
      %3232 = vmatprep.mubr.bf16.mxu0 0
      %3233 = vmatmul.mubr.bf16.gmra.mrb[0].mxu0 %v3043
      %v3234 = vpop.f32.mrb[0].mxu0
      %v3235 = vadd.f32 0.0, %v3234
      %v3236 = vpop.f32.mrb[0].mxu0
      %v3237 = vpop.f32.mrb[0].mxu0
      %v3238 = vadd.f32 0.0, %v3237
      %v3239 = vpop.f32.mrb[0].mxu0
      %3240 = vmatprep.mubr.bf16.mxu0 0
      %3241 = vmatmul.mubr.bf16.gmra.mrb[0].mxu0 %v3044
      %v3242 = vpop.f32.mrb[0].mxu0
      %v3243 = vadd.f32 0.0, %v3242
      %v3244 = vpop.f32.mrb[0].mxu0
      %v3245 = vpop.f32.mrb[0].mxu0
      %v3246 = vadd.f32 0.0, %v3245
      %v3247 = vpop.f32.mrb[0].mxu0
      %3248 = vmatprep.mubr.bf16.mxu0 0
      %3249 = vmatmul.mubr.bf16.gmra.mrb[0].mxu0 %v3045
      %v3250 = vpop.f32.mrb[0].mxu0
      %v3251 = vadd.f32 0.0, %v3250
      %v3252 = vpop.f32.mrb[0].mxu0
      %v3253 = vpop.f32.mrb[0].mxu0
      %v3254 = vadd.f32 0.0, %v3253
      %v3255 = vpop.f32.mrb[0].mxu0
      %3256 = vmatprep.mubr.bf16.mxu0 0
      %3257 = vmatmul.mubr.bf16.gmra.mrb[0].mxu0 %v3046
      %v3258 = vpop.f32.mrb[0].mxu0
      %v3259 = vadd.f32 0.0, %v3258
      %v3260 = vpop.f32.mrb[0].mxu0
      %v3261 = vpop.f32.mrb[0].mxu0
      %v3262 = vadd.f32 0.0, %v3261
      %v3263 = vpop.f32.mrb[0].mxu0
      %3264 = vmatprep.mubr.bf16.mxu0 0
      %3265 = vmatmul.mubr.bf16.gmra.mrb[0].mxu0 %v3047
      %v3266 = vpop.f32.mrb[0].mxu0
      %v3267 = vadd.f32 0.0, %v3266
      %v3268 = vpop.f32.mrb[0].mxu0
      %v3269 = vpop.f32.mrb[0].mxu0
      %v3270 = vadd.f32 0.0, %v3269
      %v3271 = vpop.f32.mrb[0].mxu0
      %3272 = vdwg.mxu0
      %v3273 = vadd.f32 %v2951, %v3147
      %v3274 = vadd.f32 %v2952, %v3150
      %v3275 = vadd.f32 %v2953, %v3155
      %v3276 = vadd.f32 %v2954, %v3158
      %v3277 = vadd.f32 %v2955, %v3163
      %v3278 = vadd.f32 %v2956, %v3166
      %v3279 = vadd.f32 %v2957, %v3171
      %v3280 = vadd.f32 %v2958, %v3174
      %v3281 = vadd.f32 %v2959, %v3179
      %v3282 = vadd.f32 %v2960, %v3182
      %v3283 = vadd.f32 %v2961, %v3187
      %v3284 = vadd.f32 %v2962, %v3190
      %v3285 = vadd.f32 %v2963, %v3195
      %v3286 = vadd.f32 %v2964, %v3198
      %v3287 = vadd.f32 %v2965, %v3203
      %v3288 = vadd.f32 %v2966, %v3206
      %v3289 = vadd.f32 %v2967, %v3211
      %v3290 = vadd.f32 %v2968, %v3214
      %v3291 = vadd.f32 %v2969, %v3219
      %v3292 = vadd.f32 %v2970, %v3222
      %v3293 = vadd.f32 %v2971, %v3227
      %v3294 = vadd.f32 %v2972, %v3230
      %v3295 = vadd.f32 %v2973, %v3235
      %v3296 = vadd.f32 %v2974, %v3238
      %v3297 = vadd.f32 %v2975, %v3243
      %v3298 = vadd.f32 %v2976, %v3246
      %v3299 = vadd.f32 %v2977, %v3251
      %v3300 = vadd.f32 %v2978, %v3254
      %v3301 = vadd.f32 %v2979, %v3259
      %v3302 = vadd.f32 %v2980, %v3262
      %v3303 = vadd.f32 %v2981, %v3267
      %v3304 = vadd.f32 %v2982, %v3270
      %s3305 = scalar_lea.vmem %s290, 320
      %v3306 = vld [vmem:[%s3305] sm:$0xf]
      %v3307 = vld [vmem:[%s3305 + $0x4] sm:$0xf]
      %v3308 = vld [vmem:[%s3305 + $0x8] sm:$0xf]
      %v3309 = vld [vmem:[%s3305 + $0xc] sm:$0xf]
      %v3310 = vld [vmem:[%s3305 + $0x10] sm:$0xf]
      %v3311 = vld [vmem:[%s3305 + $0x14] sm:$0xf]
      %v3312 = vld [vmem:[%s3305 + $0x18] sm:$0xf]
      %v3313 = vld [vmem:[%s3305 + $0x1c] sm:$0xf]
      %v3314 = vld [vmem:[%s3305 + $0x20] sm:$0xf]
      %v3315 = vld [vmem:[%s3305 + $0x24] sm:$0xf]
      %v3316 = vld [vmem:[%s3305 + $0x28] sm:$0xf]
      %v3317 = vld [vmem:[%s3305 + $0x2c] sm:$0xf]
      %v3318 = vld [vmem:[%s3305 + $0x30] sm:$0xf]
      %v3319 = vld [vmem:[%s3305 + $0x34] sm:$0xf]
      %v3320 = vld [vmem:[%s3305 + $0x38] sm:$0xf]
      %v3321 = vld [vmem:[%s3305 + $0x3c] sm:$0xf]
      %v3322 = vunpack.c.l.b16 %v2940
      %v3323 = vunpack.c.l.b16 %v2943
      %v3324 = vpack.c.b16 %v3323, %v3322
      %v3342 = vunpack.c.l.b16 %v3306
      %v3343 = vunpack.c.l.b16 %v3307
      %v3344 = vunpack.c.l.b16 %v3308
      %v3345 = vunpack.c.l.b16 %v3309
      %v3346 = vunpack.c.l.b16 %v3310
      %v3347 = vunpack.c.l.b16 %v3311
      %v3348 = vunpack.c.l.b16 %v3312
      %v3349 = vunpack.c.l.b16 %v3313
      %v3350 = vunpack.c.l.b16 %v3314
      %v3351 = vunpack.c.l.b16 %v3315
      %v3352 = vunpack.c.l.b16 %v3316
      %v3353 = vunpack.c.l.b16 %v3317
      %v3354 = vunpack.c.l.b16 %v3318
      %v3355 = vunpack.c.l.b16 %v3319
      %v3356 = vunpack.c.l.b16 %v3320
      %v3357 = vunpack.c.l.b16 %v3321
      %v3358 = vpack.c.b16 %v3343, %v3342
      %v3359 = vpack.c.b16 %v3345, %v3344
      %v3360 = vpack.c.b16 %v3347, %v3346
      %v3361 = vpack.c.b16 %v3349, %v3348
      %v3362 = vpack.c.b16 %v3351, %v3350
      %v3363 = vpack.c.b16 %v3353, %v3352
      %v3364 = vpack.c.b16 %v3355, %v3354
      %v3365 = vpack.c.b16 %v3357, %v3356
      %3374 = vmatprep.subr.bf16.mxu0 0
      %3375 = vmatpush1.bf16.msra.mxu0 %v3358
      %3376 = vmatprep.subr.bf16.mxu0 0
      %3377 = vmatpush1.bf16.msra.mxu0 %v3359
      %3378 = vmatprep.subr.bf16.mxu0 0
      %3379 = vmatpush1.bf16.msra.mxu0 %v3360
      %3380 = vmatprep.subr.bf16.mxu0 0
      %3381 = vmatpush1.bf16.msra.mxu0 %v3361
      %3382 = vmatprep.subr.bf16.mxu0 0
      %3383 = vmatpush1.bf16.msra.mxu0 %v3362
      %3384 = vmatprep.subr.bf16.mxu0 0
      %3385 = vmatpush1.bf16.msra.mxu0 %v3363
      %3386 = vmatprep.subr.bf16.mxu0 0
      %3387 = vmatpush1.bf16.msra.mxu0 %v3364
      %3388 = vmatprep.subr.bf16.mxu0 0
      %3389 = vmatpush1.bf16.msra.mxu0 %v3365
      %3390 = vmatprep.subr.bf16.mxu0 0
      %3391 = vmatpush1.bf16.msra.mxu0 0
      %3392 = vmatprep.subr.bf16.mxu0 0
      %3393 = vmatpush1.bf16.msra.mxu0 0
      %3394 = vmatprep.subr.bf16.mxu0 0
      %3395 = vmatpush1.bf16.msra.mxu0 0
      %3396 = vmatprep.subr.bf16.mxu0 0
      %3397 = vmatpush1.bf16.msra.mxu0 0
      %3398 = vmatprep.subr.bf16.mxu0 0
      %3399 = vmatpush1.bf16.msra.mxu0 0
      %3400 = vmatprep.subr.bf16.mxu0 0
      %3401 = vmatpush1.bf16.msra.mxu0 0
      %3402 = vmatprep.subr.bf16.mxu0 0
      %3403 = vmatpush1.bf16.msra.mxu0 0
      %3404 = vmatprep.subr.bf16.mxu0 0
      %3405 = vmatpush1.bf16.msra.mxu0 0
      %3406 = vmatprep.mubr.bf16.mxu0 0
      %3407 = vmatmul.mubr.bf16.gmra.mrb[0].mxu0 %v3033
      %v3408 = vpop.f32.mrb[0].mxu0
      %v3409 = vadd.f32 0.0, %v3408
      %v3410 = vpop.f32.mrb[0].mxu0
      %v3411 = vpop.f32.mrb[0].mxu0
      %v3412 = vadd.f32 0.0, %v3411
      %v3413 = vpop.f32.mrb[0].mxu0
      %3414 = vmatprep.mubr.bf16.mxu0 0
      %3415 = vmatmul.mubr.bf16.gmra.mrb[0].mxu0 %v3034
      %v3416 = vpop.f32.mrb[0].mxu0
      %v3417 = vadd.f32 0.0, %v3416
      %v3418 = vpop.f32.mrb[0].mxu0
      %v3419 = vpop.f32.mrb[0].mxu0
      %v3420 = vadd.f32 0.0, %v3419
      %v3421 = vpop.f32.mrb[0].mxu0
      %3422 = vmatprep.mubr.bf16.mxu0 0
      %3423 = vmatmul.mubr.bf16.gmra.mrb[0].mxu0 %v3035
      %v3424 = vpop.f32.mrb[0].mxu0
      %v3425 = vadd.f32 0.0, %v3424
      %v3426 = vpop.f32.mrb[0].mxu0
      %v3427 = vpop.f32.mrb[0].mxu0
      %v3428 = vadd.f32 0.0, %v3427
      %v3429 = vpop.f32.mrb[0].mxu0
      %3430 = vmatprep.mubr.bf16.mxu0 0
      %3431 = vmatmul.mubr.bf16.gmra.mrb[0].mxu0 %v3036
      %v3432 = vpop.f32.mrb[0].mxu0
      %v3433 = vadd.f32 0.0, %v3432
      %v3434 = vpop.f32.mrb[0].mxu0
      %v3435 = vpop.f32.mrb[0].mxu0
      %v3436 = vadd.f32 0.0, %v3435
      %v3437 = vpop.f32.mrb[0].mxu0
      %3438 = vmatprep.mubr.bf16.mxu0 0
      %3439 = vmatmul.mubr.bf16.gmra.mrb[0].mxu0 %v3037
      %v3440 = vpop.f32.mrb[0].mxu0
      %v3441 = vadd.f32 0.0, %v3440
      %v3442 = vpop.f32.mrb[0].mxu0
      %v3443 = vpop.f32.mrb[0].mxu0
      %v3444 = vadd.f32 0.0, %v3443
      %v3445 = vpop.f32.mrb[0].mxu0
      %3446 = vmatprep.mubr.bf16.mxu0 0
      %3447 = vmatmul.mubr.bf16.gmra.mrb[0].mxu0 %v3038
      %v3448 = vpop.f32.mrb[0].mxu0
      %v3449 = vadd.f32 0.0, %v3448
      %v3450 = vpop.f32.mrb[0].mxu0
      %v3451 = vpop.f32.mrb[0].mxu0
      %v3452 = vadd.f32 0.0, %v3451
      %v3453 = vpop.f32.mrb[0].mxu0
      %3454 = vmatprep.mubr.bf16.mxu0 0
      %3455 = vmatmul.mubr.bf16.gmra.mrb[0].mxu0 %v3039
      %v3456 = vpop.f32.mrb[0].mxu0
      %v3457 = vadd.f32 0.0, %v3456
      %v3458 = vpop.f32.mrb[0].mxu0
      %v3459 = vpop.f32.mrb[0].mxu0
      %v3460 = vadd.f32 0.0, %v3459
      %v3461 = vpop.f32.mrb[0].mxu0
      %3462 = vmatprep.mubr.bf16.mxu0 0
      %3463 = vmatmul.mubr.bf16.gmra.mrb[0].mxu0 %v3040
      %v3464 = vpop.f32.mrb[0].mxu0
      %v3465 = vadd.f32 0.0, %v3464
      %v3466 = vpop.f32.mrb[0].mxu0
      %v3467 = vpop.f32.mrb[0].mxu0
      %v3468 = vadd.f32 0.0, %v3467
      %v3469 = vpop.f32.mrb[0].mxu0
      %3470 = vmatprep.mubr.bf16.mxu0 0
      %3471 = vmatmul.mubr.bf16.gmra.mrb[0].mxu0 %v3041
      %v3472 = vpop.f32.mrb[0].mxu0
      %v3473 = vadd.f32 0.0, %v3472
      %v3474 = vpop.f32.mrb[0].mxu0
      %v3475 = vpop.f32.mrb[0].mxu0
      %v3476 = vadd.f32 0.0, %v3475
      %v3477 = vpop.f32.mrb[0].mxu0
      %3478 = vmatprep.mubr.bf16.mxu0 0
      %3479 = vmatmul.mubr.bf16.gmra.mrb[0].mxu0 %v3042
      %v3480 = vpop.f32.mrb[0].mxu0
      %v3481 = vadd.f32 0.0, %v3480
      %v3482 = vpop.f32.mrb[0].mxu0
      %v3483 = vpop.f32.mrb[0].mxu0
      %v3484 = vadd.f32 0.0, %v3483
      %v3485 = vpop.f32.mrb[0].mxu0
      %3486 = vmatprep.mubr.bf16.mxu0 0
      %3487 = vmatmul.mubr.bf16.gmra.mrb[0].mxu0 %v3043
      %v3488 = vpop.f32.mrb[0].mxu0
      %v3489 = vadd.f32 0.0, %v3488
      %v3490 = vpop.f32.mrb[0].mxu0
      %v3491 = vpop.f32.mrb[0].mxu0
      %v3492 = vadd.f32 0.0, %v3491
      %v3493 = vpop.f32.mrb[0].mxu0
      %3494 = vmatprep.mubr.bf16.mxu0 0
      %3495 = vmatmul.mubr.bf16.gmra.mrb[0].mxu0 %v3044
      %v3496 = vpop.f32.mrb[0].mxu0
      %v3497 = vadd.f32 0.0, %v3496
      %v3498 = vpop.f32.mrb[0].mxu0
      %v3499 = vpop.f32.mrb[0].mxu0
      %v3500 = vadd.f32 0.0, %v3499
      %v3501 = vpop.f32.mrb[0].mxu0
      %3502 = vmatprep.mubr.bf16.mxu0 0
      %3503 = vmatmul.mubr.bf16.gmra.mrb[0].mxu0 %v3045
      %v3504 = vpop.f32.mrb[0].mxu0
      %v3505 = vadd.f32 0.0, %v3504
      %v3506 = vpop.f32.mrb[0].mxu0
      %v3507 = vpop.f32.mrb[0].mxu0
      %v3508 = vadd.f32 0.0, %v3507
      %v3509 = vpop.f32.mrb[0].mxu0
      %3510 = vmatprep.mubr.bf16.mxu0 0
      %3511 = vmatmul.mubr.bf16.gmra.mrb[0].mxu0 %v3046
      %v3512 = vpop.f32.mrb[0].mxu0
      %v3513 = vadd.f32 0.0, %v3512
      %v3514 = vpop.f32.mrb[0].mxu0
      %v3515 = vpop.f32.mrb[0].mxu0
      %v3516 = vadd.f32 0.0, %v3515
      %v3517 = vpop.f32.mrb[0].mxu0
      %3518 = vmatprep.mubr.bf16.mxu0 0
      %3519 = vmatmul.mubr.bf16.gmra.mrb[0].mxu0 %v3047
      %v3520 = vpop.f32.mrb[0].mxu0
      %v3521 = vadd.f32 0.0, %v3520
      %v3522 = vpop.f32.mrb[0].mxu0
      %v3523 = vpop.f32.mrb[0].mxu0
      %v3524 = vadd.f32 0.0, %v3523
      %v3525 = vpop.f32.mrb[0].mxu0
      %3526 = vmatprep.mubr.bf16.mxu0 0
      %3527 = vmatmul.mubr.bf16.gmra.mrb[0].mxu0 %v3324
      %v3528 = vpop.f32.mrb[0].mxu0
      %v3529 = vadd.f32 0.0, %v3528
      %v3530 = vpop.f32.mrb[0].mxu0
      %v3531 = vpop.f32.mrb[0].mxu0
      %v3532 = vadd.f32 0.0, %v3531
      %v3533 = vpop.f32.mrb[0].mxu0
      %3534 = vdwg.mxu0
      %v3535 = vadd.f32 %v3273, %v3409
      %v3536 = vadd.f32 %v3274, %v3412
      %v3537 = vadd.f32 %v3275, %v3417
      %v3538 = vadd.f32 %v3276, %v3420
      %v3539 = vadd.f32 %v3277, %v3425
      %v3540 = vadd.f32 %v3278, %v3428
      %v3541 = vadd.f32 %v3279, %v3433
      %v3542 = vadd.f32 %v3280, %v3436
      %v3543 = vadd.f32 %v3281, %v3441
      %v3544 = vadd.f32 %v3282, %v3444
      %v3545 = vadd.f32 %v3283, %v3449
      %v3546 = vadd.f32 %v3284, %v3452
      %v3547 = vadd.f32 %v3285, %v3457
      %v3548 = vadd.f32 %v3286, %v3460
      %v3549 = vadd.f32 %v3287, %v3465
      %v3550 = vadd.f32 %v3288, %v3468
      %v3551 = vadd.f32 %v3289, %v3473
      %v3552 = vadd.f32 %v3290, %v3476
      %v3553 = vadd.f32 %v3291, %v3481
      %v3554 = vadd.f32 %v3292, %v3484
      %v3555 = vadd.f32 %v3293, %v3489
      %v3556 = vadd.f32 %v3294, %v3492
      %v3557 = vadd.f32 %v3295, %v3497
      %v3558 = vadd.f32 %v3296, %v3500
      %v3559 = vadd.f32 %v3297, %v3505
      %v3560 = vadd.f32 %v3298, %v3508
      %v3561 = vadd.f32 %v3299, %v3513
      %v3562 = vadd.f32 %v3300, %v3516
      %v3563 = vadd.f32 %v3301, %v3521
      %v3564 = vadd.f32 %v3302, %v3524
      %v3565 = vadd.f32 %v3303, %v3529
      %v3566 = vadd.f32 %v3304, %v3532
      %s3567 = scalar_lea.vmem %s290, 512
      %v3568 = vld [vmem:[%s3567] sm:$0xf]
      %v3569 = vld [vmem:[%s3567 + $0x4] sm:$0xf]
      %v3570 = vld [vmem:[%s3567 + $0x8] sm:$0xf]
      %v3571 = vld [vmem:[%s3567 + $0xc] sm:$0xf]
      %v3572 = vld [vmem:[%s3567 + $0x10] sm:$0xf]
      %v3573 = vld [vmem:[%s3567 + $0x14] sm:$0xf]
      %v3574 = vld [vmem:[%s3567 + $0x18] sm:$0xf]
      %v3575 = vld [vmem:[%s3567 + $0x1c] sm:$0xf]
      %v3576 = vld [vmem:[%s3567 + $0x20] sm:$0xf]
      %v3577 = vld [vmem:[%s3567 + $0x24] sm:$0xf]
      %v3578 = vld [vmem:[%s3567 + $0x28] sm:$0xf]
      %v3579 = vld [vmem:[%s3567 + $0x2c] sm:$0xf]
      %v3580 = vld [vmem:[%s3567 + $0x30] sm:$0xf]
      %v3581 = vld [vmem:[%s3567 + $0x34] sm:$0xf]
      %v3582 = vld [vmem:[%s3567 + $0x38] sm:$0xf]
      %v3583 = vld [vmem:[%s3567 + $0x3c] sm:$0xf]
      %v3584 = vunpack.c.l.b16 %v2947
      %v3585 = vunpack.c.l.b16 %v2950
      %v3586 = vpack.c.b16 %v3585, %v3584
      %v3604 = vunpack.c.l.b16 %v3568
      %v3605 = vunpack.c.l.b16 %v3569
      %v3606 = vunpack.c.l.b16 %v3570
      %v3607 = vunpack.c.l.b16 %v3571
      %v3608 = vunpack.c.l.b16 %v3572
      %v3609 = vunpack.c.l.b16 %v3573
      %v3610 = vunpack.c.l.b16 %v3574
      %v3611 = vunpack.c.l.b16 %v3575
      %v3612 = vunpack.c.l.b16 %v3576
      %v3613 = vunpack.c.l.b16 %v3577
      %v3614 = vunpack.c.l.b16 %v3578
      %v3615 = vunpack.c.l.b16 %v3579
      %v3616 = vunpack.c.l.b16 %v3580
      %v3617 = vunpack.c.l.b16 %v3581
      %v3618 = vunpack.c.l.b16 %v3582
      %v3619 = vunpack.c.l.b16 %v3583
      %v3620 = vpack.c.b16 %v3605, %v3604
      %v3621 = vpack.c.b16 %v3607, %v3606
      %v3622 = vpack.c.b16 %v3609, %v3608
      %v3623 = vpack.c.b16 %v3611, %v3610
      %v3624 = vpack.c.b16 %v3613, %v3612
      %v3625 = vpack.c.b16 %v3615, %v3614
      %v3626 = vpack.c.b16 %v3617, %v3616
      %v3627 = vpack.c.b16 %v3619, %v3618
      %3636 = vmatprep.subr.bf16.mxu0 0
      %3637 = vmatpush1.bf16.msra.mxu0 %v3620
      %3638 = vmatprep.subr.bf16.mxu0 0
      %3639 = vmatpush1.bf16.msra.mxu0 %v3621
      %3640 = vmatprep.subr.bf16.mxu0 0
      %3641 = vmatpush1.bf16.msra.mxu0 %v3622
      %3642 = vmatprep.subr.bf16.mxu0 0
      %3643 = vmatpush1.bf16.msra.mxu0 %v3623
      %3644 = vmatprep.subr.bf16.mxu0 0
      %3645 = vmatpush1.bf16.msra.mxu0 %v3624
      %3646 = vmatprep.subr.bf16.mxu0 0
      %3647 = vmatpush1.bf16.msra.mxu0 %v3625
      %3648 = vmatprep.subr.bf16.mxu0 0
      %3649 = vmatpush1.bf16.msra.mxu0 %v3626
      %3650 = vmatprep.subr.bf16.mxu0 0
      %3651 = vmatpush1.bf16.msra.mxu0 %v3627
      %3652 = vmatprep.subr.bf16.mxu0 0
      %3653 = vmatpush1.bf16.msra.mxu0 0
      %3654 = vmatprep.subr.bf16.mxu0 0
      %3655 = vmatpush1.bf16.msra.mxu0 0
      %3656 = vmatprep.subr.bf16.mxu0 0
      %3657 = vmatpush1.bf16.msra.mxu0 0
      %3658 = vmatprep.subr.bf16.mxu0 0
      %3659 = vmatpush1.bf16.msra.mxu0 0
      %3660 = vmatprep.subr.bf16.mxu0 0
      %3661 = vmatpush1.bf16.msra.mxu0 0
      %3662 = vmatprep.subr.bf16.mxu0 0
      %3663 = vmatpush1.bf16.msra.mxu0 0
      %3664 = vmatprep.subr.bf16.mxu0 0
      %3665 = vmatpush1.bf16.msra.mxu0 0
      %3666 = vmatprep.subr.bf16.mxu0 0
      %3667 = vmatpush1.bf16.msra.mxu0 0
      %3668 = vmatprep.mubr.bf16.mxu0 0
      %3669 = vmatmul.mubr.bf16.gmra.mrb[0].mxu0 %v3034
      %v3670 = vpop.f32.mrb[0].mxu0
      %v3671 = vadd.f32 0.0, %v3670
      %v3672 = vpop.f32.mrb[0].mxu0
      %v3673 = vpop.f32.mrb[0].mxu0
      %v3674 = vadd.f32 0.0, %v3673
      %v3675 = vpop.f32.mrb[0].mxu0
      %3676 = vmatprep.mubr.bf16.mxu0 0
      %3677 = vmatmul.mubr.bf16.gmra.mrb[0].mxu0 %v3035
      %v3678 = vpop.f32.mrb[0].mxu0
      %v3679 = vadd.f32 0.0, %v3678
      %v3680 = vpop.f32.mrb[0].mxu0
      %v3681 = vpop.f32.mrb[0].mxu0
      %v3682 = vadd.f32 0.0, %v3681
      %v3683 = vpop.f32.mrb[0].mxu0
      %3684 = vmatprep.mubr.bf16.mxu0 0
      %3685 = vmatmul.mubr.bf16.gmra.mrb[0].mxu0 %v3036
      %v3686 = vpop.f32.mrb[0].mxu0
      %v3687 = vadd.f32 0.0, %v3686
      %v3688 = vpop.f32.mrb[0].mxu0
      %v3689 = vpop.f32.mrb[0].mxu0
      %v3690 = vadd.f32 0.0, %v3689
      %v3691 = vpop.f32.mrb[0].mxu0
      %3692 = vmatprep.mubr.bf16.mxu0 0
      %3693 = vmatmul.mubr.bf16.gmra.mrb[0].mxu0 %v3037
      %v3694 = vpop.f32.mrb[0].mxu0
      %v3695 = vadd.f32 0.0, %v3694
      %v3696 = vpop.f32.mrb[0].mxu0
      %v3697 = vpop.f32.mrb[0].mxu0
      %v3698 = vadd.f32 0.0, %v3697
      %v3699 = vpop.f32.mrb[0].mxu0
      %3700 = vmatprep.mubr.bf16.mxu0 0
      %3701 = vmatmul.mubr.bf16.gmra.mrb[0].mxu0 %v3038
      %v3702 = vpop.f32.mrb[0].mxu0
      %v3703 = vadd.f32 0.0, %v3702
      %v3704 = vpop.f32.mrb[0].mxu0
      %v3705 = vpop.f32.mrb[0].mxu0
      %v3706 = vadd.f32 0.0, %v3705
      %v3707 = vpop.f32.mrb[0].mxu0
      %3708 = vmatprep.mubr.bf16.mxu0 0
      %3709 = vmatmul.mubr.bf16.gmra.mrb[0].mxu0 %v3039
      %v3710 = vpop.f32.mrb[0].mxu0
      %v3711 = vadd.f32 0.0, %v3710
      %v3712 = vpop.f32.mrb[0].mxu0
      %v3713 = vpop.f32.mrb[0].mxu0
      %v3714 = vadd.f32 0.0, %v3713
      %v3715 = vpop.f32.mrb[0].mxu0
      %3716 = vmatprep.mubr.bf16.mxu0 0
      %3717 = vmatmul.mubr.bf16.gmra.mrb[0].mxu0 %v3040
      %v3718 = vpop.f32.mrb[0].mxu0
      %v3719 = vadd.f32 0.0, %v3718
      %v3720 = vpop.f32.mrb[0].mxu0
      %v3721 = vpop.f32.mrb[0].mxu0
      %v3722 = vadd.f32 0.0, %v3721
      %v3723 = vpop.f32.mrb[0].mxu0
      %3724 = vmatprep.mubr.bf16.mxu0 0
      %3725 = vmatmul.mubr.bf16.gmra.mrb[0].mxu0 %v3041
      %v3726 = vpop.f32.mrb[0].mxu0
      %v3727 = vadd.f32 0.0, %v3726
      %v3728 = vpop.f32.mrb[0].mxu0
      %v3729 = vpop.f32.mrb[0].mxu0
      %v3730 = vadd.f32 0.0, %v3729
      %v3731 = vpop.f32.mrb[0].mxu0
      %3732 = vmatprep.mubr.bf16.mxu0 0
      %3733 = vmatmul.mubr.bf16.gmra.mrb[0].mxu0 %v3042
      %v3734 = vpop.f32.mrb[0].mxu0
      %v3735 = vadd.f32 0.0, %v3734
      %v3736 = vpop.f32.mrb[0].mxu0
      %v3737 = vpop.f32.mrb[0].mxu0
      %v3738 = vadd.f32 0.0, %v3737
      %v3739 = vpop.f32.mrb[0].mxu0
      %3740 = vmatprep.mubr.bf16.mxu0 0
      %3741 = vmatmul.mubr.bf16.gmra.mrb[0].mxu0 %v3043
      %v3742 = vpop.f32.mrb[0].mxu0
      %v3743 = vadd.f32 0.0, %v3742
      %v3744 = vpop.f32.mrb[0].mxu0
      %v3745 = vpop.f32.mrb[0].mxu0
      %v3746 = vadd.f32 0.0, %v3745
      %v3747 = vpop.f32.mrb[0].mxu0
      %3748 = vmatprep.mubr.bf16.mxu0 0
      %3749 = vmatmul.mubr.bf16.gmra.mrb[0].mxu0 %v3044
      %v3750 = vpop.f32.mrb[0].mxu0
      %v3751 = vadd.f32 0.0, %v3750
      %v3752 = vpop.f32.mrb[0].mxu0
      %v3753 = vpop.f32.mrb[0].mxu0
      %v3754 = vadd.f32 0.0, %v3753
      %v3755 = vpop.f32.mrb[0].mxu0
      %3756 = vmatprep.mubr.bf16.mxu0 0
      %3757 = vmatmul.mubr.bf16.gmra.mrb[0].mxu0 %v3045
      %v3758 = vpop.f32.mrb[0].mxu0
      %v3759 = vadd.f32 0.0, %v3758
      %v3760 = vpop.f32.mrb[0].mxu0
      %v3761 = vpop.f32.mrb[0].mxu0
      %v3762 = vadd.f32 0.0, %v3761
      %v3763 = vpop.f32.mrb[0].mxu0
      %3764 = vmatprep.mubr.bf16.mxu0 0
      %3765 = vmatmul.mubr.bf16.gmra.mrb[0].mxu0 %v3046
      %v3766 = vpop.f32.mrb[0].mxu0
      %v3767 = vadd.f32 0.0, %v3766
      %v3768 = vpop.f32.mrb[0].mxu0
      %v3769 = vpop.f32.mrb[0].mxu0
      %v3770 = vadd.f32 0.0, %v3769
      %v3771 = vpop.f32.mrb[0].mxu0
      %3772 = vmatprep.mubr.bf16.mxu0 0
      %3773 = vmatmul.mubr.bf16.gmra.mrb[0].mxu0 %v3047
      %v3774 = vpop.f32.mrb[0].mxu0
      %v3775 = vadd.f32 0.0, %v3774
      %v3776 = vpop.f32.mrb[0].mxu0
      %v3777 = vpop.f32.mrb[0].mxu0
      %v3778 = vadd.f32 0.0, %v3777
      %v3779 = vpop.f32.mrb[0].mxu0
      %3780 = vmatprep.mubr.bf16.mxu0 0
      %3781 = vmatmul.mubr.bf16.gmra.mrb[0].mxu0 %v3324
      %v3782 = vpop.f32.mrb[0].mxu0
      %v3783 = vadd.f32 0.0, %v3782
      %v3784 = vpop.f32.mrb[0].mxu0
      %v3785 = vpop.f32.mrb[0].mxu0
      %v3786 = vadd.f32 0.0, %v3785
      %v3787 = vpop.f32.mrb[0].mxu0
      %3788 = vmatprep.mubr.bf16.mxu0 0
      %3789 = vmatmul.mubr.bf16.gmra.mrb[0].mxu0 %v3586
      %v3790 = vpop.f32.mrb[0].mxu0
      %v3791 = vadd.f32 0.0, %v3790
      %v3792 = vpop.f32.mrb[0].mxu0
      %v3793 = vpop.f32.mrb[0].mxu0
      %v3794 = vadd.f32 0.0, %v3793
      %v3795 = vpop.f32.mrb[0].mxu0
      %3796 = vdwg.mxu0
      %v3797 = vadd.f32 %v3535, %v3671
      %v3798 = vadd.f32 %v3536, %v3674
      %v3799 = vadd.f32 %v3537, %v3679
      %v3800 = vadd.f32 %v3538, %v3682
      %v3801 = vadd.f32 %v3539, %v3687
      %v3802 = vadd.f32 %v3540, %v3690
      %v3803 = vadd.f32 %v3541, %v3695
      %v3804 = vadd.f32 %v3542, %v3698
      %v3805 = vadd.f32 %v3543, %v3703
      %v3806 = vadd.f32 %v3544, %v3706
      %v3807 = vadd.f32 %v3545, %v3711
      %v3808 = vadd.f32 %v3546, %v3714
      %v3809 = vadd.f32 %v3547, %v3719
      %v3810 = vadd.f32 %v3548, %v3722
      %v3811 = vadd.f32 %v3549, %v3727
      %v3812 = vadd.f32 %v3550, %v3730
      %v3813 = vadd.f32 %v3551, %v3735
      %v3814 = vadd.f32 %v3552, %v3738
      %v3815 = vadd.f32 %v3553, %v3743
      %v3816 = vadd.f32 %v3554, %v3746
      %v3817 = vadd.f32 %v3555, %v3751
      %v3818 = vadd.f32 %v3556, %v3754
      %v3819 = vadd.f32 %v3557, %v3759
      %v3820 = vadd.f32 %v3558, %v3762
      %v3821 = vadd.f32 %v3559, %v3767
      %v3822 = vadd.f32 %v3560, %v3770
      %v3823 = vadd.f32 %v3561, %v3775
      %v3824 = vadd.f32 %v3562, %v3778
      %v3825 = vadd.f32 %v3563, %v3783
      %v3826 = vadd.f32 %v3564, %v3786
      %v3827 = vadd.f32 %v3565, %v3791
      %v3828 = vadd.f32 %v3566, %v3794
      %3829 = vst [vmem:[#allocation2] sm:$0xff] %v3797
      %3830 = vst [vmem:[#allocation2 + $0x8] sm:$0xff] %v3798
      %3831 = vst [vmem:[#allocation2 + $0x10] sm:$0xff] %v3799
      %3832 = vst [vmem:[#allocation2 + $0x18] sm:$0xff] %v3800
      %3833 = vst [vmem:[#allocation2 + $0x20] sm:$0xff] %v3801
      %3834 = vst [vmem:[#allocation2 + $0x28] sm:$0xff] %v3802
      %3835 = vst [vmem:[#allocation2 + $0x30] sm:$0xff] %v3803
      %3836 = vst [vmem:[#allocation2 + $0x38] sm:$0xff] %v3804
      %3837 = vst [vmem:[#allocation2 + $0x40] sm:$0xff] %v3805
      %3838 = vst [vmem:[#allocation2 + $0x48] sm:$0xff] %v3806
      %3839 = vst [vmem:[#allocation2 + $0x50] sm:$0xff] %v3807
      %3840 = vst [vmem:[#allocation2 + $0x58] sm:$0xff] %v3808
      %3841 = vst [vmem:[#allocation2 + $0x60] sm:$0xff] %v3809
      %3842 = vst [vmem:[#allocation2 + $0x68] sm:$0xff] %v3810
      %3843 = vst [vmem:[#allocation2 + $0x70] sm:$0xff] %v3811
      %3844 = vst [vmem:[#allocation2 + $0x78] sm:$0xff] %v3812
      %3845 = vst [vmem:[#allocation2 + $0x80] sm:$0xff] %v3813
      %3846 = vst [vmem:[#allocation2 + $0x88] sm:$0xff] %v3814
      %3847 = vst [vmem:[#allocation2 + $0x90] sm:$0xff] %v3815
      %3848 = vst [vmem:[#allocation2 + $0x98] sm:$0xff] %v3816
      %3849 = vst [vmem:[#allocation2 + $0xa0] sm:$0xff] %v3817
      %3850 = vst [vmem:[#allocation2 + $0xa8] sm:$0xff] %v3818
      %3851 = vst [vmem:[#allocation2 + $0xb0] sm:$0xff] %v3819
      %3852 = vst [vmem:[#allocation2 + $0xb8] sm:$0xff] %v3820
      %3853 = vst [vmem:[#allocation2 + $0xc0] sm:$0xff] %v3821
      %3854 = vst [vmem:[#allocation2 + $0xc8] sm:$0xff] %v3822
      %3855 = vst [vmem:[#allocation2 + $0xd0] sm:$0xff] %v3823
      %3856 = vst [vmem:[#allocation2 + $0xd8] sm:$0xff] %v3824
      %3857 = vst [vmem:[#allocation2 + $0xe0] sm:$0xff] %v3825
      %3858 = vst [vmem:[#allocation2 + $0xe8] sm:$0xff] %v3826
      %3859 = vst [vmem:[#allocation2 + $0xf0] sm:$0xff] %v3827
      %3860 = vst [vmem:[#allocation2 + $0xf8] sm:$0xff] %v3828
      // Predicated region
      $region49: #{psp_head_forward.1} parent=43 // pred_check
        %p3861 = pneg %p298
      $region50: #{psp_head_forward.1} parent=43 // pred_check_branch
        %3863 = sbr.rel (%p3861) target = $region52
      $region51: #{psp_head_forward.1} parent=43 // pred_region
        %v3864 = vld [vmem:[#allocation2] sm:$0xff]
        %v3865 = vld [vmem:[#allocation2 + $0x8] sm:$0xff]
        %v3866 = vld [vmem:[#allocation2 + $0x10] sm:$0xff]
        %v3867 = vld [vmem:[#allocation2 + $0x18] sm:$0xff]
        %v3868 = vld [vmem:[#allocation2 + $0x20] sm:$0xff]
        %v3869 = vld [vmem:[#allocation2 + $0x28] sm:$0xff]
        %v3870 = vld [vmem:[#allocation2 + $0x30] sm:$0xff]
        %v3871 = vld [vmem:[#allocation2 + $0x38] sm:$0xff]
        %v3872 = vld [vmem:[#allocation2 + $0x40] sm:$0xff]
        %v3873 = vld [vmem:[#allocation2 + $0x48] sm:$0xff]
        %v3874 = vld [vmem:[#allocation2 + $0x50] sm:$0xff]
        %v3875 = vld [vmem:[#allocation2 + $0x58] sm:$0xff]
        %v3876 = vld [vmem:[#allocation2 + $0x60] sm:$0xff]
        %v3877 = vld [vmem:[#allocation2 + $0x68] sm:$0xff]
        %v3878 = vld [vmem:[#allocation2 + $0x70] sm:$0xff]
        %v3879 = vld [vmem:[#allocation2 + $0x78] sm:$0xff]
        %v3880 = vld [vmem:[#allocation2 + $0x80] sm:$0xff]
        %v3881 = vld [vmem:[#allocation2 + $0x88] sm:$0xff]
        %v3882 = vld [vmem:[#allocation2 + $0x90] sm:$0xff]
        %v3883 = vld [vmem:[#allocation2 + $0x98] sm:$0xff]
        %v3884 = vld [vmem:[#allocation2 + $0xa0] sm:$0xff]
        %v3885 = vld [vmem:[#allocation2 + $0xa8] sm:$0xff]
        %v3886 = vld [vmem:[#allocation2 + $0xb0] sm:$0xff]
        %v3887 = vld [vmem:[#allocation2 + $0xb8] sm:$0xff]
        %v3888 = vld [vmem:[#allocation2 + $0xc0] sm:$0xff]
        %v3889 = vld [vmem:[#allocation2 + $0xc8] sm:$0xff]
        %v3890 = vld [vmem:[#allocation2 + $0xd0] sm:$0xff]
        %v3891 = vld [vmem:[#allocation2 + $0xd8] sm:$0xff]
        %v3892 = vld [vmem:[#allocation2 + $0xe0] sm:$0xff]
        %v3893 = vld [vmem:[#allocation2 + $0xe8] sm:$0xff]
        %v3894 = vld [vmem:[#allocation2 + $0xf0] sm:$0xff]
        %v3895 = vld [vmem:[#allocation2 + $0xf8] sm:$0xff]
        %v3896 = vld [vmem:[%s2] sm:$0x1]
        %v3898 = vlaneseq
        %v3899 = vshrl.u32 %v3898, 7
        %v3900 = vsub.s32 0, %v3899
        %v3901 = vrot.slane %v3896, %v3900
        %v3903 = vmul.f32 %v3864, %v3901
        %v3904 = vmul.f32 %v3865, %v3901
        %v3905 = vmul.f32 %v3866, %v3901
        %v3906 = vmul.f32 %v3867, %v3901
        %v3907 = vmul.f32 %v3868, %v3901
        %v3908 = vmul.f32 %v3869, %v3901
        %v3909 = vmul.f32 %v3870, %v3901
        %v3910 = vmul.f32 %v3871, %v3901
        %v3911 = vmul.f32 %v3872, %v3901
        %v3912 = vmul.f32 %v3873, %v3901
        %v3913 = vmul.f32 %v3874, %v3901
        %v3914 = vmul.f32 %v3875, %v3901
        %v3915 = vmul.f32 %v3876, %v3901
        %v3916 = vmul.f32 %v3877, %v3901
        %v3917 = vmul.f32 %v3878, %v3901
        %v3918 = vmul.f32 %v3879, %v3901
        %v3919 = vmul.f32 %v3880, %v3901
        %v3920 = vmul.f32 %v3881, %v3901
        %v3921 = vmul.f32 %v3882, %v3901
        %v3922 = vmul.f32 %v3883, %v3901
        %v3923 = vmul.f32 %v3884, %v3901
        %v3924 = vmul.f32 %v3885, %v3901
        %v3925 = vmul.f32 %v3886, %v3901
        %v3926 = vmul.f32 %v3887, %v3901
        %v3927 = vmul.f32 %v3888, %v3901
        %v3928 = vmul.f32 %v3889, %v3901
        %v3929 = vmul.f32 %v3890, %v3901
        %v3930 = vmul.f32 %v3891, %v3901
        %v3931 = vmul.f32 %v3892, %v3901
        %v3932 = vmul.f32 %v3893, %v3901
        %v3933 = vmul.f32 %v3894, %v3901
        %v3934 = vmul.f32 %v3895, %v3901
        %v3935 = vld [vmem:[%s3] sm:$0x1]
        %v3937 = vlaneseq
        %v3938 = vshrl.u32 %v3937, 7
        %v3939 = vsub.s32 0, %v3938
        %v3940 = vrot.slane %v3935, %v3939
        %v3942 = vadd.f32 %v3903, %v3940
        %v3943 = vadd.f32 %v3904, %v3940
        %v3944 = vadd.f32 %v3905, %v3940
        %v3945 = vadd.f32 %v3906, %v3940
        %v3946 = vadd.f32 %v3907, %v3940
        %v3947 = vadd.f32 %v3908, %v3940
        %v3948 = vadd.f32 %v3909, %v3940
        %v3949 = vadd.f32 %v3910, %v3940
        %v3950 = vadd.f32 %v3911, %v3940
        %v3951 = vadd.f32 %v3912, %v3940
        %v3952 = vadd.f32 %v3913, %v3940
        %v3953 = vadd.f32 %v3914, %v3940
        %v3954 = vadd.f32 %v3915, %v3940
        %v3955 = vadd.f32 %v3916, %v3940
        %v3956 = vadd.f32 %v3917, %v3940
        %v3957 = vadd.f32 %v3918, %v3940
        %v3958 = vadd.f32 %v3919, %v3940
        %v3959 = vadd.f32 %v3920, %v3940
        %v3960 = vadd.f32 %v3921, %v3940
        %v3961 = vadd.f32 %v3922, %v3940
        %v3962 = vadd.f32 %v3923, %v3940
        %v3963 = vadd.f32 %v3924, %v3940
        %v3964 = vadd.f32 %v3925, %v3940
        %v3965 = vadd.f32 %v3926, %v3940
        %v3966 = vadd.f32 %v3927, %v3940
        %v3967 = vadd.f32 %v3928, %v3940
        %v3968 = vadd.f32 %v3929, %v3940
        %v3969 = vadd.f32 %v3930, %v3940
        %v3970 = vadd.f32 %v3931, %v3940
        %v3971 = vadd.f32 %v3932, %v3940
        %v3972 = vadd.f32 %v3933, %v3940
        %v3973 = vadd.f32 %v3934, %v3940
        %v3974 = vmax.f32 %v3942, 0.0
        %v3975 = vmax.f32 %v3943, 0.0
        %v3976 = vmax.f32 %v3944, 0.0
        %v3977 = vmax.f32 %v3945, 0.0
        %v3978 = vmax.f32 %v3946, 0.0
        %v3979 = vmax.f32 %v3947, 0.0
        %v3980 = vmax.f32 %v3948, 0.0
        %v3981 = vmax.f32 %v3949, 0.0
        %v3982 = vmax.f32 %v3950, 0.0
        %v3983 = vmax.f32 %v3951, 0.0
        %v3984 = vmax.f32 %v3952, 0.0
        %v3985 = vmax.f32 %v3953, 0.0
        %v3986 = vmax.f32 %v3954, 0.0
        %v3987 = vmax.f32 %v3955, 0.0
        %v3988 = vmax.f32 %v3956, 0.0
        %v3989 = vmax.f32 %v3957, 0.0
        %v3990 = vmax.f32 %v3958, 0.0
        %v3991 = vmax.f32 %v3959, 0.0
        %v3992 = vmax.f32 %v3960, 0.0
        %v3993 = vmax.f32 %v3961, 0.0
        %v3994 = vmax.f32 %v3962, 0.0
        %v3995 = vmax.f32 %v3963, 0.0
        %v3996 = vmax.f32 %v3964, 0.0
        %v3997 = vmax.f32 %v3965, 0.0
        %v3998 = vmax.f32 %v3966, 0.0
        %v3999 = vmax.f32 %v3967, 0.0
        %v4000 = vmax.f32 %v3968, 0.0
        %v4001 = vmax.f32 %v3969, 0.0
        %v4002 = vmax.f32 %v3970, 0.0
        %v4003 = vmax.f32 %v3971, 0.0
        %v4004 = vmax.f32 %v3972, 0.0
        %v4005 = vmax.f32 %v3973, 0.0
        %v4006 = vpack.c.bf16 %v3975, %v3974
        %v4007 = vpack.c.bf16 %v3977, %v3976
        %v4008 = vpack.c.bf16 %v3979, %v3978
        %v4009 = vpack.c.bf16 %v3981, %v3980
        %v4010 = vpack.c.bf16 %v3983, %v3982
        %v4011 = vpack.c.bf16 %v3985, %v3984
        %v4012 = vpack.c.bf16 %v3987, %v3986
        %v4013 = vpack.c.bf16 %v3989, %v3988
        %v4014 = vpack.c.bf16 %v3991, %v3990
        %v4015 = vpack.c.bf16 %v3993, %v3992
        %v4016 = vpack.c.bf16 %v3995, %v3994
        %v4017 = vpack.c.bf16 %v3997, %v3996
        %v4018 = vpack.c.bf16 %v3999, %v3998
        %v4019 = vpack.c.bf16 %v4001, %v4000
        %v4020 = vpack.c.bf16 %v4003, %v4002
        %v4021 = vpack.c.bf16 %v4005, %v4004
        %v4022 = vld [vmem:[%s4] sm:$0xf]
        %v4023 = vld [vmem:[%s4 + $0x4] sm:$0xf]
        %v4024 = vld [vmem:[%s4 + $0x8] sm:$0xf]
        %v4025 = vld [vmem:[%s4 + $0xc] sm:$0xf]
        %v4026 = vld [vmem:[%s4 + $0x10] sm:$0xf]
        %v4027 = vld [vmem:[%s4 + $0x14] sm:$0xf]
        %v4028 = vld [vmem:[%s4 + $0x18] sm:$0xf]
        %v4029 = vld [vmem:[%s4 + $0x1c] sm:$0xf]
        %v4030 = vld [vmem:[%s4 + $0x20] sm:$0xf]
        %v4031 = vld [vmem:[%s4 + $0x24] sm:$0xf]
        %v4032 = vld [vmem:[%s4 + $0x28] sm:$0xf]
        %v4033 = vld [vmem:[%s4 + $0x2c] sm:$0xf]
        %v4034 = vld [vmem:[%s4 + $0x30] sm:$0xf]
        %v4035 = vld [vmem:[%s4 + $0x34] sm:$0xf]
        %v4036 = vld [vmem:[%s4 + $0x38] sm:$0xf]
        %v4037 = vld [vmem:[%s4 + $0x3c] sm:$0xf]
        %v4038 = vld [vmem:[%s5] sm:$0x1]
        %v4040 = vlaneseq
        %v4041 = vshrl.u32 %v4040, 7
        %v4042 = vsub.s32 0, %v4041
        %v4043 = vrot.slane %v4038, %v4042
        %v4061 = vunpack.c.l.b16 %v4022
        %v4062 = vunpack.c.l.b16 %v4023
        %v4063 = vunpack.c.l.b16 %v4024
        %v4064 = vunpack.c.l.b16 %v4025
        %v4065 = vunpack.c.l.b16 %v4026
        %v4066 = vunpack.c.l.b16 %v4027
        %v4067 = vunpack.c.l.b16 %v4028
        %v4068 = vunpack.c.l.b16 %v4029
        %v4069 = vunpack.c.l.b16 %v4030
        %v4070 = vunpack.c.l.b16 %v4031
        %v4071 = vunpack.c.l.b16 %v4032
        %v4072 = vunpack.c.l.b16 %v4033
        %v4073 = vunpack.c.l.b16 %v4034
        %v4074 = vunpack.c.l.b16 %v4035
        %v4075 = vunpack.c.l.b16 %v4036
        %v4076 = vunpack.c.l.b16 %v4037
        %v4077 = vpack.c.b16 %v4062, %v4061
        %v4078 = vpack.c.b16 %v4064, %v4063
        %v4079 = vpack.c.b16 %v4066, %v4065
        %v4080 = vpack.c.b16 %v4068, %v4067
        %v4081 = vpack.c.b16 %v4070, %v4069
        %v4082 = vpack.c.b16 %v4072, %v4071
        %v4083 = vpack.c.b16 %v4074, %v4073
        %v4084 = vpack.c.b16 %v4076, %v4075
        %4093 = vmatprep.subr.bf16.mxu0 0
        %4094 = vmatpush1.bf16.msra.mxu0 %v4077
        %4095 = vmatprep.subr.bf16.mxu0 0
        %4096 = vmatpush1.bf16.msra.mxu0 %v4078
        %4097 = vmatprep.subr.bf16.mxu0 0
        %4098 = vmatpush1.bf16.msra.mxu0 %v4079
        %4099 = vmatprep.subr.bf16.mxu0 0
        %4100 = vmatpush1.bf16.msra.mxu0 %v4080
        %4101 = vmatprep.subr.bf16.mxu0 0
        %4102 = vmatpush1.bf16.msra.mxu0 %v4081
        %4103 = vmatprep.subr.bf16.mxu0 0
        %4104 = vmatpush1.bf16.msra.mxu0 %v4082
        %4105 = vmatprep.subr.bf16.mxu0 0
        %4106 = vmatpush1.bf16.msra.mxu0 %v4083
        %4107 = vmatprep.subr.bf16.mxu0 0
        %4108 = vmatpush1.bf16.msra.mxu0 %v4084
        %4109 = vmatprep.subr.bf16.mxu0 0
        %4110 = vmatpush1.bf16.msra.mxu0 0
        %4111 = vmatprep.subr.bf16.mxu0 0
        %4112 = vmatpush1.bf16.msra.mxu0 0
        %4113 = vmatprep.subr.bf16.mxu0 0
        %4114 = vmatpush1.bf16.msra.mxu0 0
        %4115 = vmatprep.subr.bf16.mxu0 0
        %4116 = vmatpush1.bf16.msra.mxu0 0
        %4117 = vmatprep.subr.bf16.mxu0 0
        %4118 = vmatpush1.bf16.msra.mxu0 0
        %4119 = vmatprep.subr.bf16.mxu0 0
        %4120 = vmatpush1.bf16.msra.mxu0 0
        %4121 = vmatprep.subr.bf16.mxu0 0
        %4122 = vmatpush1.bf16.msra.mxu0 0
        %4123 = vmatprep.subr.bf16.mxu0 0
        %4124 = vmatpush1.bf16.msra.mxu0 0
        %4125 = vmatprep.mubr.bf16.mxu0 0
        %4126 = vmatmul.mubr.bf16.gmra.mrb[0].mxu0 %v4006
        %v4127 = vpop.f32.mrb[0].mxu0
        %v4128 = vadd.f32 %v4043, %v4127
        %v4129 = vpop.f32.mrb[0].mxu0
        %v4130 = vpop.f32.mrb[0].mxu0
        %v4131 = vadd.f32 %v4043, %v4130
        %v4132 = vpop.f32.mrb[0].mxu0
        %4133 = vmatprep.mubr.bf16.mxu0 0
        %4134 = vmatmul.mubr.bf16.gmra.mrb[0].mxu0 %v4007
        %v4135 = vpop.f32.mrb[0].mxu0
        %v4136 = vadd.f32 %v4043, %v4135
        %v4137 = vpop.f32.mrb[0].mxu0
        %v4138 = vpop.f32.mrb[0].mxu0
        %v4139 = vadd.f32 %v4043, %v4138
        %v4140 = vpop.f32.mrb[0].mxu0
        %4141 = vmatprep.mubr.bf16.mxu0 0
        %4142 = vmatmul.mubr.bf16.gmra.mrb[0].mxu0 %v4008
        %v4143 = vpop.f32.mrb[0].mxu0
        %v4144 = vadd.f32 %v4043, %v4143
        %v4145 = vpop.f32.mrb[0].mxu0
        %v4146 = vpop.f32.mrb[0].mxu0
        %v4147 = vadd.f32 %v4043, %v4146
        %v4148 = vpop.f32.mrb[0].mxu0
        %4149 = vmatprep.mubr.bf16.mxu0 0
        %4150 = vmatmul.mubr.bf16.gmra.mrb[0].mxu0 %v4009
        %v4151 = vpop.f32.mrb[0].mxu0
        %v4152 = vadd.f32 %v4043, %v4151
        %v4153 = vpop.f32.mrb[0].mxu0
        %v4154 = vpop.f32.mrb[0].mxu0
        %v4155 = vadd.f32 %v4043, %v4154
        %v4156 = vpop.f32.mrb[0].mxu0
        %4157 = vmatprep.mubr.bf16.mxu0 0
        %4158 = vmatmul.mubr.bf16.gmra.mrb[0].mxu0 %v4010
        %v4159 = vpop.f32.mrb[0].mxu0
        %v4160 = vadd.f32 %v4043, %v4159
        %v4161 = vpop.f32.mrb[0].mxu0
        %v4162 = vpop.f32.mrb[0].mxu0
        %v4163 = vadd.f32 %v4043, %v4162
        %v4164 = vpop.f32.mrb[0].mxu0
        %4165 = vmatprep.mubr.bf16.mxu0 0
        %4166 = vmatmul.mubr.bf16.gmra.mrb[0].mxu0 %v4011
        %v4167 = vpop.f32.mrb[0].mxu0
        %v4168 = vadd.f32 %v4043, %v4167
        %v4169 = vpop.f32.mrb[0].mxu0
        %v4170 = vpop.f32.mrb[0].mxu0
        %v4171 = vadd.f32 %v4043, %v4170
        %v4172 = vpop.f32.mrb[0].mxu0
        %4173 = vmatprep.mubr.bf16.mxu0 0
        %4174 = vmatmul.mubr.bf16.gmra.mrb[0].mxu0 %v4012
        %v4175 = vpop.f32.mrb[0].mxu0
        %v4176 = vadd.f32 %v4043, %v4175
        %v4177 = vpop.f32.mrb[0].mxu0
        %v4178 = vpop.f32.mrb[0].mxu0
        %v4179 = vadd.f32 %v4043, %v4178
        %v4180 = vpop.f32.mrb[0].mxu0
        %4181 = vmatprep.mubr.bf16.mxu0 0
        %4182 = vmatmul.mubr.bf16.gmra.mrb[0].mxu0 %v4013
        %v4183 = vpop.f32.mrb[0].mxu0
        %v4184 = vadd.f32 %v4043, %v4183
        %v4185 = vpop.f32.mrb[0].mxu0
        %v4186 = vpop.f32.mrb[0].mxu0
        %v4187 = vadd.f32 %v4043, %v4186
        %v4188 = vpop.f32.mrb[0].mxu0
        %4189 = vmatprep.mubr.bf16.mxu0 0
        %4190 = vmatmul.mubr.bf16.gmra.mrb[0].mxu0 %v4014
        %v4191 = vpop.f32.mrb[0].mxu0
        %v4192 = vadd.f32 %v4043, %v4191
        %v4193 = vpop.f32.mrb[0].mxu0
        %v4194 = vpop.f32.mrb[0].mxu0
        %v4195 = vadd.f32 %v4043, %v4194
        %v4196 = vpop.f32.mrb[0].mxu0
        %4197 = vmatprep.mubr.bf16.mxu0 0
        %4198 = vmatmul.mubr.bf16.gmra.mrb[0].mxu0 %v4015
        %v4199 = vpop.f32.mrb[0].mxu0
        %v4200 = vadd.f32 %v4043, %v4199
        %v4201 = vpop.f32.mrb[0].mxu0
        %v4202 = vpop.f32.mrb[0].mxu0
        %v4203 = vadd.f32 %v4043, %v4202
        %v4204 = vpop.f32.mrb[0].mxu0
        %4205 = vmatprep.mubr.bf16.mxu0 0
        %4206 = vmatmul.mubr.bf16.gmra.mrb[0].mxu0 %v4016
        %v4207 = vpop.f32.mrb[0].mxu0
        %v4208 = vadd.f32 %v4043, %v4207
        %v4209 = vpop.f32.mrb[0].mxu0
        %v4210 = vpop.f32.mrb[0].mxu0
        %v4211 = vadd.f32 %v4043, %v4210
        %v4212 = vpop.f32.mrb[0].mxu0
        %4213 = vmatprep.mubr.bf16.mxu0 0
        %4214 = vmatmul.mubr.bf16.gmra.mrb[0].mxu0 %v4017
        %v4215 = vpop.f32.mrb[0].mxu0
        %v4216 = vadd.f32 %v4043, %v4215
        %v4217 = vpop.f32.mrb[0].mxu0
        %v4218 = vpop.f32.mrb[0].mxu0
        %v4219 = vadd.f32 %v4043, %v4218
        %v4220 = vpop.f32.mrb[0].mxu0
        %4221 = vmatprep.mubr.bf16.mxu0 0
        %4222 = vmatmul.mubr.bf16.gmra.mrb[0].mxu0 %v4018
        %v4223 = vpop.f32.mrb[0].mxu0
        %v4224 = vadd.f32 %v4043, %v4223
        %v4225 = vpop.f32.mrb[0].mxu0
        %v4226 = vpop.f32.mrb[0].mxu0
        %v4227 = vadd.f32 %v4043, %v4226
        %v4228 = vpop.f32.mrb[0].mxu0
        %4229 = vmatprep.mubr.bf16.mxu0 0
        %4230 = vmatmul.mubr.bf16.gmra.mrb[0].mxu0 %v4019
        %v4231 = vpop.f32.mrb[0].mxu0
        %v4232 = vadd.f32 %v4043, %v4231
        %v4233 = vpop.f32.mrb[0].mxu0
        %v4234 = vpop.f32.mrb[0].mxu0
        %v4235 = vadd.f32 %v4043, %v4234
        %v4236 = vpop.f32.mrb[0].mxu0
        %4237 = vmatprep.mubr.bf16.mxu0 0
        %4238 = vmatmul.mubr.bf16.gmra.mrb[0].mxu0 %v4020
        %v4239 = vpop.f32.mrb[0].mxu0
        %v4240 = vadd.f32 %v4043, %v4239
        %v4241 = vpop.f32.mrb[0].mxu0
        %v4242 = vpop.f32.mrb[0].mxu0
        %v4243 = vadd.f32 %v4043, %v4242
        %v4244 = vpop.f32.mrb[0].mxu0
        %4245 = vmatprep.mubr.bf16.mxu0 0
        %4246 = vmatmul.mubr.bf16.gmra.mrb[0].mxu0 %v4021
        %v4247 = vpop.f32.mrb[0].mxu0
        %v4248 = vadd.f32 %v4043, %v4247
        %v4249 = vpop.f32.mrb[0].mxu0
        %v4250 = vpop.f32.mrb[0].mxu0
        %v4251 = vadd.f32 %v4043, %v4250
        %v4252 = vpop.f32.mrb[0].mxu0
        %4253 = vdwg.mxu0
        %v4254 = vpack.c.bf16 %v4131, %v4128
        %v4255 = vpack.c.bf16 %v4139, %v4136
        %v4256 = vpack.c.bf16 %v4147, %v4144
        %v4257 = vpack.c.bf16 %v4155, %v4152
        %v4258 = vpack.c.bf16 %v4163, %v4160
        %v4259 = vpack.c.bf16 %v4171, %v4168
        %v4260 = vpack.c.bf16 %v4179, %v4176
        %v4261 = vpack.c.bf16 %v4187, %v4184
        %v4262 = vpack.c.bf16 %v4195, %v4192
        %v4263 = vpack.c.bf16 %v4203, %v4200
        %v4264 = vpack.c.bf16 %v4211, %v4208
        %v4265 = vpack.c.bf16 %v4219, %v4216
        %v4266 = vpack.c.bf16 %v4227, %v4224
        %v4267 = vpack.c.bf16 %v4235, %v4232
        %v4268 = vpack.c.bf16 %v4243, %v4240
        %v4269 = vpack.c.bf16 %v4251, %v4248
        %v4286 = vunpack.c.l.b16 %v4254
        %v4287 = vunpack.c.h.b16 %v4254
        %v4288 = vunpack.c.l.b16 %v4255
        %v4289 = vunpack.c.h.b16 %v4255
        %v4290 = vunpack.c.l.b16 %v4256
        %v4291 = vunpack.c.h.b16 %v4256
        %v4292 = vunpack.c.l.b16 %v4257
        %v4293 = vunpack.c.h.b16 %v4257
        %v4294 = vunpack.c.l.b16 %v4258
        %v4295 = vunpack.c.h.b16 %v4258
        %v4296 = vunpack.c.l.b16 %v4259
        %v4297 = vunpack.c.h.b16 %v4259
        %v4298 = vunpack.c.l.b16 %v4260
        %v4299 = vunpack.c.h.b16 %v4260
        %v4300 = vunpack.c.l.b16 %v4261
        %v4301 = vunpack.c.h.b16 %v4261
        %v4302 = vunpack.c.l.b16 %v4262
        %v4303 = vunpack.c.h.b16 %v4262
        %v4304 = vunpack.c.l.b16 %v4263
        %v4305 = vunpack.c.h.b16 %v4263
        %v4306 = vunpack.c.l.b16 %v4264
        %v4307 = vunpack.c.h.b16 %v4264
        %v4308 = vunpack.c.l.b16 %v4265
        %v4309 = vunpack.c.h.b16 %v4265
        %v4310 = vunpack.c.l.b16 %v4266
        %v4311 = vunpack.c.h.b16 %v4266
        %v4312 = vunpack.c.l.b16 %v4267
        %v4313 = vunpack.c.h.b16 %v4267
        %v4314 = vunpack.c.l.b16 %v4268
        %v4315 = vunpack.c.h.b16 %v4268
        %v4316 = vunpack.c.l.b16 %v4269
        %v4317 = vunpack.c.h.b16 %v4269
        %v4318 = vpack.c.b16 %v4286, %v4286
        %v4319 = vpack.c.b16 %v4287, %v4287
        %v4320 = vpack.c.b16 %v4288, %v4288
        %v4321 = vpack.c.b16 %v4289, %v4289
        %v4322 = vpack.c.b16 %v4290, %v4290
        %v4323 = vpack.c.b16 %v4291, %v4291
        %v4324 = vpack.c.b16 %v4292, %v4292
        %v4325 = vpack.c.b16 %v4293, %v4293
        %v4326 = vpack.c.b16 %v4294, %v4294
        %v4327 = vpack.c.b16 %v4295, %v4295
        %v4328 = vpack.c.b16 %v4296, %v4296
        %v4329 = vpack.c.b16 %v4297, %v4297
        %v4330 = vpack.c.b16 %v4298, %v4298
        %v4331 = vpack.c.b16 %v4299, %v4299
        %v4332 = vpack.c.b16 %v4300, %v4300
        %v4333 = vpack.c.b16 %v4301, %v4301
        %v4334 = vpack.c.b16 %v4302, %v4302
        %v4335 = vpack.c.b16 %v4303, %v4303
        %v4336 = vpack.c.b16 %v4304, %v4304
        %v4337 = vpack.c.b16 %v4305, %v4305
        %v4338 = vpack.c.b16 %v4306, %v4306
        %v4339 = vpack.c.b16 %v4307, %v4307
        %v4340 = vpack.c.b16 %v4308, %v4308
        %v4341 = vpack.c.b16 %v4309, %v4309
        %v4342 = vpack.c.b16 %v4310, %v4310
        %v4343 = vpack.c.b16 %v4311, %v4311
        %v4344 = vpack.c.b16 %v4312, %v4312
        %v4345 = vpack.c.b16 %v4313, %v4313
        %v4346 = vpack.c.b16 %v4314, %v4314
        %v4347 = vpack.c.b16 %v4315, %v4315
        %v4348 = vpack.c.b16 %v4316, %v4316
        %v4349 = vpack.c.b16 %v4317, %v4317
        %4382 = vst [vmem:[%s296] sm:$0xf] %v4318
        %4383 = vst [vmem:[%s296 + $0x4] sm:$0xf] %v4319
        %4384 = vst [vmem:[%s296 + $0x8] sm:$0xf] %v4320
        %4385 = vst [vmem:[%s296 + $0xc] sm:$0xf] %v4321
        %4386 = vst [vmem:[%s296 + $0x10] sm:$0xf] %v4322
        %4387 = vst [vmem:[%s296 + $0x14] sm:$0xf] %v4323
        %4388 = vst [vmem:[%s296 + $0x18] sm:$0xf] %v4324
        %4389 = vst [vmem:[%s296 + $0x1c] sm:$0xf] %v4325
        %4390 = vst [vmem:[%s296 + $0x20] sm:$0xf] %v4326
        %4391 = vst [vmem:[%s296 + $0x24] sm:$0xf] %v4327
        %4392 = vst [vmem:[%s296 + $0x28] sm:$0xf] %v4328
        %4393 = vst [vmem:[%s296 + $0x2c] sm:$0xf] %v4329
        %4394 = vst [vmem:[%s296 + $0x30] sm:$0xf] %v4330
        %4395 = vst [vmem:[%s296 + $0x34] sm:$0xf] %v4331
        %4396 = vst [vmem:[%s296 + $0x38] sm:$0xf] %v4332
        %4397 = vst [vmem:[%s296 + $0x3c] sm:$0xf] %v4333
        %4398 = vst [vmem:[%s296 + $0x40] sm:$0xf] %v4334
        %4399 = vst [vmem:[%s296 + $0x44] sm:$0xf] %v4335
        %4400 = vst [vmem:[%s296 + $0x48] sm:$0xf] %v4336
        %4401 = vst [vmem:[%s296 + $0x4c] sm:$0xf] %v4337
        %4402 = vst [vmem:[%s296 + $0x50] sm:$0xf] %v4338
        %4403 = vst [vmem:[%s296 + $0x54] sm:$0xf] %v4339
        %4404 = vst [vmem:[%s296 + $0x58] sm:$0xf] %v4340
        %4405 = vst [vmem:[%s296 + $0x5c] sm:$0xf] %v4341
        %4406 = vst [vmem:[%s296 + $0x60] sm:$0xf] %v4342
        %4407 = vst [vmem:[%s296 + $0x64] sm:$0xf] %v4343
        %4408 = vst [vmem:[%s296 + $0x68] sm:$0xf] %v4344
        %4409 = vst [vmem:[%s296 + $0x6c] sm:$0xf] %v4345
        %4410 = vst [vmem:[%s296 + $0x70] sm:$0xf] %v4346
        %4411 = vst [vmem:[%s296 + $0x74] sm:$0xf] %v4347
        %4412 = vst [vmem:[%s296 + $0x78] sm:$0xf] %v4348
        %4413 = vst [vmem:[%s296 + $0x7c] sm:$0xf] %v4349
      $region52: #{psp_head_forward.1} parent=43 // pred_fallthru
        _
      %p4414 = scmp.lt.s32.totalorder %s21, 1
      %s4415 = scalar_select %p4414, %s21, 1
      %s4416 = smul.addr %s4415, 32
      %s4417 = smul.addr %s4416, 4
      %s4418 = scalar_lea.vmem %s6, %s4417
      // Predicated region
      $region53: #{psp_head_forward.1} parent=43 // pred_check
        %p4419 = pneg %p185
      $region54: #{psp_head_forward.1} parent=43 // pred_check_branch
        %4421 = sbr.rel (%p4419) target = $region56
      $region55: #{psp_head_forward.1} parent=43 // pred_region
        _
      $region56: #{psp_head_forward.1} parent=43 // pred_fallthru
        _
    $region44: #{psp_head_forward.1} parent=5 // pred_fallthru
      _
    %p4422 = scmp.le.s32.totalorder 2, %s12
    // Predicated region
    $region57: #{psp_head_forward.1} parent=5 // pred_check
      %p4423 = pneg %p4422
    $region58: #{psp_head_forward.1} parent=5 // pred_check_branch
      %4425 = sbr.rel (%p4423) target = $region60
    $region59: #{psp_head_forward.1} parent=5 // pred_region
      %s4426 = ssub.s32 %s12, 2
      // Predicated region
      $region61: #{psp_head_forward.1} parent=59 // pred_check
        %p4427 = pneg %p191
      $region62: #{psp_head_forward.1} parent=59 // pred_check_branch
        %4429 = sbr.rel (%p4427) target = $region64
      $region63: #{psp_head_forward.1} parent=59 // pred_region
        %p4430 = scmp.lt.s32.totalorder %s23, 1
        %s4431 = scalar_select %p4430, %s23, 1
        %s4432 = smul.addr %s4431, 32
        %s4433 = smul.addr %s4432, 4
        %s4434 = scalar_lea.vmem %s6, %s4433
      $region64: #{psp_head_forward.1} parent=59 // pred_fallthru
        _
    $region60: #{psp_head_forward.1} parent=5 // pred_fallthru
      _
  $region6: #{psp_head_forward.1} parent=0 // loop_footer
    %s16 = sadd.s32 1, %s12
  $region7: #{psp_head_forward.1} parent=0 // loop_footer_branch
    %11 = sbr.rel target = $region3
  $region8: #{psp_head_forward.1} parent=0 // loop_exit
    _

</llo_original>
